<compile_context>
chip_gen: v7x
topology: tpu7x:2x2x1
jax: 0.10.0
libtpu: 0.0.40
codegen_flags: <defaults>
</compile_context>

<pallas_src>
import functools
import math

import numpy as np
import jax
import jax.numpy as jnp
from jax.experimental import pallas as pl
from jax.experimental.pallas import tpu as pltpu


def _round_up(x, m):
    return (x + m - 1) // m * m


def _pick_band_rows(ho, block_rows):
    """Pick th (output rows per grid step): th == ho, or th % 8 == 0."""
    block_rows = max(int(block_rows), 8)
    if ho <= block_rows:
        return ho, False                      # whole-Ho band: no pad/clamp/slice
    t = (block_rows // 8) * 8
    while t >= 8:
        if ho % t == 0:
            return t, False                   # exact tiling: no pad/clamp/slice
        t -= 8
    return (block_rows // 8) * 8, True        # padded last band (rows clamped)


def _vmem_cap_bytes():
    try:
        return int(pltpu.get_tpu_info().vmem_capacity_bytes)
    except Exception:
        return 64 << 20                       # conservative (v7x per-core VMEM)


def _corr_band_kernel(x_ref, w_ref, o_ref, *, kh, kw, cp, ho, clamp, sub_align):
    """One band of `th` output rows of the correlation map for one batch item.

    x_ref: (1, H*cp, W)    channel-folded feature map (bf16)
    w_ref: (kw*K, kh*cp)   fused exemplar taps, rows ordered (dw, k) (bf16)
    o_ref: (1, K, th, Wo)  NCHW output band (f32)
    """
    band = pl.program_id(1)
    K = o_ref.shape[1]
    th = o_ref.shape[2]
    Wo = o_ref.shape[3]
    khcp = kh * cp
    row0 = band * th

    # Loop-invariant fused LHS: all kw taps on the M dimension.
    w_all = w_ref[...]                                    # (kw*K, kh*cp)

    rows = []
    for r in range(th):                                   # th bounded (<= 32ish)
        row = row0 + r
        if clamp:
            # Padded last band only: keep reads in bounds; the duplicated rows
            # land in the padded output region and are sliced off outside.
            row = jnp.minimum(row, ho - 1)
        start = pl.multiple_of(row * cp, sub_align)       # sublane aligned
        slab = x_ref[0, pl.ds(start, khcp), :]            # (kh*cp, W), aligned
        # One dot per output row against the full-width, lane-aligned slab.
        full = jnp.dot(w_all, slab, preferred_element_type=jnp.float32)
        # Per-tap lane shift applied to the tiny (K, W) result, not the RHS.
        acc = full[0:K, 0:Wo]
        for dw in range(1, kw):
            acc = acc + full[dw * K:(dw + 1) * K, dw:dw + Wo]
        rows.append(acc)

    # Single wide store for the whole band (instead of th masked row stores).
    o_ref[0] = jnp.stack(rows, axis=1).astype(o_ref.dtype)


@functools.partial(jax.jit, static_argnames=("block_rows", "mxu_dtype"))
def feature_correlation(f_map, examplar_f, *, block_rows=32,
                        mxu_dtype=jnp.bfloat16):
    """NCHW equivalent of torch.nn.functional.conv2d(f_map, examplar_f, stride=1)."""
    N, C, H, W = f_map.shape
    K, Cw, kh, kw = examplar_f.shape
    if Cw != C:
        raise ValueError("channel mismatch between f_map and examplar_f")
    Ho, Wo = H - kh + 1, W - kw + 1
    if Ho <= 0 or Wo <= 0:
        raise ValueError("exemplar larger than feature map")

    itemsize = jnp.dtype(mxu_dtype).itemsize
    pack = max(1, 4 // itemsize)              # sublane packing factor (bf16 -> 2)
    cp = _round_up(C, 8 * pack)               # bf16 -> channels padded to 16
    sub_align = 8 * pack
    th, padded = _pick_band_rows(Ho, block_rows)
    ho_pad = _round_up(Ho, th)

    # ---- host-side layout prep ----
    # TODO(synk): this folded (N, H*cp, W) bf16 layout costs one extra HBM pass;
    # ideally the producing backbone layer emits it directly (fuse pad/cast).
    x = jnp.transpose(f_map, (0, 2, 1, 3))                # (N, H, C, W)
    w = examplar_f                                        # (K, C, kh, kw)
    if cp != C:
        x = jnp.pad(x, ((0, 0), (0, 0), (0, cp - C), (0, 0)))
        w = jnp.pad(w, ((0, 0), (0, cp - C), (0, 0), (0, 0)))
    x = x.reshape(N, H * cp, W).astype(mxu_dtype)         # channel-folded rows
    # w_prep[dw*K + k, dh*cp + c] = w[k, c, dh, dw]  (all kw taps fused on M)
    w = jnp.transpose(w, (3, 0, 2, 1)).reshape(kw * K, kh * cp).astype(mxu_dtype)

    # ---- generation-aware VMEM budget ----
    x_blk = _round_up(H * cp, 8) * _round_up(W, 128) * itemsize
    w_blk = _round_up(kw * K, 8) * _round_up(kh * cp, 128) * itemsize
    o_blk = K * _round_up(th, 8) * _round_up(Wo, 128) * 4
    vmem_cap = _vmem_cap_bytes()
    need = 2 * (x_blk + w_blk + o_blk) + (4 << 20)
    vmem_limit = int(min(max(need, 32 << 20), vmem_cap * 3 // 4))

    # The x block is band-invariant (its block index only changes with n); if
    # the double-buffered footprint would not fit comfortably, single-buffer it.
    x_spec_kwargs = {}
    if need > vmem_cap * 3 // 4:
        # TODO(synk): very large maps should additionally be halo-tiled along H
        # with a (kh-1)-row halo instead of keeping the whole map resident.
        x_spec_kwargs["pipeline_mode"] = pl.Buffered(1)

    kernel = functools.partial(_corr_band_kernel, kh=kh, kw=kw, cp=cp, ho=Ho,
                               clamp=padded, sub_align=sub_align)
    out = pl.pallas_call(
        kernel,
        out_shape=jax.ShapeDtypeStruct((N, K, ho_pad, Wo), jnp.float32),
        grid_spec=pltpu.PrefetchScalarGridSpec(
            num_scalar_prefetch=0,
            grid=(N, ho_pad // th),
            in_specs=[
                pl.BlockSpec((1, H * cp, W), lambda n, b: (n, 0, 0),
                             **x_spec_kwargs),
                pl.BlockSpec((kw * K, kh * cp), lambda n, b: (0, 0)),
            ],
            out_specs=pl.BlockSpec((1, K, th, Wo), lambda n, b: (n, 0, b, 0)),
        ),
        compiler_params=pltpu.CompilerParams(
            dimension_semantics=("parallel", "parallel"),
            vmem_limit_bytes=vmem_limit),
    )(x, w)
    if ho_pad != Ho:
        out = out[:, :, :Ho, :]
    return out


if __name__ == "__main__":
    key = jax.random.PRNGKey(0)
    k_f, k_e = jax.random.split(key)

    # Small FamNet-like shapes: batch=2 feature maps (C=32, 24x24 spatial),
    # K=3 exemplar filters of size 5x5 -> correlation map (2, 3, 20, 20).
    f_map = jax.random.normal(k_f, (2, 32, 24, 24), jnp.float32)
    examplar_f = (jax.random.normal(k_e, (3, 32, 5, 5), jnp.float32)
                  / math.sqrt(32 * 5 * 5))

    out = feature_correlation(f_map, examplar_f)
    out = jax.block_until_ready(out)
    assert out.shape == (2, 3, 20, 20), out.shape

    # Reference check against XLA's conv on the same bf16-rounded inputs
    # (isolates kernel indexing from the intentional bf16 MXU rounding).
    f_bf = f_map.astype(jnp.bfloat16).astype(jnp.float32)
    e_bf = examplar_f.astype(jnp.bfloat16).astype(jnp.float32)
    ref = jax.lax.conv_general_dilated(
        f_bf, e_bf, window_strides=(1, 1), padding="VALID",
        dimension_numbers=("NCHW", "OIHW", "NCHW"),
        precision=jax.lax.Precision.HIGHEST)
    np.testing.assert_allclose(np.asarray(out), np.asarray(ref),
                               rtol=2e-2, atol=2e-2)
    assert bool(jnp.all(jnp.isfinite(out)))
    print("KERNEL_OK")
</pallas_src>

<mosaic_0001>
module attributes {stable_mosaic.version = 11 : i64} {
  func.func @_corr_band_kernel(%arg0: i32, %arg1: i32, %arg2: memref<1x768x24xbf16, #tpu.memory_space<vmem>>, %arg3: memref<15x160xbf16, #tpu.memory_space<vmem>>, %arg4: memref<1x3x20x20xf32, #tpu.memory_space<vmem>>) attributes {dimension_semantics = [#tpu.dimension_semantics<parallel>, #tpu.dimension_semantics<parallel>], iteration_bounds = array<i64: 2, 1>, scalar_prefetch = 0 : i64, scratch_operands = 0 : i64, tpu.core_type = #tpu.core_type<tc>, window_params = [{transform_indices = @transform_0, window_bounds = array<i64: 1, 768, 24>}, {pipeline_mode = #tpu.pipeline_mode<synchronous>, transform_indices = @transform_1, window_bounds = array<i64: 15, 160>}, {transform_indices = @transform_2, window_bounds = array<i64: 1, 3, 20, 20>}]} {
    %c20_i32 = arith.constant 20 : i32
    %0 = arith.muli %arg1, %c20_i32 : i32
    %c0 = arith.constant 0 : index
    %c0_0 = arith.constant 0 : index
    %1 = vector.load %arg3[%c0, %c0_0] : memref<15x160xbf16, #tpu.memory_space<vmem>>, vector<15x160xbf16>
    %c0_i32 = arith.constant 0 : i32
    %2 = arith.addi %0, %c0_i32 : i32
    %c32_i32 = arith.constant 32 : i32
    %3 = arith.muli %2, %c32_i32 : i32
    %4 = tpu.assume_multiple %3, 16 : i32
    %c0_1 = arith.constant 0 : index
    %5 = arith.index_cast %4 : i32 to index
    %c0_2 = arith.constant 0 : index
    %6 = vector.load %arg2[%c0_1, %5, %c0_2] : memref<1x768x24xbf16, #tpu.memory_space<vmem>>, vector<1x160x24xbf16>
    %7 = vector.shape_cast %6 : vector<1x160x24xbf16> to vector<160x24xbf16>
    %cst = arith.constant dense<0.000000e+00> : vector<15x24xf32>
    %8 = tpu.matmul %1, %7, %cst {dimension_numbers = #tpu.dot_dimension_numbers<[1], [0], [0], [1], [0, 0, 1, 1], [], []>} : vector<15x160xbf16>, vector<160x24xbf16>, vector<15x24xf32> -> vector<15x24xf32>
    %9 = vector.extract_strided_slice %8 {offsets = [0, 0], sizes = [3, 20], strides = [1, 1]} : vector<15x24xf32> to vector<3x20xf32>
    %10 = vector.extract_strided_slice %8 {offsets = [3, 1], sizes = [3, 20], strides = [1, 1]} : vector<15x24xf32> to vector<3x20xf32>
    %11 = arith.addf %9, %10 : vector<3x20xf32>
    %12 = vector.extract_strided_slice %8 {offsets = [6, 2], sizes = [3, 20], strides = [1, 1]} : vector<15x24xf32> to vector<3x20xf32>
    %13 = arith.addf %11, %12 : vector<3x20xf32>
    %14 = vector.extract_strided_slice %8 {offsets = [9, 3], sizes = [3, 20], strides = [1, 1]} : vector<15x24xf32> to vector<3x20xf32>
    %15 = arith.addf %13, %14 : vector<3x20xf32>
    %16 = vector.extract_strided_slice %8 {offsets = [12, 4], sizes = [3, 20], strides = [1, 1]} : vector<15x24xf32> to vector<3x20xf32>
    %17 = arith.addf %15, %16 : vector<3x20xf32>
    %c1_i32 = arith.constant 1 : i32
    %18 = arith.addi %0, %c1_i32 : i32
    %c32_i32_3 = arith.constant 32 : i32
    %19 = arith.muli %18, %c32_i32_3 : i32
    %20 = tpu.assume_multiple %19, 16 : i32
    %c0_4 = arith.constant 0 : index
    %21 = arith.index_cast %20 : i32 to index
    %c0_5 = arith.constant 0 : index
    %22 = vector.load %arg2[%c0_4, %21, %c0_5] : memref<1x768x24xbf16, #tpu.memory_space<vmem>>, vector<1x160x24xbf16>
    %23 = vector.shape_cast %22 : vector<1x160x24xbf16> to vector<160x24xbf16>
    %cst_6 = arith.constant dense<0.000000e+00> : vector<15x24xf32>
    %24 = tpu.matmul %1, %23, %cst_6 {dimension_numbers = #tpu.dot_dimension_numbers<[1], [0], [0], [1], [0, 0, 1, 1], [], []>} : vector<15x160xbf16>, vector<160x24xbf16>, vector<15x24xf32> -> vector<15x24xf32>
    %25 = vector.extract_strided_slice %24 {offsets = [0, 0], sizes = [3, 20], strides = [1, 1]} : vector<15x24xf32> to vector<3x20xf32>
    %26 = vector.extract_strided_slice %24 {offsets = [3, 1], sizes = [3, 20], strides = [1, 1]} : vector<15x24xf32> to vector<3x20xf32>
    %27 = arith.addf %25, %26 : vector<3x20xf32>
    %28 = vector.extract_strided_slice %24 {offsets = [6, 2], sizes = [3, 20], strides = [1, 1]} : vector<15x24xf32> to vector<3x20xf32>
    %29 = arith.addf %27, %28 : vector<3x20xf32>
    %30 = vector.extract_strided_slice %24 {offsets = [9, 3], sizes = [3, 20], strides = [1, 1]} : vector<15x24xf32> to vector<3x20xf32>
    %31 = arith.addf %29, %30 : vector<3x20xf32>
    %32 = vector.extract_strided_slice %24 {offsets = [12, 4], sizes = [3, 20], strides = [1, 1]} : vector<15x24xf32> to vector<3x20xf32>
    %33 = arith.addf %31, %32 : vector<3x20xf32>
    %c2_i32 = arith.constant 2 : i32
    %34 = arith.addi %0, %c2_i32 : i32
    %c32_i32_7 = arith.constant 32 : i32
    %35 = arith.muli %34, %c32_i32_7 : i32
    %36 = tpu.assume_multiple %35, 16 : i32
    %c0_8 = arith.constant 0 : index
    %37 = arith.index_cast %36 : i32 to index
    %c0_9 = arith.constant 0 : index
    %38 = vector.load %arg2[%c0_8, %37, %c0_9] : memref<1x768x24xbf16, #tpu.memory_space<vmem>>, vector<1x160x24xbf16>
    %39 = vector.shape_cast %38 : vector<1x160x24xbf16> to vector<160x24xbf16>
    %cst_10 = arith.constant dense<0.000000e+00> : vector<15x24xf32>
    %40 = tpu.matmul %1, %39, %cst_10 {dimension_numbers = #tpu.dot_dimension_numbers<[1], [0], [0], [1], [0, 0, 1, 1], [], []>} : vector<15x160xbf16>, vector<160x24xbf16>, vector<15x24xf32> -> vector<15x24xf32>
    %41 = vector.extract_strided_slice %40 {offsets = [0, 0], sizes = [3, 20], strides = [1, 1]} : vector<15x24xf32> to vector<3x20xf32>
    %42 = vector.extract_strided_slice %40 {offsets = [3, 1], sizes = [3, 20], strides = [1, 1]} : vector<15x24xf32> to vector<3x20xf32>
    %43 = arith.addf %41, %42 : vector<3x20xf32>
    %44 = vector.extract_strided_slice %40 {offsets = [6, 2], sizes = [3, 20], strides = [1, 1]} : vector<15x24xf32> to vector<3x20xf32>
    %45 = arith.addf %43, %44 : vector<3x20xf32>
    %46 = vector.extract_strided_slice %40 {offsets = [9, 3], sizes = [3, 20], strides = [1, 1]} : vector<15x24xf32> to vector<3x20xf32>
    %47 = arith.addf %45, %46 : vector<3x20xf32>
    %48 = vector.extract_strided_slice %40 {offsets = [12, 4], sizes = [3, 20], strides = [1, 1]} : vector<15x24xf32> to vector<3x20xf32>
    %49 = arith.addf %47, %48 : vector<3x20xf32>
    %c3_i32 = arith.constant 3 : i32
    %50 = arith.addi %0, %c3_i32 : i32
    %c32_i32_11 = arith.constant 32 : i32
    %51 = arith.muli %50, %c32_i32_11 : i32
    %52 = tpu.assume_multiple %51, 16 : i32
    %c0_12 = arith.constant 0 : index
    %53 = arith.index_cast %52 : i32 to index
    %c0_13 = arith.constant 0 : index
    %54 = vector.load %arg2[%c0_12, %53, %c0_13] : memref<1x768x24xbf16, #tpu.memory_space<vmem>>, vector<1x160x24xbf16>
    %55 = vector.shape_cast %54 : vector<1x160x24xbf16> to vector<160x24xbf16>
    %cst_14 = arith.constant dense<0.000000e+00> : vector<15x24xf32>
    %56 = tpu.matmul %1, %55, %cst_14 {dimension_numbers = #tpu.dot_dimension_numbers<[1], [0], [0], [1], [0, 0, 1, 1], [], []>} : vector<15x160xbf16>, vector<160x24xbf16>, vector<15x24xf32> -> vector<15x24xf32>
    %57 = vector.extract_strided_slice %56 {offsets = [0, 0], sizes = [3, 20], strides = [1, 1]} : vector<15x24xf32> to vector<3x20xf32>
    %58 = vector.extract_strided_slice %56 {offsets = [3, 1], sizes = [3, 20], strides = [1, 1]} : vector<15x24xf32> to vector<3x20xf32>
    %59 = arith.addf %57, %58 : vector<3x20xf32>
    %60 = vector.extract_strided_slice %56 {offsets = [6, 2], sizes = [3, 20], strides = [1, 1]} : vector<15x24xf32> to vector<3x20xf32>
    %61 = arith.addf %59, %60 : vector<3x20xf32>
    %62 = vector.extract_strided_slice %56 {offsets = [9, 3], sizes = [3, 20], strides = [1, 1]} : vector<15x24xf32> to vector<3x20xf32>
    %63 = arith.addf %61, %62 : vector<3x20xf32>
    %64 = vector.extract_strided_slice %56 {offsets = [12, 4], sizes = [3, 20], strides = [1, 1]} : vector<15x24xf32> to vector<3x20xf32>
    %65 = arith.addf %63, %64 : vector<3x20xf32>
    %c4_i32 = arith.constant 4 : i32
    %66 = arith.addi %0, %c4_i32 : i32
    %c32_i32_15 = arith.constant 32 : i32
    %67 = arith.muli %66, %c32_i32_15 : i32
    %68 = tpu.assume_multiple %67, 16 : i32
    %c0_16 = arith.constant 0 : index
    %69 = arith.index_cast %68 : i32 to index
    %c0_17 = arith.constant 0 : index
    %70 = vector.load %arg2[%c0_16, %69, %c0_17] : memref<1x768x24xbf16, #tpu.memory_space<vmem>>, vector<1x160x24xbf16>
    %71 = vector.shape_cast %70 : vector<1x160x24xbf16> to vector<160x24xbf16>
    %cst_18 = arith.constant dense<0.000000e+00> : vector<15x24xf32>
    %72 = tpu.matmul %1, %71, %cst_18 {dimension_numbers = #tpu.dot_dimension_numbers<[1], [0], [0], [1], [0, 0, 1, 1], [], []>} : vector<15x160xbf16>, vector<160x24xbf16>, vector<15x24xf32> -> vector<15x24xf32>
    %73 = vector.extract_strided_slice %72 {offsets = [0, 0], sizes = [3, 20], strides = [1, 1]} : vector<15x24xf32> to vector<3x20xf32>
    %74 = vector.extract_strided_slice %72 {offsets = [3, 1], sizes = [3, 20], strides = [1, 1]} : vector<15x24xf32> to vector<3x20xf32>
    %75 = arith.addf %73, %74 : vector<3x20xf32>
    %76 = vector.extract_strided_slice %72 {offsets = [6, 2], sizes = [3, 20], strides = [1, 1]} : vector<15x24xf32> to vector<3x20xf32>
    %77 = arith.addf %75, %76 : vector<3x20xf32>
    %78 = vector.extract_strided_slice %72 {offsets = [9, 3], sizes = [3, 20], strides = [1, 1]} : vector<15x24xf32> to vector<3x20xf32>
    %79 = arith.addf %77, %78 : vector<3x20xf32>
    %80 = vector.extract_strided_slice %72 {offsets = [12, 4], sizes = [3, 20], strides = [1, 1]} : vector<15x24xf32> to vector<3x20xf32>
    %81 = arith.addf %79, %80 : vector<3x20xf32>
    %c5_i32 = arith.constant 5 : i32
    %82 = arith.addi %0, %c5_i32 : i32
    %c32_i32_19 = arith.constant 32 : i32
    %83 = arith.muli %82, %c32_i32_19 : i32
    %84 = tpu.assume_multiple %83, 16 : i32
    %c0_20 = arith.constant 0 : index
    %85 = arith.index_cast %84 : i32 to index
    %c0_21 = arith.constant 0 : index
    %86 = vector.load %arg2[%c0_20, %85, %c0_21] : memref<1x768x24xbf16, #tpu.memory_space<vmem>>, vector<1x160x24xbf16>
    %87 = vector.shape_cast %86 : vector<1x160x24xbf16> to vector<160x24xbf16>
    %cst_22 = arith.constant dense<0.000000e+00> : vector<15x24xf32>
    %88 = tpu.matmul %1, %87, %cst_22 {dimension_numbers = #tpu.dot_dimension_numbers<[1], [0], [0], [1], [0, 0, 1, 1], [], []>} : vector<15x160xbf16>, vector<160x24xbf16>, vector<15x24xf32> -> vector<15x24xf32>
    %89 = vector.extract_strided_slice %88 {offsets = [0, 0], sizes = [3, 20], strides = [1, 1]} : vector<15x24xf32> to vector<3x20xf32>
    %90 = vector.extract_strided_slice %88 {offsets = [3, 1], sizes = [3, 20], strides = [1, 1]} : vector<15x24xf32> to vector<3x20xf32>
    %91 = arith.addf %89, %90 : vector<3x20xf32>
    %92 = vector.extract_strided_slice %88 {offsets = [6, 2], sizes = [3, 20], strides = [1, 1]} : vector<15x24xf32> to vector<3x20xf32>
    %93 = arith.addf %91, %92 : vector<3x20xf32>
    %94 = vector.extract_strided_slice %88 {offsets = [9, 3], sizes = [3, 20], strides = [1, 1]} : vector<15x24xf32> to vector<3x20xf32>
    %95 = arith.addf %93, %94 : vector<3x20xf32>
    %96 = vector.extract_strided_slice %88 {offsets = [12, 4], sizes = [3, 20], strides = [1, 1]} : vector<15x24xf32> to vector<3x20xf32>
    %97 = arith.addf %95, %96 : vector<3x20xf32>
    %c6_i32 = arith.constant 6 : i32
    %98 = arith.addi %0, %c6_i32 : i32
    %c32_i32_23 = arith.constant 32 : i32
    %99 = arith.muli %98, %c32_i32_23 : i32
    %100 = tpu.assume_multiple %99, 16 : i32
    %c0_24 = arith.constant 0 : index
    %101 = arith.index_cast %100 : i32 to index
    %c0_25 = arith.constant 0 : index
    %102 = vector.load %arg2[%c0_24, %101, %c0_25] : memref<1x768x24xbf16, #tpu.memory_space<vmem>>, vector<1x160x24xbf16>
    %103 = vector.shape_cast %102 : vector<1x160x24xbf16> to vector<160x24xbf16>
    %cst_26 = arith.constant dense<0.000000e+00> : vector<15x24xf32>
    %104 = tpu.matmul %1, %103, %cst_26 {dimension_numbers = #tpu.dot_dimension_numbers<[1], [0], [0], [1], [0, 0, 1, 1], [], []>} : vector<15x160xbf16>, vector<160x24xbf16>, vector<15x24xf32> -> vector<15x24xf32>
    %105 = vector.extract_strided_slice %104 {offsets = [0, 0], sizes = [3, 20], strides = [1, 1]} : vector<15x24xf32> to vector<3x20xf32>
    %106 = vector.extract_strided_slice %104 {offsets = [3, 1], sizes = [3, 20], strides = [1, 1]} : vector<15x24xf32> to vector<3x20xf32>
    %107 = arith.addf %105, %106 : vector<3x20xf32>
    %108 = vector.extract_strided_slice %104 {offsets = [6, 2], sizes = [3, 20], strides = [1, 1]} : vector<15x24xf32> to vector<3x20xf32>
    %109 = arith.addf %107, %108 : vector<3x20xf32>
    %110 = vector.extract_strided_slice %104 {offsets = [9, 3], sizes = [3, 20], strides = [1, 1]} : vector<15x24xf32> to vector<3x20xf32>
    %111 = arith.addf %109, %110 : vector<3x20xf32>
    %112 = vector.extract_strided_slice %104 {offsets = [12, 4], sizes = [3, 20], strides = [1, 1]} : vector<15x24xf32> to vector<3x20xf32>
    %113 = arith.addf %111, %112 : vector<3x20xf32>
    %c7_i32 = arith.constant 7 : i32
    %114 = arith.addi %0, %c7_i32 : i32
    %c32_i32_27 = arith.constant 32 : i32
    %115 = arith.muli %114, %c32_i32_27 : i32
    %116 = tpu.assume_multiple %115, 16 : i32
    %c0_28 = arith.constant 0 : index
    %117 = arith.index_cast %116 : i32 to index
    %c0_29 = arith.constant 0 : index
    %118 = vector.load %arg2[%c0_28, %117, %c0_29] : memref<1x768x24xbf16, #tpu.memory_space<vmem>>, vector<1x160x24xbf16>
    %119 = vector.shape_cast %118 : vector<1x160x24xbf16> to vector<160x24xbf16>
    %cst_30 = arith.constant dense<0.000000e+00> : vector<15x24xf32>
    %120 = tpu.matmul %1, %119, %cst_30 {dimension_numbers = #tpu.dot_dimension_numbers<[1], [0], [0], [1], [0, 0, 1, 1], [], []>} : vector<15x160xbf16>, vector<160x24xbf16>, vector<15x24xf32> -> vector<15x24xf32>
    %121 = vector.extract_strided_slice %120 {offsets = [0, 0], sizes = [3, 20], strides = [1, 1]} : vector<15x24xf32> to vector<3x20xf32>
    %122 = vector.extract_strided_slice %120 {offsets = [3, 1], sizes = [3, 20], strides = [1, 1]} : vector<15x24xf32> to vector<3x20xf32>
    %123 = arith.addf %121, %122 : vector<3x20xf32>
    %124 = vector.extract_strided_slice %120 {offsets = [6, 2], sizes = [3, 20], strides = [1, 1]} : vector<15x24xf32> to vector<3x20xf32>
    %125 = arith.addf %123, %124 : vector<3x20xf32>
    %126 = vector.extract_strided_slice %120 {offsets = [9, 3], sizes = [3, 20], strides = [1, 1]} : vector<15x24xf32> to vector<3x20xf32>
    %127 = arith.addf %125, %126 : vector<3x20xf32>
    %128 = vector.extract_strided_slice %120 {offsets = [12, 4], sizes = [3, 20], strides = [1, 1]} : vector<15x24xf32> to vector<3x20xf32>
    %129 = arith.addf %127, %128 : vector<3x20xf32>
    %c8_i32 = arith.constant 8 : i32
    %130 = arith.addi %0, %c8_i32 : i32
    %c32_i32_31 = arith.constant 32 : i32
    %131 = arith.muli %130, %c32_i32_31 : i32
    %132 = tpu.assume_multiple %131, 16 : i32
    %c0_32 = arith.constant 0 : index
    %133 = arith.index_cast %132 : i32 to index
    %c0_33 = arith.constant 0 : index
    %134 = vector.load %arg2[%c0_32, %133, %c0_33] : memref<1x768x24xbf16, #tpu.memory_space<vmem>>, vector<1x160x24xbf16>
    %135 = vector.shape_cast %134 : vector<1x160x24xbf16> to vector<160x24xbf16>
    %cst_34 = arith.constant dense<0.000000e+00> : vector<15x24xf32>
    %136 = tpu.matmul %1, %135, %cst_34 {dimension_numbers = #tpu.dot_dimension_numbers<[1], [0], [0], [1], [0, 0, 1, 1], [], []>} : vector<15x160xbf16>, vector<160x24xbf16>, vector<15x24xf32> -> vector<15x24xf32>
    %137 = vector.extract_strided_slice %136 {offsets = [0, 0], sizes = [3, 20], strides = [1, 1]} : vector<15x24xf32> to vector<3x20xf32>
    %138 = vector.extract_strided_slice %136 {offsets = [3, 1], sizes = [3, 20], strides = [1, 1]} : vector<15x24xf32> to vector<3x20xf32>
    %139 = arith.addf %137, %138 : vector<3x20xf32>
    %140 = vector.extract_strided_slice %136 {offsets = [6, 2], sizes = [3, 20], strides = [1, 1]} : vector<15x24xf32> to vector<3x20xf32>
    %141 = arith.addf %139, %140 : vector<3x20xf32>
    %142 = vector.extract_strided_slice %136 {offsets = [9, 3], sizes = [3, 20], strides = [1, 1]} : vector<15x24xf32> to vector<3x20xf32>
    %143 = arith.addf %141, %142 : vector<3x20xf32>
    %144 = vector.extract_strided_slice %136 {offsets = [12, 4], sizes = [3, 20], strides = [1, 1]} : vector<15x24xf32> to vector<3x20xf32>
    %145 = arith.addf %143, %144 : vector<3x20xf32>
    %c9_i32 = arith.constant 9 : i32
    %146 = arith.addi %0, %c9_i32 : i32
    %c32_i32_35 = arith.constant 32 : i32
    %147 = arith.muli %146, %c32_i32_35 : i32
    %148 = tpu.assume_multiple %147, 16 : i32
    %c0_36 = arith.constant 0 : index
    %149 = arith.index_cast %148 : i32 to index
    %c0_37 = arith.constant 0 : index
    %150 = vector.load %arg2[%c0_36, %149, %c0_37] : memref<1x768x24xbf16, #tpu.memory_space<vmem>>, vector<1x160x24xbf16>
    %151 = vector.shape_cast %150 : vector<1x160x24xbf16> to vector<160x24xbf16>
    %cst_38 = arith.constant dense<0.000000e+00> : vector<15x24xf32>
    %152 = tpu.matmul %1, %151, %cst_38 {dimension_numbers = #tpu.dot_dimension_numbers<[1], [0], [0], [1], [0, 0, 1, 1], [], []>} : vector<15x160xbf16>, vector<160x24xbf16>, vector<15x24xf32> -> vector<15x24xf32>
    %153 = vector.extract_strided_slice %152 {offsets = [0, 0], sizes = [3, 20], strides = [1, 1]} : vector<15x24xf32> to vector<3x20xf32>
    %154 = vector.extract_strided_slice %152 {offsets = [3, 1], sizes = [3, 20], strides = [1, 1]} : vector<15x24xf32> to vector<3x20xf32>
    %155 = arith.addf %153, %154 : vector<3x20xf32>
    %156 = vector.extract_strided_slice %152 {offsets = [6, 2], sizes = [3, 20], strides = [1, 1]} : vector<15x24xf32> to vector<3x20xf32>
    %157 = arith.addf %155, %156 : vector<3x20xf32>
    %158 = vector.extract_strided_slice %152 {offsets = [9, 3], sizes = [3, 20], strides = [1, 1]} : vector<15x24xf32> to vector<3x20xf32>
    %159 = arith.addf %157, %158 : vector<3x20xf32>
    %160 = vector.extract_strided_slice %152 {offsets = [12, 4], sizes = [3, 20], strides = [1, 1]} : vector<15x24xf32> to vector<3x20xf32>
    %161 = arith.addf %159, %160 : vector<3x20xf32>
    %c10_i32 = arith.constant 10 : i32
    %162 = arith.addi %0, %c10_i32 : i32
    %c32_i32_39 = arith.constant 32 : i32
    %163 = arith.muli %162, %c32_i32_39 : i32
    %164 = tpu.assume_multiple %163, 16 : i32
    %c0_40 = arith.constant 0 : index
    %165 = arith.index_cast %164 : i32 to index
    %c0_41 = arith.constant 0 : index
    %166 = vector.load %arg2[%c0_40, %165, %c0_41] : memref<1x768x24xbf16, #tpu.memory_space<vmem>>, vector<1x160x24xbf16>
    %167 = vector.shape_cast %166 : vector<1x160x24xbf16> to vector<160x24xbf16>
    %cst_42 = arith.constant dense<0.000000e+00> : vector<15x24xf32>
    %168 = tpu.matmul %1, %167, %cst_42 {dimension_numbers = #tpu.dot_dimension_numbers<[1], [0], [0], [1], [0, 0, 1, 1], [], []>} : vector<15x160xbf16>, vector<160x24xbf16>, vector<15x24xf32> -> vector<15x24xf32>
    %169 = vector.extract_strided_slice %168 {offsets = [0, 0], sizes = [3, 20], strides = [1, 1]} : vector<15x24xf32> to vector<3x20xf32>
    %170 = vector.extract_strided_slice %168 {offsets = [3, 1], sizes = [3, 20], strides = [1, 1]} : vector<15x24xf32> to vector<3x20xf32>
    %171 = arith.addf %169, %170 : vector<3x20xf32>
    %172 = vector.extract_strided_slice %168 {offsets = [6, 2], sizes = [3, 20], strides = [1, 1]} : vector<15x24xf32> to vector<3x20xf32>
    %173 = arith.addf %171, %172 : vector<3x20xf32>
    %174 = vector.extract_strided_slice %168 {offsets = [9, 3], sizes = [3, 20], strides = [1, 1]} : vector<15x24xf32> to vector<3x20xf32>
    %175 = arith.addf %173, %174 : vector<3x20xf32>
    %176 = vector.extract_strided_slice %168 {offsets = [12, 4], sizes = [3, 20], strides = [1, 1]} : vector<15x24xf32> to vector<3x20xf32>
    %177 = arith.addf %175, %176 : vector<3x20xf32>
    %c11_i32 = arith.constant 11 : i32
    %178 = arith.addi %0, %c11_i32 : i32
    %c32_i32_43 = arith.constant 32 : i32
    %179 = arith.muli %178, %c32_i32_43 : i32
    %180 = tpu.assume_multiple %179, 16 : i32
    %c0_44 = arith.constant 0 : index
    %181 = arith.index_cast %180 : i32 to index
    %c0_45 = arith.constant 0 : index
    %182 = vector.load %arg2[%c0_44, %181, %c0_45] : memref<1x768x24xbf16, #tpu.memory_space<vmem>>, vector<1x160x24xbf16>
    %183 = vector.shape_cast %182 : vector<1x160x24xbf16> to vector<160x24xbf16>
    %cst_46 = arith.constant dense<0.000000e+00> : vector<15x24xf32>
    %184 = tpu.matmul %1, %183, %cst_46 {dimension_numbers = #tpu.dot_dimension_numbers<[1], [0], [0], [1], [0, 0, 1, 1], [], []>} : vector<15x160xbf16>, vector<160x24xbf16>, vector<15x24xf32> -> vector<15x24xf32>
    %185 = vector.extract_strided_slice %184 {offsets = [0, 0], sizes = [3, 20], strides = [1, 1]} : vector<15x24xf32> to vector<3x20xf32>
    %186 = vector.extract_strided_slice %184 {offsets = [3, 1], sizes = [3, 20], strides = [1, 1]} : vector<15x24xf32> to vector<3x20xf32>
    %187 = arith.addf %185, %186 : vector<3x20xf32>
    %188 = vector.extract_strided_slice %184 {offsets = [6, 2], sizes = [3, 20], strides = [1, 1]} : vector<15x24xf32> to vector<3x20xf32>
    %189 = arith.addf %187, %188 : vector<3x20xf32>
    %190 = vector.extract_strided_slice %184 {offsets = [9, 3], sizes = [3, 20], strides = [1, 1]} : vector<15x24xf32> to vector<3x20xf32>
    %191 = arith.addf %189, %190 : vector<3x20xf32>
    %192 = vector.extract_strided_slice %184 {offsets = [12, 4], sizes = [3, 20], strides = [1, 1]} : vector<15x24xf32> to vector<3x20xf32>
    %193 = arith.addf %191, %192 : vector<3x20xf32>
    %c12_i32 = arith.constant 12 : i32
    %194 = arith.addi %0, %c12_i32 : i32
    %c32_i32_47 = arith.constant 32 : i32
    %195 = arith.muli %194, %c32_i32_47 : i32
    %196 = tpu.assume_multiple %195, 16 : i32
    %c0_48 = arith.constant 0 : index
    %197 = arith.index_cast %196 : i32 to index
    %c0_49 = arith.constant 0 : index
    %198 = vector.load %arg2[%c0_48, %197, %c0_49] : memref<1x768x24xbf16, #tpu.memory_space<vmem>>, vector<1x160x24xbf16>
    %199 = vector.shape_cast %198 : vector<1x160x24xbf16> to vector<160x24xbf16>
    %cst_50 = arith.constant dense<0.000000e+00> : vector<15x24xf32>
    %200 = tpu.matmul %1, %199, %cst_50 {dimension_numbers = #tpu.dot_dimension_numbers<[1], [0], [0], [1], [0, 0, 1, 1], [], []>} : vector<15x160xbf16>, vector<160x24xbf16>, vector<15x24xf32> -> vector<15x24xf32>
    %201 = vector.extract_strided_slice %200 {offsets = [0, 0], sizes = [3, 20], strides = [1, 1]} : vector<15x24xf32> to vector<3x20xf32>
    %202 = vector.extract_strided_slice %200 {offsets = [3, 1], sizes = [3, 20], strides = [1, 1]} : vector<15x24xf32> to vector<3x20xf32>
    %203 = arith.addf %201, %202 : vector<3x20xf32>
    %204 = vector.extract_strided_slice %200 {offsets = [6, 2], sizes = [3, 20], strides = [1, 1]} : vector<15x24xf32> to vector<3x20xf32>
    %205 = arith.addf %203, %204 : vector<3x20xf32>
    %206 = vector.extract_strided_slice %200 {offsets = [9, 3], sizes = [3, 20], strides = [1, 1]} : vector<15x24xf32> to vector<3x20xf32>
    %207 = arith.addf %205, %206 : vector<3x20xf32>
    %208 = vector.extract_strided_slice %200 {offsets = [12, 4], sizes = [3, 20], strides = [1, 1]} : vector<15x24xf32> to vector<3x20xf32>
    %209 = arith.addf %207, %208 : vector<3x20xf32>
    %c13_i32 = arith.constant 13 : i32
    %210 = arith.addi %0, %c13_i32 : i32
    %c32_i32_51 = arith.constant 32 : i32
    %211 = arith.muli %210, %c32_i32_51 : i32
    %212 = tpu.assume_multiple %211, 16 : i32
    %c0_52 = arith.constant 0 : index
    %213 = arith.index_cast %212 : i32 to index
    %c0_53 = arith.constant 0 : index
    %214 = vector.load %arg2[%c0_52, %213, %c0_53] : memref<1x768x24xbf16, #tpu.memory_space<vmem>>, vector<1x160x24xbf16>
    %215 = vector.shape_cast %214 : vector<1x160x24xbf16> to vector<160x24xbf16>
    %cst_54 = arith.constant dense<0.000000e+00> : vector<15x24xf32>
    %216 = tpu.matmul %1, %215, %cst_54 {dimension_numbers = #tpu.dot_dimension_numbers<[1], [0], [0], [1], [0, 0, 1, 1], [], []>} : vector<15x160xbf16>, vector<160x24xbf16>, vector<15x24xf32> -> vector<15x24xf32>
    %217 = vector.extract_strided_slice %216 {offsets = [0, 0], sizes = [3, 20], strides = [1, 1]} : vector<15x24xf32> to vector<3x20xf32>
    %218 = vector.extract_strided_slice %216 {offsets = [3, 1], sizes = [3, 20], strides = [1, 1]} : vector<15x24xf32> to vector<3x20xf32>
    %219 = arith.addf %217, %218 : vector<3x20xf32>
    %220 = vector.extract_strided_slice %216 {offsets = [6, 2], sizes = [3, 20], strides = [1, 1]} : vector<15x24xf32> to vector<3x20xf32>
    %221 = arith.addf %219, %220 : vector<3x20xf32>
    %222 = vector.extract_strided_slice %216 {offsets = [9, 3], sizes = [3, 20], strides = [1, 1]} : vector<15x24xf32> to vector<3x20xf32>
    %223 = arith.addf %221, %222 : vector<3x20xf32>
    %224 = vector.extract_strided_slice %216 {offsets = [12, 4], sizes = [3, 20], strides = [1, 1]} : vector<15x24xf32> to vector<3x20xf32>
    %225 = arith.addf %223, %224 : vector<3x20xf32>
    %c14_i32 = arith.constant 14 : i32
    %226 = arith.addi %0, %c14_i32 : i32
    %c32_i32_55 = arith.constant 32 : i32
    %227 = arith.muli %226, %c32_i32_55 : i32
    %228 = tpu.assume_multiple %227, 16 : i32
    %c0_56 = arith.constant 0 : index
    %229 = arith.index_cast %228 : i32 to index
    %c0_57 = arith.constant 0 : index
    %230 = vector.load %arg2[%c0_56, %229, %c0_57] : memref<1x768x24xbf16, #tpu.memory_space<vmem>>, vector<1x160x24xbf16>
    %231 = vector.shape_cast %230 : vector<1x160x24xbf16> to vector<160x24xbf16>
    %cst_58 = arith.constant dense<0.000000e+00> : vector<15x24xf32>
    %232 = tpu.matmul %1, %231, %cst_58 {dimension_numbers = #tpu.dot_dimension_numbers<[1], [0], [0], [1], [0, 0, 1, 1], [], []>} : vector<15x160xbf16>, vector<160x24xbf16>, vector<15x24xf32> -> vector<15x24xf32>
    %233 = vector.extract_strided_slice %232 {offsets = [0, 0], sizes = [3, 20], strides = [1, 1]} : vector<15x24xf32> to vector<3x20xf32>
    %234 = vector.extract_strided_slice %232 {offsets = [3, 1], sizes = [3, 20], strides = [1, 1]} : vector<15x24xf32> to vector<3x20xf32>
    %235 = arith.addf %233, %234 : vector<3x20xf32>
    %236 = vector.extract_strided_slice %232 {offsets = [6, 2], sizes = [3, 20], strides = [1, 1]} : vector<15x24xf32> to vector<3x20xf32>
    %237 = arith.addf %235, %236 : vector<3x20xf32>
    %238 = vector.extract_strided_slice %232 {offsets = [9, 3], sizes = [3, 20], strides = [1, 1]} : vector<15x24xf32> to vector<3x20xf32>
    %239 = arith.addf %237, %238 : vector<3x20xf32>
    %240 = vector.extract_strided_slice %232 {offsets = [12, 4], sizes = [3, 20], strides = [1, 1]} : vector<15x24xf32> to vector<3x20xf32>
    %241 = arith.addf %239, %240 : vector<3x20xf32>
    %c15_i32 = arith.constant 15 : i32
    %242 = arith.addi %0, %c15_i32 : i32
    %c32_i32_59 = arith.constant 32 : i32
    %243 = arith.muli %242, %c32_i32_59 : i32
    %244 = tpu.assume_multiple %243, 16 : i32
    %c0_60 = arith.constant 0 : index
    %245 = arith.index_cast %244 : i32 to index
    %c0_61 = arith.constant 0 : index
    %246 = vector.load %arg2[%c0_60, %245, %c0_61] : memref<1x768x24xbf16, #tpu.memory_space<vmem>>, vector<1x160x24xbf16>
    %247 = vector.shape_cast %246 : vector<1x160x24xbf16> to vector<160x24xbf16>
    %cst_62 = arith.constant dense<0.000000e+00> : vector<15x24xf32>
    %248 = tpu.matmul %1, %247, %cst_62 {dimension_numbers = #tpu.dot_dimension_numbers<[1], [0], [0], [1], [0, 0, 1, 1], [], []>} : vector<15x160xbf16>, vector<160x24xbf16>, vector<15x24xf32> -> vector<15x24xf32>
    %249 = vector.extract_strided_slice %248 {offsets = [0, 0], sizes = [3, 20], strides = [1, 1]} : vector<15x24xf32> to vector<3x20xf32>
    %250 = vector.extract_strided_slice %248 {offsets = [3, 1], sizes = [3, 20], strides = [1, 1]} : vector<15x24xf32> to vector<3x20xf32>
    %251 = arith.addf %249, %250 : vector<3x20xf32>
    %252 = vector.extract_strided_slice %248 {offsets = [6, 2], sizes = [3, 20], strides = [1, 1]} : vector<15x24xf32> to vector<3x20xf32>
    %253 = arith.addf %251, %252 : vector<3x20xf32>
    %254 = vector.extract_strided_slice %248 {offsets = [9, 3], sizes = [3, 20], strides = [1, 1]} : vector<15x24xf32> to vector<3x20xf32>
    %255 = arith.addf %253, %254 : vector<3x20xf32>
    %256 = vector.extract_strided_slice %248 {offsets = [12, 4], sizes = [3, 20], strides = [1, 1]} : vector<15x24xf32> to vector<3x20xf32>
    %257 = arith.addf %255, %256 : vector<3x20xf32>
    %c16_i32 = arith.constant 16 : i32
    %258 = arith.addi %0, %c16_i32 : i32
    %c32_i32_63 = arith.constant 32 : i32
    %259 = arith.muli %258, %c32_i32_63 : i32
    %260 = tpu.assume_multiple %259, 16 : i32
    %c0_64 = arith.constant 0 : index
    %261 = arith.index_cast %260 : i32 to index
    %c0_65 = arith.constant 0 : index
    %262 = vector.load %arg2[%c0_64, %261, %c0_65] : memref<1x768x24xbf16, #tpu.memory_space<vmem>>, vector<1x160x24xbf16>
    %263 = vector.shape_cast %262 : vector<1x160x24xbf16> to vector<160x24xbf16>
    %cst_66 = arith.constant dense<0.000000e+00> : vector<15x24xf32>
    %264 = tpu.matmul %1, %263, %cst_66 {dimension_numbers = #tpu.dot_dimension_numbers<[1], [0], [0], [1], [0, 0, 1, 1], [], []>} : vector<15x160xbf16>, vector<160x24xbf16>, vector<15x24xf32> -> vector<15x24xf32>
    %265 = vector.extract_strided_slice %264 {offsets = [0, 0], sizes = [3, 20], strides = [1, 1]} : vector<15x24xf32> to vector<3x20xf32>
    %266 = vector.extract_strided_slice %264 {offsets = [3, 1], sizes = [3, 20], strides = [1, 1]} : vector<15x24xf32> to vector<3x20xf32>
    %267 = arith.addf %265, %266 : vector<3x20xf32>
    %268 = vector.extract_strided_slice %264 {offsets = [6, 2], sizes = [3, 20], strides = [1, 1]} : vector<15x24xf32> to vector<3x20xf32>
    %269 = arith.addf %267, %268 : vector<3x20xf32>
    %270 = vector.extract_strided_slice %264 {offsets = [9, 3], sizes = [3, 20], strides = [1, 1]} : vector<15x24xf32> to vector<3x20xf32>
    %271 = arith.addf %269, %270 : vector<3x20xf32>
    %272 = vector.extract_strided_slice %264 {offsets = [12, 4], sizes = [3, 20], strides = [1, 1]} : vector<15x24xf32> to vector<3x20xf32>
    %273 = arith.addf %271, %272 : vector<3x20xf32>
    %c17_i32 = arith.constant 17 : i32
    %274 = arith.addi %0, %c17_i32 : i32
    %c32_i32_67 = arith.constant 32 : i32
    %275 = arith.muli %274, %c32_i32_67 : i32
    %276 = tpu.assume_multiple %275, 16 : i32
    %c0_68 = arith.constant 0 : index
    %277 = arith.index_cast %276 : i32 to index
    %c0_69 = arith.constant 0 : index
    %278 = vector.load %arg2[%c0_68, %277, %c0_69] : memref<1x768x24xbf16, #tpu.memory_space<vmem>>, vector<1x160x24xbf16>
    %279 = vector.shape_cast %278 : vector<1x160x24xbf16> to vector<160x24xbf16>
    %cst_70 = arith.constant dense<0.000000e+00> : vector<15x24xf32>
    %280 = tpu.matmul %1, %279, %cst_70 {dimension_numbers = #tpu.dot_dimension_numbers<[1], [0], [0], [1], [0, 0, 1, 1], [], []>} : vector<15x160xbf16>, vector<160x24xbf16>, vector<15x24xf32> -> vector<15x24xf32>
    %281 = vector.extract_strided_slice %280 {offsets = [0, 0], sizes = [3, 20], strides = [1, 1]} : vector<15x24xf32> to vector<3x20xf32>
    %282 = vector.extract_strided_slice %280 {offsets = [3, 1], sizes = [3, 20], strides = [1, 1]} : vector<15x24xf32> to vector<3x20xf32>
    %283 = arith.addf %281, %282 : vector<3x20xf32>
    %284 = vector.extract_strided_slice %280 {offsets = [6, 2], sizes = [3, 20], strides = [1, 1]} : vector<15x24xf32> to vector<3x20xf32>
    %285 = arith.addf %283, %284 : vector<3x20xf32>
    %286 = vector.extract_strided_slice %280 {offsets = [9, 3], sizes = [3, 20], strides = [1, 1]} : vector<15x24xf32> to vector<3x20xf32>
    %287 = arith.addf %285, %286 : vector<3x20xf32>
    %288 = vector.extract_strided_slice %280 {offsets = [12, 4], sizes = [3, 20], strides = [1, 1]} : vector<15x24xf32> to vector<3x20xf32>
    %289 = arith.addf %287, %288 : vector<3x20xf32>
    %c18_i32 = arith.constant 18 : i32
    %290 = arith.addi %0, %c18_i32 : i32
    %c32_i32_71 = arith.constant 32 : i32
    %291 = arith.muli %290, %c32_i32_71 : i32
    %292 = tpu.assume_multiple %291, 16 : i32
    %c0_72 = arith.constant 0 : index
    %293 = arith.index_cast %292 : i32 to index
    %c0_73 = arith.constant 0 : index
    %294 = vector.load %arg2[%c0_72, %293, %c0_73] : memref<1x768x24xbf16, #tpu.memory_space<vmem>>, vector<1x160x24xbf16>
    %295 = vector.shape_cast %294 : vector<1x160x24xbf16> to vector<160x24xbf16>
    %cst_74 = arith.constant dense<0.000000e+00> : vector<15x24xf32>
    %296 = tpu.matmul %1, %295, %cst_74 {dimension_numbers = #tpu.dot_dimension_numbers<[1], [0], [0], [1], [0, 0, 1, 1], [], []>} : vector<15x160xbf16>, vector<160x24xbf16>, vector<15x24xf32> -> vector<15x24xf32>
    %297 = vector.extract_strided_slice %296 {offsets = [0, 0], sizes = [3, 20], strides = [1, 1]} : vector<15x24xf32> to vector<3x20xf32>
    %298 = vector.extract_strided_slice %296 {offsets = [3, 1], sizes = [3, 20], strides = [1, 1]} : vector<15x24xf32> to vector<3x20xf32>
    %299 = arith.addf %297, %298 : vector<3x20xf32>
    %300 = vector.extract_strided_slice %296 {offsets = [6, 2], sizes = [3, 20], strides = [1, 1]} : vector<15x24xf32> to vector<3x20xf32>
    %301 = arith.addf %299, %300 : vector<3x20xf32>
    %302 = vector.extract_strided_slice %296 {offsets = [9, 3], sizes = [3, 20], strides = [1, 1]} : vector<15x24xf32> to vector<3x20xf32>
    %303 = arith.addf %301, %302 : vector<3x20xf32>
    %304 = vector.extract_strided_slice %296 {offsets = [12, 4], sizes = [3, 20], strides = [1, 1]} : vector<15x24xf32> to vector<3x20xf32>
    %305 = arith.addf %303, %304 : vector<3x20xf32>
    %c19_i32 = arith.constant 19 : i32
    %306 = arith.addi %0, %c19_i32 : i32
    %c32_i32_75 = arith.constant 32 : i32
    %307 = arith.muli %306, %c32_i32_75 : i32
    %308 = tpu.assume_multiple %307, 16 : i32
    %c0_76 = arith.constant 0 : index
    %309 = arith.index_cast %308 : i32 to index
    %c0_77 = arith.constant 0 : index
    %310 = vector.load %arg2[%c0_76, %309, %c0_77] : memref<1x768x24xbf16, #tpu.memory_space<vmem>>, vector<1x160x24xbf16>
    %311 = vector.shape_cast %310 : vector<1x160x24xbf16> to vector<160x24xbf16>
    %cst_78 = arith.constant dense<0.000000e+00> : vector<15x24xf32>
    %312 = tpu.matmul %1, %311, %cst_78 {dimension_numbers = #tpu.dot_dimension_numbers<[1], [0], [0], [1], [0, 0, 1, 1], [], []>} : vector<15x160xbf16>, vector<160x24xbf16>, vector<15x24xf32> -> vector<15x24xf32>
    %313 = vector.extract_strided_slice %312 {offsets = [0, 0], sizes = [3, 20], strides = [1, 1]} : vector<15x24xf32> to vector<3x20xf32>
    %314 = vector.extract_strided_slice %312 {offsets = [3, 1], sizes = [3, 20], strides = [1, 1]} : vector<15x24xf32> to vector<3x20xf32>
    %315 = arith.addf %313, %314 : vector<3x20xf32>
    %316 = vector.extract_strided_slice %312 {offsets = [6, 2], sizes = [3, 20], strides = [1, 1]} : vector<15x24xf32> to vector<3x20xf32>
    %317 = arith.addf %315, %316 : vector<3x20xf32>
    %318 = vector.extract_strided_slice %312 {offsets = [9, 3], sizes = [3, 20], strides = [1, 1]} : vector<15x24xf32> to vector<3x20xf32>
    %319 = arith.addf %317, %318 : vector<3x20xf32>
    %320 = vector.extract_strided_slice %312 {offsets = [12, 4], sizes = [3, 20], strides = [1, 1]} : vector<15x24xf32> to vector<3x20xf32>
    %321 = arith.addf %319, %320 : vector<3x20xf32>
    %322 = vector.shape_cast %17 : vector<3x20xf32> to vector<3x1x20xf32>
    %323 = vector.shape_cast %33 : vector<3x20xf32> to vector<3x1x20xf32>
    %324 = vector.shape_cast %49 : vector<3x20xf32> to vector<3x1x20xf32>
    %325 = vector.shape_cast %65 : vector<3x20xf32> to vector<3x1x20xf32>
    %326 = vector.shape_cast %81 : vector<3x20xf32> to vector<3x1x20xf32>
    %327 = vector.shape_cast %97 : vector<3x20xf32> to vector<3x1x20xf32>
    %328 = vector.shape_cast %113 : vector<3x20xf32> to vector<3x1x20xf32>
    %329 = vector.shape_cast %129 : vector<3x20xf32> to vector<3x1x20xf32>
    %330 = vector.shape_cast %145 : vector<3x20xf32> to vector<3x1x20xf32>
    %331 = vector.shape_cast %161 : vector<3x20xf32> to vector<3x1x20xf32>
    %332 = vector.shape_cast %177 : vector<3x20xf32> to vector<3x1x20xf32>
    %333 = vector.shape_cast %193 : vector<3x20xf32> to vector<3x1x20xf32>
    %334 = vector.shape_cast %209 : vector<3x20xf32> to vector<3x1x20xf32>
    %335 = vector.shape_cast %225 : vector<3x20xf32> to vector<3x1x20xf32>
    %336 = vector.shape_cast %241 : vector<3x20xf32> to vector<3x1x20xf32>
    %337 = vector.shape_cast %257 : vector<3x20xf32> to vector<3x1x20xf32>
    %338 = vector.shape_cast %273 : vector<3x20xf32> to vector<3x1x20xf32>
    %339 = vector.shape_cast %289 : vector<3x20xf32> to vector<3x1x20xf32>
    %340 = vector.shape_cast %305 : vector<3x20xf32> to vector<3x1x20xf32>
    %341 = vector.shape_cast %321 : vector<3x20xf32> to vector<3x1x20xf32>
    %342 = tpu.concatenate %322, %323, %324, %325, %326, %327, %328, %329, %330, %331, %332, %333, %334, %335, %336, %337 in 1 : vector<3x1x20xf32>, vector<3x1x20xf32>, vector<3x1x20xf32>, vector<3x1x20xf32>, vector<3x1x20xf32>, vector<3x1x20xf32>, vector<3x1x20xf32>, vector<3x1x20xf32>, vector<3x1x20xf32>, vector<3x1x20xf32>, vector<3x1x20xf32>, vector<3x1x20xf32>, vector<3x1x20xf32>, vector<3x1x20xf32>, vector<3x1x20xf32>, vector<3x1x20xf32> -> vector<3x16x20xf32>
    %343 = tpu.concatenate %338, %339, %340, %341 in 1 : vector<3x1x20xf32>, vector<3x1x20xf32>, vector<3x1x20xf32>, vector<3x1x20xf32> -> vector<3x4x20xf32>
    %344 = tpu.concatenate %342, %343 in 1 : vector<3x16x20xf32>, vector<3x4x20xf32> -> vector<3x20x20xf32>
    %c0_79 = arith.constant 0 : index
    %c0_80 = arith.constant 0 : index
    %c0_81 = arith.constant 0 : index
    %c0_82 = arith.constant 0 : index
    %345 = vector.load %arg4[%c0_79, %c0_80, %c0_81, %c0_82] : memref<1x3x20x20xf32, #tpu.memory_space<vmem>>, vector<1x3x20x20xf32>
    %346 = vector.shape_cast %345 : vector<1x3x20x20xf32> to vector<3x20x20xf32>
    %347 = vector.shape_cast %344 : vector<3x20x20xf32> to vector<1x3x20x20xf32>
    tpu.vector_store %arg4[%c0_79, %c0_80, %c0_81, %c0_82], %347 {strides = array<i32>} : memref<1x3x20x20xf32, #tpu.memory_space<vmem>>, vector<1x3x20x20xf32>,
    return
  }
  func.func @transform_0(%arg0: i32, %arg1: i32) -> (i32, i32, i32) {
    %c0_i32 = arith.constant 0 : i32
    %c0_i32_0 = arith.constant 0 : i32
    %c0_i32_1 = arith.constant 0 : i32
    return %arg0, %c0_i32, %c0_i32_0 : i32, i32, i32
  }
  func.func @transform_1(%arg0: i32, %arg1: i32) -> (i32, i32) {
    %c0_i32 = arith.constant 0 : i32
    %c0_i32_0 = arith.constant 0 : i32
    %c0_i32_1 = arith.constant 0 : i32
    return %c0_i32, %c0_i32_0 : i32, i32
  }
  func.func @transform_2(%arg0: i32, %arg1: i32) -> (i32, i32, i32, i32) {
    %c0_i32 = arith.constant 0 : i32
    %c0_i32_0 = arith.constant 0 : i32
    %c0_i32_1 = arith.constant 0 : i32
    return %arg0, %c0_i32, %arg1, %c0_i32_0 : i32, i32, i32, i32
  }
}

</mosaic_0001>

<llo_original>
// kernel: feature_correlation.1
$region0: #{feature_correlation.1}
  #allocation0 [shape = 'u32[]', space=smem, size = 0x4, offset = 0x4, fixed_abs, tag = 'smem constant byte address 0x4 - core index']
  #allocation1 [shape = 'u32[144,128]{1,0:T(1,128)}', space=vmem, size = 0x12000, scoped, tag = 'internal scratch']
  %s0 = inlined_call_operand.vmem [shape: bf16[2,768,24], index: 0, kind: input, shape index: {}]
  %s1 = inlined_call_operand.vmem [shape: bf16[15,160], index: 1, kind: input, shape index: {}]
  %s2 = inlined_call_operand.vmem [shape: f32[2,3,20,20], index: 2, kind: output, shape index: {}]
  %s3 = sld [smem:[#allocation0]]
  $region41: #{feature_correlation.1} parent=0
    _
  %s5 = ssub.s32 1, %s3
  %s6 = scalar_select 0, %s5, %s3
  loop: start=0, step=1, limit=4
  $region2: #{feature_correlation.1} parent=0 // loop_pre_header
    _
  $region3: #{feature_correlation.1} parent=0 // loop_header
    %s8 = sphi 0, %s12
    %p9 = scmp.ge.s32.totalorder %s8, 4
    %s15 = sphi 0, %s27
    %s16 = sphi 0, %s23
    %s17 = sphi 0, %s15
    %s18 = sphi 0, %s16
    %s19 = sphi 0, %s17
    %s20 = sphi 0, %s18
    %s30 = sphi 0, %s32
    %s33 = sphi 0, %s30
    %s34 = sphi 0, %s33
    %s50 = sphi 0, %s34
    %s54 = sphi 0, %s54
    %s56 = sphi 0, %s54
    %s57 = sphi 0, %s56
    %s71 = sphi 0, %s57
    %s79 = sphi 0, %s81
    %s82 = sphi 0, %s79
    %s83 = sphi 0, %s82
    %s99 = sphi 0, %s83
  $region4: #{feature_correlation.1} parent=0 // loop_header_branch
    %11 = sbr.rel (%p9) target = $region8
  $region5: #{feature_correlation.1} parent=0 // loop_body
    %s13 = ssub.s32 %s8, 1
    %s14 = ssub.s32 %s8, 2
    %s21 = sadd.s32 1, %s16
    %p22 = scmp.ge.s32.totalorder %s21, 1
    %s23 = scalar_select %p22, 0, %s21
    %s24 = sadd.s32 1, %s15
    %s25 = scalar_select %p22, %s24, %s15
    %p26 = scmp.ge.s32.totalorder %s25, 2
    %s27 = scalar_select %p26, 0, %s25
    %s28 = ssub.s32 %s15, %s27
    %p29 = scmp.eq.s32.totalorder %s28, 0
    %s31 = sadd.s32 %s30, 1
    %s32 = scalar_select %p29, %s30, %s31
    %p35 = pneg %p29
    %p36 = scmp.eq.s32.totalorder %s8, 1
    %p37 = por %p35, %p36
    %p38 = scmp.ne.s32.totalorder %s30, %s33
    %p39 = scmp.eq.s32.totalorder %s8, 0
    %p40 = por %p38, %p39
    %p41 = scmp.ne.s32.totalorder %s30, %s33
    %p42 = scmp.eq.s32.totalorder %s13, 1
    %p43 = por %p41, %p42
    %p44 = scmp.ne.s32.totalorder %s33, %s34
    %p45 = scmp.eq.s32.totalorder %s13, 0
    %p46 = por %p44, %p45
    %p47 = scmp.ne.s32.totalorder %s33, %s34
    %p48 = scmp.eq.s32.totalorder %s14, 1
    %p49 = por %p47, %p48
    %p51 = scmp.ne.s32.totalorder %s34, %s50
    %p52 = scmp.eq.s32.totalorder %s14, 0
    %p53 = por %p51, %p52
    %s55 = sadd.s32 %s54, 1
    %p58 = scmp.eq.s32.totalorder %s8, 1
    %p59 = scmp.ne.s32.totalorder %s54, %s56
    %p60 = scmp.eq.s32.totalorder %s8, 0
    %p61 = por %p59, %p60
    %p62 = scmp.ne.s32.totalorder %s54, %s56
    %p63 = scmp.eq.s32.totalorder %s13, 1
    %p64 = por %p62, %p63
    %p65 = scmp.ne.s32.totalorder %s56, %s57
    %p66 = scmp.eq.s32.totalorder %s13, 0
    %p67 = por %p65, %p66
    %p68 = scmp.ne.s32.totalorder %s56, %s57
    %p69 = scmp.eq.s32.totalorder %s14, 1
    %p70 = por %p68, %p69
    %p72 = scmp.ne.s32.totalorder %s57, %s71
    %p73 = scmp.eq.s32.totalorder %s14, 0
    %p74 = por %p72, %p73
    %s75 = ssub.s32 %s15, %s27
    %s76 = ssub.s32 %s16, %s23
    %s77 = sor.u32 %s75, %s76
    %p78 = scmp.eq.s32.totalorder %s77, 0
    %s80 = sadd.s32 %s79, 1
    %s81 = scalar_select %p78, %s79, %s80
    %p84 = pneg %p78
    %p85 = scmp.eq.s32.totalorder %s8, 1
    %p86 = por %p84, %p85
    %p87 = scmp.ne.s32.totalorder %s79, %s82
    %p88 = scmp.eq.s32.totalorder %s8, 0
    %p89 = por %p87, %p88
    %p90 = scmp.ne.s32.totalorder %s79, %s82
    %p91 = scmp.eq.s32.totalorder %s13, 1
    %p92 = por %p90, %p91
    %p93 = scmp.ne.s32.totalorder %s82, %s83
    %p94 = scmp.eq.s32.totalorder %s13, 0
    %p95 = por %p93, %p94
    %p96 = scmp.ne.s32.totalorder %s82, %s83
    %p97 = scmp.eq.s32.totalorder %s14, 1
    %p98 = por %p96, %p97
    %p100 = scmp.ne.s32.totalorder %s83, %s99
    %p101 = scmp.eq.s32.totalorder %s14, 0
    %p102 = por %p100, %p101
    %p103 = scmp.le.s32.totalorder 1, %s8
    %p104 = scmp.lt.s32.totalorder %s8, 3
    %p105 = pnand %p103, %p104
    %p106 = pneg %p105
    // Predicated region
    $region9: #{feature_correlation.1} parent=5 // pred_check
      _
    $region10: #{feature_correlation.1} parent=5 // pred_check_branch
      %108 = sbr.rel (%p105) target = $region12
    $region11: #{feature_correlation.1} parent=5 // pred_region
      %s109 = ssub.s32 %s8, 1
      // Predicated region
      $region13: #{feature_correlation.1} parent=11 // pred_check
        %p110 = pneg %p67
      $region14: #{feature_correlation.1} parent=11 // pred_check_branch
        %112 = sbr.rel (%p110) target = $region16
      $region15: #{feature_correlation.1} parent=11 // pred_region
        _
      $region16: #{feature_correlation.1} parent=11 // pred_fallthru
        _
    $region12: #{feature_correlation.1} parent=5 // pred_fallthru
      _
    %p113 = scmp.lt.s32.totalorder %s8, 2
    // Predicated region
    $region17: #{feature_correlation.1} parent=5 // pred_check
      %p114 = pneg %p113
    $region18: #{feature_correlation.1} parent=5 // pred_check_branch
      %116 = sbr.rel (%p114) target = $region20
    $region19: #{feature_correlation.1} parent=5 // pred_region
      // Predicated region
      $region21: #{feature_correlation.1} parent=19 // pred_check
        %p117 = pneg %p40
      $region22: #{feature_correlation.1} parent=19 // pred_check_branch
        %119 = sbr.rel (%p117) target = $region24
      $region23: #{feature_correlation.1} parent=19 // pred_region
        %p120 = scmp.lt.s32.totalorder %s15, 1
        %s121 = scalar_select %p120, %s15, 1
        %s122 = smul.addr %s121, 96
        %s123 = smul.addr %s122, 4
        %s124 = scalar_lea.vmem %s0, %s123
      $region24: #{feature_correlation.1} parent=19 // pred_fallthru
        _
    $region20: #{feature_correlation.1} parent=5 // pred_fallthru
      _
    %p125 = scmp.le.s32.totalorder 1, %s8
    %p126 = scmp.lt.s32.totalorder %s8, 3
    %p127 = pnand %p125, %p126
    %p128 = pneg %p127
    // Predicated region
    $region25: #{feature_correlation.1} parent=5 // pred_check
      _
    $region26: #{feature_correlation.1} parent=5 // pred_check_branch
      %130 = sbr.rel (%p127) target = $region28
    $region27: #{feature_correlation.1} parent=5 // pred_region
      %s131 = ssub.s32 %s8, 1
      %p132 = scmp.lt.s32.totalorder %s17, 1
      %s133 = scalar_select %p132, %s17, 1
      %s134 = smul.addr %s133, 96
      %s135 = smul.addr %s134, 4
      %s136 = scalar_lea.vmem %s0, %s135
      %p137 = pneg %p46
      %p138 = pneg %p43
      %p139 = pneg %p67
      %p140 = pneg %p64
      %p141 = pneg %p95
      %p142 = pneg %p92
      %s143 = smul.u32 3, %s18
      %p144 = scmp.lt.s32.totalorder %s17, 1
      %s145 = scalar_select %p144, %s17, 1
      %p146 = scmp.lt.s32.totalorder %s143, 2
      %s147 = scalar_select %p146, %s143, 2
      %s148 = smul.addr %s145, 9
      %s149 = sadd.s32 %s147, %s148
      %s150 = smul.addr %s149, 8
      %s151 = scalar_lea.vmem %s2, %s150
      %p152 = scmp.lt.s32.totalorder %s17, 1
      %s153 = scalar_select %p152, %s17, 1
      %s154 = smul.addr %s153, 96
      %s155 = smul.addr %s154, 4
      %s156 = scalar_lea.vmem %s0, %s155
      %s157 = smul.u32 3, %s18
      %p158 = scmp.lt.s32.totalorder %s17, 1
      %s159 = scalar_select %p158, %s17, 1
      %p160 = scmp.lt.s32.totalorder %s157, 2
      %s161 = scalar_select %p160, %s157, 2
      %s162 = smul.addr %s159, 9
      %s163 = sadd.s32 %s161, %s162
      %s164 = smul.addr %s163, 8
      %s165 = scalar_lea.vmem %s2, %s164
      %s166 = smul.u32 3, %s18
      %s168 = smul.u32 %s18, 20
      %v169 = vld [vmem:[%s1] sm:$0xff]
      %v170 = vld [vmem:[%s1 + $0x8] sm:$0xff]
      %s171 = smul.u32 %s18, 640
      %s172 = sshra.s32 %s171, 3
      %s173 = sand.u32 %s171, 7
      %s174 = smul.addr %s172, 4
      %s175 = scalar_lea.vmem %s156, %s174
      %v176 = vld [vmem:[%s175] sm:$0xf]
      %v177 = vld [vmem:[%s175 + $0x4] sm:$0xf]
      %v178 = vld [vmem:[%s175 + $0x8] sm:$0xf]
      %v179 = vld [vmem:[%s175 + $0xc] sm:$0xf]
      %v180 = vld [vmem:[%s175 + $0x10] sm:$0xf]
      %v181 = vld [vmem:[%s175 + $0x14] sm:$0xf]
      %v182 = vld [vmem:[%s175 + $0x18] sm:$0xf]
      %v183 = vld [vmem:[%s175 + $0x1c] sm:$0xf]
      %v184 = vld [vmem:[%s175 + $0x20] sm:$0xf]
      %v185 = vld [vmem:[%s175 + $0x24] sm:$0xf]
      %v186 = vld [vmem:[%s175 + $0x28] sm:$0xf]
      %v187 = vld [vmem:[%s175 + $0x2c] sm:$0xf]
      %v188 = vld [vmem:[%s175 + $0x30] sm:$0xf]
      %v189 = vld [vmem:[%s175 + $0x34] sm:$0xf]
      %v190 = vld [vmem:[%s175 + $0x38] sm:$0xf]
      %v191 = vld [vmem:[%s175 + $0x3c] sm:$0xf]
      %v192 = vld [vmem:[%s175 + $0x40] sm:$0xf]
      %v193 = vld [vmem:[%s175 + $0x44] sm:$0xf]
      %v194 = vld [vmem:[%s175 + $0x48] sm:$0xf]
      %v195 = vld [vmem:[%s175 + $0x4c] sm:$0xf]
      %v198 = vunpack.c.l.b16 %v169
      %v199 = vunpack.c.h.b16 %v169
      %v200 = vunpack.c.l.b16 %v170
      %v201 = vunpack.c.h.b16 %v170
      %v202 = vpack.c.b16 %v200, %v198
      %v203 = vpack.c.b16 %v201, %v199
      %v225 = vunpack.c.l.b16 %v176
      %v226 = vunpack.c.l.b16 %v177
      %v227 = vunpack.c.l.b16 %v178
      %v228 = vunpack.c.l.b16 %v179
      %v229 = vunpack.c.l.b16 %v180
      %v230 = vunpack.c.l.b16 %v181
      %v231 = vunpack.c.l.b16 %v182
      %v232 = vunpack.c.l.b16 %v183
      %v233 = vunpack.c.l.b16 %v184
      %v234 = vunpack.c.l.b16 %v185
      %v235 = vunpack.c.l.b16 %v186
      %v236 = vunpack.c.l.b16 %v187
      %v237 = vunpack.c.l.b16 %v188
      %v238 = vunpack.c.l.b16 %v189
      %v239 = vunpack.c.l.b16 %v190
      %v240 = vunpack.c.l.b16 %v191
      %v241 = vunpack.c.l.b16 %v192
      %v242 = vunpack.c.l.b16 %v193
      %v243 = vunpack.c.l.b16 %v194
      %v244 = vunpack.c.l.b16 %v195
      %v245 = vpack.c.b16 %v226, %v225
      %v246 = vpack.c.b16 %v228, %v227
      %v247 = vpack.c.b16 %v230, %v229
      %v248 = vpack.c.b16 %v232, %v231
      %v249 = vpack.c.b16 %v234, %v233
      %v250 = vpack.c.b16 %v236, %v235
      %v251 = vpack.c.b16 %v238, %v237
      %v252 = vpack.c.b16 %v240, %v239
      %v253 = vpack.c.b16 %v242, %v241
      %v254 = vpack.c.b16 %v244, %v243
      %vm265 = vcmask 261120
      %v267 = vsel %vm265, %v203, 0
      %269 = vmatprep.subr.bf16.mxu0 0
      %270 = vmatpush1.bf16.msra.mxu0 %v245
      %271 = vmatprep.subr.bf16.mxu0 0
      %272 = vmatpush1.bf16.msra.mxu0 %v246
      %273 = vmatprep.subr.bf16.mxu0 0
      %274 = vmatpush1.bf16.msra.mxu0 %v247
      %275 = vmatprep.subr.bf16.mxu0 0
      %276 = vmatpush1.bf16.msra.mxu0 %v248
      %277 = vmatprep.subr.bf16.mxu0 0
      %278 = vmatpush1.bf16.msra.mxu0 %v249
      %279 = vmatprep.subr.bf16.mxu0 0
      %280 = vmatpush1.bf16.msra.mxu0 %v250
      %281 = vmatprep.subr.bf16.mxu0 0
      %282 = vmatpush1.bf16.msra.mxu0 %v251
      %283 = vmatprep.subr.bf16.mxu0 0
      %284 = vmatpush1.bf16.msra.mxu0 %v252
      %285 = vmatprep.subr.bf16.mxu0 0
      %286 = vmatpush1.bf16.msra.mxu0 %v253
      %287 = vmatprep.subr.bf16.mxu0 0
      %288 = vmatpush1.bf16.msra.mxu0 %v254
      %289 = vmatprep.subr.bf16.mxu0 0
      %290 = vmatpush1.bf16.msra.mxu0 0
      %291 = vmatprep.subr.bf16.mxu0 0
      %292 = vmatpush1.bf16.msra.mxu0 0
      %293 = vmatprep.subr.bf16.mxu0 0
      %294 = vmatpush1.bf16.msra.mxu0 0
      %295 = vmatprep.subr.bf16.mxu0 0
      %296 = vmatpush1.bf16.msra.mxu0 0
      %297 = vmatprep.subr.bf16.mxu0 0
      %298 = vmatpush1.bf16.msra.mxu0 0
      %299 = vmatprep.subr.bf16.mxu0 0
      %300 = vmatpush1.bf16.msra.mxu0 0
      %301 = vmatprep.mubr.bf16.mxu0 %v267
      %302 = vmatmul.mubr.bf16.gmra.mrb[0].mxu0 %v202
      %v303 = vpop.f32.mrb[0].mxu0
      %v304 = vadd.f32 0.0, %v303
      %v305 = vpop.f32.mrb[0].mxu0
      %v306 = vpop.f32.mrb[0].mxu0
      %v307 = vadd.f32 0.0, %v306
      %v308 = vpop.f32.mrb[0].mxu0
      %309 = vdwg.mxu0
      %v311 = vrot.slane %v304, 3
      %312 = vrot.lane.b32.xlu0 %v311, 127
      %v313 = vpop.permute.xlu0 %312
      %v315 = vadd.f32 %v304, %v313
      %vm317 = vcmask 1041408
      %v318 = vrot.slane %v304, 6
      %v319 = vrot.slane %v307, 6
      %v320 = vsel %vm317, %v318, %v319
      %321 = vrot.lane.b32.xlu0 %v320, 126
      %v322 = vpop.permute.xlu0 %321
      %v324 = vadd.f32 %v315, %v322
      %v325 = vrot.slane %v307, 1
      %326 = vrot.lane.b32.xlu0 %v325, 125
      %v327 = vpop.permute.xlu0 %326
      %v329 = vadd.f32 %v324, %v327
      %v330 = vrot.slane %v307, 4
      %331 = vrot.lane.b32.xlu0 %v330, 124
      %v332 = vpop.permute.xlu0 %331
      %v334 = vadd.f32 %v329, %v332
      %s335 = sadd.s32 %s168, 1
      %s336 = smul.u32 %s335, 32
      %s337 = sshra.s32 %s336, 3
      %s338 = sand.u32 %s336, 7
      %s339 = smul.addr %s337, 4
      %s340 = scalar_lea.vmem %s156, %s339
      %v341 = vld [vmem:[%s340] sm:$0xf]
      %v342 = vld [vmem:[%s340 + $0x4] sm:$0xf]
      %v343 = vld [vmem:[%s340 + $0x8] sm:$0xf]
      %v344 = vld [vmem:[%s340 + $0xc] sm:$0xf]
      %v345 = vld [vmem:[%s340 + $0x10] sm:$0xf]
      %v346 = vld [vmem:[%s340 + $0x14] sm:$0xf]
      %v347 = vld [vmem:[%s340 + $0x18] sm:$0xf]
      %v348 = vld [vmem:[%s340 + $0x1c] sm:$0xf]
      %v349 = vld [vmem:[%s340 + $0x20] sm:$0xf]
      %v350 = vld [vmem:[%s340 + $0x24] sm:$0xf]
      %v351 = vld [vmem:[%s340 + $0x28] sm:$0xf]
      %v352 = vld [vmem:[%s340 + $0x2c] sm:$0xf]
      %v353 = vld [vmem:[%s340 + $0x30] sm:$0xf]
      %v354 = vld [vmem:[%s340 + $0x34] sm:$0xf]
      %v355 = vld [vmem:[%s340 + $0x38] sm:$0xf]
      %v356 = vld [vmem:[%s340 + $0x3c] sm:$0xf]
      %v357 = vld [vmem:[%s340 + $0x40] sm:$0xf]
      %v358 = vld [vmem:[%s340 + $0x44] sm:$0xf]
      %v359 = vld [vmem:[%s340 + $0x48] sm:$0xf]
      %v360 = vld [vmem:[%s340 + $0x4c] sm:$0xf]
      %v381 = vunpack.c.l.b16 %v341
      %v382 = vunpack.c.l.b16 %v342
      %v383 = vunpack.c.l.b16 %v343
      %v384 = vunpack.c.l.b16 %v344
      %v385 = vunpack.c.l.b16 %v345
      %v386 = vunpack.c.l.b16 %v346
      %v387 = vunpack.c.l.b16 %v347
      %v388 = vunpack.c.l.b16 %v348
      %v389 = vunpack.c.l.b16 %v349
      %v390 = vunpack.c.l.b16 %v350
      %v391 = vunpack.c.l.b16 %v351
      %v392 = vunpack.c.l.b16 %v352
      %v393 = vunpack.c.l.b16 %v353
      %v394 = vunpack.c.l.b16 %v354
      %v395 = vunpack.c.l.b16 %v355
      %v396 = vunpack.c.l.b16 %v356
      %v397 = vunpack.c.l.b16 %v357
      %v398 = vunpack.c.l.b16 %v358
      %v399 = vunpack.c.l.b16 %v359
      %v400 = vunpack.c.l.b16 %v360
      %v401 = vpack.c.b16 %v382, %v381
      %v402 = vpack.c.b16 %v384, %v383
      %v403 = vpack.c.b16 %v386, %v385
      %v404 = vpack.c.b16 %v388, %v387
      %v405 = vpack.c.b16 %v390, %v389
      %v406 = vpack.c.b16 %v392, %v391
      %v407 = vpack.c.b16 %v394, %v393
      %v408 = vpack.c.b16 %v396, %v395
      %v409 = vpack.c.b16 %v398, %v397
      %v410 = vpack.c.b16 %v400, %v399
      %421 = vmatprep.subr.bf16.mxu0 0
      %422 = vmatpush1.bf16.msra.mxu0 %v401
      %423 = vmatprep.subr.bf16.mxu0 0
      %424 = vmatpush1.bf16.msra.mxu0 %v402
      %425 = vmatprep.subr.bf16.mxu0 0
      %426 = vmatpush1.bf16.msra.mxu0 %v403
      %427 = vmatprep.subr.bf16.mxu0 0
      %428 = vmatpush1.bf16.msra.mxu0 %v404
      %429 = vmatprep.subr.bf16.mxu0 0
      %430 = vmatpush1.bf16.msra.mxu0 %v405
      %431 = vmatprep.subr.bf16.mxu0 0
      %432 = vmatpush1.bf16.msra.mxu0 %v406
      %433 = vmatprep.subr.bf16.mxu0 0
      %434 = vmatpush1.bf16.msra.mxu0 %v407
      %435 = vmatprep.subr.bf16.mxu0 0
      %436 = vmatpush1.bf16.msra.mxu0 %v408
      %437 = vmatprep.subr.bf16.mxu0 0
      %438 = vmatpush1.bf16.msra.mxu0 %v409
      %439 = vmatprep.subr.bf16.mxu0 0
      %440 = vmatpush1.bf16.msra.mxu0 %v410
      %441 = vmatprep.subr.bf16.mxu0 0
      %442 = vmatpush1.bf16.msra.mxu0 0
      %443 = vmatprep.subr.bf16.mxu0 0
      %444 = vmatpush1.bf16.msra.mxu0 0
      %445 = vmatprep.subr.bf16.mxu0 0
      %446 = vmatpush1.bf16.msra.mxu0 0
      %447 = vmatprep.subr.bf16.mxu0 0
      %448 = vmatpush1.bf16.msra.mxu0 0
      %449 = vmatprep.subr.bf16.mxu0 0
      %450 = vmatpush1.bf16.msra.mxu0 0
      %451 = vmatprep.subr.bf16.mxu0 0
      %452 = vmatpush1.bf16.msra.mxu0 0
      %453 = vmatprep.mubr.bf16.mxu0 %v267
      %454 = vmatmul.mubr.bf16.gmra.mrb[0].mxu0 %v202
      %v455 = vpop.f32.mrb[0].mxu0
      %v456 = vadd.f32 0.0, %v455
      %v457 = vpop.f32.mrb[0].mxu0
      %v458 = vpop.f32.mrb[0].mxu0
      %v459 = vadd.f32 0.0, %v458
      %v460 = vpop.f32.mrb[0].mxu0
      %461 = vdwg.mxu0
      %v463 = vrot.slane %v456, 3
      %464 = vrot.lane.b32.xlu0 %v463, 127
      %v465 = vpop.permute.xlu0 %464
      %v467 = vadd.f32 %v456, %v465
      %v469 = vrot.slane %v456, 6
      %v470 = vrot.slane %v459, 6
      %v471 = vsel %vm317, %v469, %v470
      %472 = vrot.lane.b32.xlu0 %v471, 126
      %v473 = vpop.permute.xlu0 %472
      %v475 = vadd.f32 %v467, %v473
      %v476 = vrot.slane %v459, 1
      %477 = vrot.lane.b32.xlu0 %v476, 125
      %v478 = vpop.permute.xlu0 %477
      %v480 = vadd.f32 %v475, %v478
      %v481 = vrot.slane %v459, 4
      %482 = vrot.lane.b32.xlu0 %v481, 124
      %v483 = vpop.permute.xlu0 %482
      %v485 = vadd.f32 %v480, %v483
      %s486 = sadd.s32 %s168, 2
      %s487 = smul.u32 %s486, 32
      %s488 = sshra.s32 %s487, 3
      %s489 = sand.u32 %s487, 7
      %s490 = smul.addr %s488, 4
      %s491 = scalar_lea.vmem %s156, %s490
      %v492 = vld [vmem:[%s491] sm:$0xf]
      %v493 = vld [vmem:[%s491 + $0x4] sm:$0xf]
      %v494 = vld [vmem:[%s491 + $0x8] sm:$0xf]
      %v495 = vld [vmem:[%s491 + $0xc] sm:$0xf]
      %v496 = vld [vmem:[%s491 + $0x10] sm:$0xf]
      %v497 = vld [vmem:[%s491 + $0x14] sm:$0xf]
      %v498 = vld [vmem:[%s491 + $0x18] sm:$0xf]
      %v499 = vld [vmem:[%s491 + $0x1c] sm:$0xf]
      %v500 = vld [vmem:[%s491 + $0x20] sm:$0xf]
      %v501 = vld [vmem:[%s491 + $0x24] sm:$0xf]
      %v502 = vld [vmem:[%s491 + $0x28] sm:$0xf]
      %v503 = vld [vmem:[%s491 + $0x2c] sm:$0xf]
      %v504 = vld [vmem:[%s491 + $0x30] sm:$0xf]
      %v505 = vld [vmem:[%s491 + $0x34] sm:$0xf]
      %v506 = vld [vmem:[%s491 + $0x38] sm:$0xf]
      %v507 = vld [vmem:[%s491 + $0x3c] sm:$0xf]
      %v508 = vld [vmem:[%s491 + $0x40] sm:$0xf]
      %v509 = vld [vmem:[%s491 + $0x44] sm:$0xf]
      %v510 = vld [vmem:[%s491 + $0x48] sm:$0xf]
      %v511 = vld [vmem:[%s491 + $0x4c] sm:$0xf]
      %v532 = vunpack.c.l.b16 %v492
      %v533 = vunpack.c.l.b16 %v493
      %v534 = vunpack.c.l.b16 %v494
      %v535 = vunpack.c.l.b16 %v495
      %v536 = vunpack.c.l.b16 %v496
      %v537 = vunpack.c.l.b16 %v497
      %v538 = vunpack.c.l.b16 %v498
      %v539 = vunpack.c.l.b16 %v499
      %v540 = vunpack.c.l.b16 %v500
      %v541 = vunpack.c.l.b16 %v501
      %v542 = vunpack.c.l.b16 %v502
      %v543 = vunpack.c.l.b16 %v503
      %v544 = vunpack.c.l.b16 %v504
      %v545 = vunpack.c.l.b16 %v505
      %v546 = vunpack.c.l.b16 %v506
      %v547 = vunpack.c.l.b16 %v507
      %v548 = vunpack.c.l.b16 %v508
      %v549 = vunpack.c.l.b16 %v509
      %v550 = vunpack.c.l.b16 %v510
      %v551 = vunpack.c.l.b16 %v511
      %v552 = vpack.c.b16 %v533, %v532
      %v553 = vpack.c.b16 %v535, %v534
      %v554 = vpack.c.b16 %v537, %v536
      %v555 = vpack.c.b16 %v539, %v538
      %v556 = vpack.c.b16 %v541, %v540
      %v557 = vpack.c.b16 %v543, %v542
      %v558 = vpack.c.b16 %v545, %v544
      %v559 = vpack.c.b16 %v547, %v546
      %v560 = vpack.c.b16 %v549, %v548
      %v561 = vpack.c.b16 %v551, %v550
      %572 = vmatprep.subr.bf16.mxu0 0
      %573 = vmatpush1.bf16.msra.mxu0 %v552
      %574 = vmatprep.subr.bf16.mxu0 0
      %575 = vmatpush1.bf16.msra.mxu0 %v553
      %576 = vmatprep.subr.bf16.mxu0 0
      %577 = vmatpush1.bf16.msra.mxu0 %v554
      %578 = vmatprep.subr.bf16.mxu0 0
      %579 = vmatpush1.bf16.msra.mxu0 %v555
      %580 = vmatprep.subr.bf16.mxu0 0
      %581 = vmatpush1.bf16.msra.mxu0 %v556
      %582 = vmatprep.subr.bf16.mxu0 0
      %583 = vmatpush1.bf16.msra.mxu0 %v557
      %584 = vmatprep.subr.bf16.mxu0 0
      %585 = vmatpush1.bf16.msra.mxu0 %v558
      %586 = vmatprep.subr.bf16.mxu0 0
      %587 = vmatpush1.bf16.msra.mxu0 %v559
      %588 = vmatprep.subr.bf16.mxu0 0
      %589 = vmatpush1.bf16.msra.mxu0 %v560
      %590 = vmatprep.subr.bf16.mxu0 0
      %591 = vmatpush1.bf16.msra.mxu0 %v561
      %592 = vmatprep.subr.bf16.mxu0 0
      %593 = vmatpush1.bf16.msra.mxu0 0
      %594 = vmatprep.subr.bf16.mxu0 0
      %595 = vmatpush1.bf16.msra.mxu0 0
      %596 = vmatprep.subr.bf16.mxu0 0
      %597 = vmatpush1.bf16.msra.mxu0 0
      %598 = vmatprep.subr.bf16.mxu0 0
      %599 = vmatpush1.bf16.msra.mxu0 0
      %600 = vmatprep.subr.bf16.mxu0 0
      %601 = vmatpush1.bf16.msra.mxu0 0
      %602 = vmatprep.subr.bf16.mxu0 0
      %603 = vmatpush1.bf16.msra.mxu0 0
      %604 = vmatprep.mubr.bf16.mxu0 %v267
      %605 = vmatmul.mubr.bf16.gmra.mrb[0].mxu0 %v202
      %v606 = vpop.f32.mrb[0].mxu0
      %v607 = vadd.f32 0.0, %v606
      %v608 = vpop.f32.mrb[0].mxu0
      %v609 = vpop.f32.mrb[0].mxu0
      %v610 = vadd.f32 0.0, %v609
      %v611 = vpop.f32.mrb[0].mxu0
      %612 = vdwg.mxu0
      %v614 = vrot.slane %v607, 3
      %615 = vrot.lane.b32.xlu0 %v614, 127
      %v616 = vpop.permute.xlu0 %615
      %v618 = vadd.f32 %v607, %v616
      %v620 = vrot.slane %v607, 6
      %v621 = vrot.slane %v610, 6
      %v622 = vsel %vm317, %v620, %v621
      %623 = vrot.lane.b32.xlu0 %v622, 126
      %v624 = vpop.permute.xlu0 %623
      %v626 = vadd.f32 %v618, %v624
      %v627 = vrot.slane %v610, 1
      %628 = vrot.lane.b32.xlu0 %v627, 125
      %v629 = vpop.permute.xlu0 %628
      %v631 = vadd.f32 %v626, %v629
      %v632 = vrot.slane %v610, 4
      %633 = vrot.lane.b32.xlu0 %v632, 124
      %v634 = vpop.permute.xlu0 %633
      %v636 = vadd.f32 %v631, %v634
      %s637 = sadd.s32 %s168, 3
      %s638 = smul.u32 %s637, 32
      %s639 = sshra.s32 %s638, 3
      %s640 = sand.u32 %s638, 7
      %s641 = smul.addr %s639, 4
      %s642 = scalar_lea.vmem %s156, %s641
      %v643 = vld [vmem:[%s642] sm:$0xf]
      %v644 = vld [vmem:[%s642 + $0x4] sm:$0xf]
      %v645 = vld [vmem:[%s642 + $0x8] sm:$0xf]
      %v646 = vld [vmem:[%s642 + $0xc] sm:$0xf]
      %v647 = vld [vmem:[%s642 + $0x10] sm:$0xf]
      %v648 = vld [vmem:[%s642 + $0x14] sm:$0xf]
      %v649 = vld [vmem:[%s642 + $0x18] sm:$0xf]
      %v650 = vld [vmem:[%s642 + $0x1c] sm:$0xf]
      %v651 = vld [vmem:[%s642 + $0x20] sm:$0xf]
      %v652 = vld [vmem:[%s642 + $0x24] sm:$0xf]
      %v653 = vld [vmem:[%s642 + $0x28] sm:$0xf]
      %v654 = vld [vmem:[%s642 + $0x2c] sm:$0xf]
      %v655 = vld [vmem:[%s642 + $0x30] sm:$0xf]
      %v656 = vld [vmem:[%s642 + $0x34] sm:$0xf]
      %v657 = vld [vmem:[%s642 + $0x38] sm:$0xf]
      %v658 = vld [vmem:[%s642 + $0x3c] sm:$0xf]
      %v659 = vld [vmem:[%s642 + $0x40] sm:$0xf]
      %v660 = vld [vmem:[%s642 + $0x44] sm:$0xf]
      %v661 = vld [vmem:[%s642 + $0x48] sm:$0xf]
      %v662 = vld [vmem:[%s642 + $0x4c] sm:$0xf]
      %v683 = vunpack.c.l.b16 %v643
      %v684 = vunpack.c.l.b16 %v644
      %v685 = vunpack.c.l.b16 %v645
      %v686 = vunpack.c.l.b16 %v646
      %v687 = vunpack.c.l.b16 %v647
      %v688 = vunpack.c.l.b16 %v648
      %v689 = vunpack.c.l.b16 %v649
      %v690 = vunpack.c.l.b16 %v650
      %v691 = vunpack.c.l.b16 %v651
      %v692 = vunpack.c.l.b16 %v652
      %v693 = vunpack.c.l.b16 %v653
      %v694 = vunpack.c.l.b16 %v654
      %v695 = vunpack.c.l.b16 %v655
      %v696 = vunpack.c.l.b16 %v656
      %v697 = vunpack.c.l.b16 %v657
      %v698 = vunpack.c.l.b16 %v658
      %v699 = vunpack.c.l.b16 %v659
      %v700 = vunpack.c.l.b16 %v660
      %v701 = vunpack.c.l.b16 %v661
      %v702 = vunpack.c.l.b16 %v662
      %v703 = vpack.c.b16 %v684, %v683
      %v704 = vpack.c.b16 %v686, %v685
      %v705 = vpack.c.b16 %v688, %v687
      %v706 = vpack.c.b16 %v690, %v689
      %v707 = vpack.c.b16 %v692, %v691
      %v708 = vpack.c.b16 %v694, %v693
      %v709 = vpack.c.b16 %v696, %v695
      %v710 = vpack.c.b16 %v698, %v697
      %v711 = vpack.c.b16 %v700, %v699
      %v712 = vpack.c.b16 %v702, %v701
      %723 = vmatprep.subr.bf16.mxu0 0
      %724 = vmatpush1.bf16.msra.mxu0 %v703
      %725 = vmatprep.subr.bf16.mxu0 0
      %726 = vmatpush1.bf16.msra.mxu0 %v704
      %727 = vmatprep.subr.bf16.mxu0 0
      %728 = vmatpush1.bf16.msra.mxu0 %v705
      %729 = vmatprep.subr.bf16.mxu0 0
      %730 = vmatpush1.bf16.msra.mxu0 %v706
      %731 = vmatprep.subr.bf16.mxu0 0
      %732 = vmatpush1.bf16.msra.mxu0 %v707
      %733 = vmatprep.subr.bf16.mxu0 0
      %734 = vmatpush1.bf16.msra.mxu0 %v708
      %735 = vmatprep.subr.bf16.mxu0 0
      %736 = vmatpush1.bf16.msra.mxu0 %v709
      %737 = vmatprep.subr.bf16.mxu0 0
      %738 = vmatpush1.bf16.msra.mxu0 %v710
      %739 = vmatprep.subr.bf16.mxu0 0
      %740 = vmatpush1.bf16.msra.mxu0 %v711
      %741 = vmatprep.subr.bf16.mxu0 0
      %742 = vmatpush1.bf16.msra.mxu0 %v712
      %743 = vmatprep.subr.bf16.mxu0 0
      %744 = vmatpush1.bf16.msra.mxu0 0
      %745 = vmatprep.subr.bf16.mxu0 0
      %746 = vmatpush1.bf16.msra.mxu0 0
      %747 = vmatprep.subr.bf16.mxu0 0
      %748 = vmatpush1.bf16.msra.mxu0 0
      %749 = vmatprep.subr.bf16.mxu0 0
      %750 = vmatpush1.bf16.msra.mxu0 0
      %751 = vmatprep.subr.bf16.mxu0 0
      %752 = vmatpush1.bf16.msra.mxu0 0
      %753 = vmatprep.subr.bf16.mxu0 0
      %754 = vmatpush1.bf16.msra.mxu0 0
      %755 = vmatprep.mubr.bf16.mxu0 %v267
      %756 = vmatmul.mubr.bf16.gmra.mrb[0].mxu0 %v202
      %v757 = vpop.f32.mrb[0].mxu0
      %v758 = vadd.f32 0.0, %v757
      %v759 = vpop.f32.mrb[0].mxu0
      %v760 = vpop.f32.mrb[0].mxu0
      %v761 = vadd.f32 0.0, %v760
      %v762 = vpop.f32.mrb[0].mxu0
      %763 = vdwg.mxu0
      %v765 = vrot.slane %v758, 3
      %766 = vrot.lane.b32.xlu0 %v765, 127
      %v767 = vpop.permute.xlu0 %766
      %v769 = vadd.f32 %v758, %v767
      %v771 = vrot.slane %v758, 6
      %v772 = vrot.slane %v761, 6
      %v773 = vsel %vm317, %v771, %v772
      %774 = vrot.lane.b32.xlu0 %v773, 126
      %v775 = vpop.permute.xlu0 %774
      %v777 = vadd.f32 %v769, %v775
      %v778 = vrot.slane %v761, 1
      %779 = vrot.lane.b32.xlu0 %v778, 125
      %v780 = vpop.permute.xlu0 %779
      %v782 = vadd.f32 %v777, %v780
      %v783 = vrot.slane %v761, 4
      %784 = vrot.lane.b32.xlu0 %v783, 124
      %v785 = vpop.permute.xlu0 %784
      %v787 = vadd.f32 %v782, %v785
      %s788 = sadd.s32 %s168, 4
      %s789 = smul.u32 %s788, 32
      %s790 = sshra.s32 %s789, 3
      %s791 = sand.u32 %s789, 7
      %s792 = smul.addr %s790, 4
      %s793 = scalar_lea.vmem %s156, %s792
      %v794 = vld [vmem:[%s793] sm:$0xf]
      %v795 = vld [vmem:[%s793 + $0x4] sm:$0xf]
      %v796 = vld [vmem:[%s793 + $0x8] sm:$0xf]
      %v797 = vld [vmem:[%s793 + $0xc] sm:$0xf]
      %v798 = vld [vmem:[%s793 + $0x10] sm:$0xf]
      %v799 = vld [vmem:[%s793 + $0x14] sm:$0xf]
      %v800 = vld [vmem:[%s793 + $0x18] sm:$0xf]
      %v801 = vld [vmem:[%s793 + $0x1c] sm:$0xf]
      %v802 = vld [vmem:[%s793 + $0x20] sm:$0xf]
      %v803 = vld [vmem:[%s793 + $0x24] sm:$0xf]
      %v804 = vld [vmem:[%s793 + $0x28] sm:$0xf]
      %v805 = vld [vmem:[%s793 + $0x2c] sm:$0xf]
      %v806 = vld [vmem:[%s793 + $0x30] sm:$0xf]
      %v807 = vld [vmem:[%s793 + $0x34] sm:$0xf]
      %v808 = vld [vmem:[%s793 + $0x38] sm:$0xf]
      %v809 = vld [vmem:[%s793 + $0x3c] sm:$0xf]
      %v810 = vld [vmem:[%s793 + $0x40] sm:$0xf]
      %v811 = vld [vmem:[%s793 + $0x44] sm:$0xf]
      %v812 = vld [vmem:[%s793 + $0x48] sm:$0xf]
      %v813 = vld [vmem:[%s793 + $0x4c] sm:$0xf]
      %v834 = vunpack.c.l.b16 %v794
      %v835 = vunpack.c.l.b16 %v795
      %v836 = vunpack.c.l.b16 %v796
      %v837 = vunpack.c.l.b16 %v797
      %v838 = vunpack.c.l.b16 %v798
      %v839 = vunpack.c.l.b16 %v799
      %v840 = vunpack.c.l.b16 %v800
      %v841 = vunpack.c.l.b16 %v801
      %v842 = vunpack.c.l.b16 %v802
      %v843 = vunpack.c.l.b16 %v803
      %v844 = vunpack.c.l.b16 %v804
      %v845 = vunpack.c.l.b16 %v805
      %v846 = vunpack.c.l.b16 %v806
      %v847 = vunpack.c.l.b16 %v807
      %v848 = vunpack.c.l.b16 %v808
      %v849 = vunpack.c.l.b16 %v809
      %v850 = vunpack.c.l.b16 %v810
      %v851 = vunpack.c.l.b16 %v811
      %v852 = vunpack.c.l.b16 %v812
      %v853 = vunpack.c.l.b16 %v813
      %v854 = vpack.c.b16 %v835, %v834
      %v855 = vpack.c.b16 %v837, %v836
      %v856 = vpack.c.b16 %v839, %v838
      %v857 = vpack.c.b16 %v841, %v840
      %v858 = vpack.c.b16 %v843, %v842
      %v859 = vpack.c.b16 %v845, %v844
      %v860 = vpack.c.b16 %v847, %v846
      %v861 = vpack.c.b16 %v849, %v848
      %v862 = vpack.c.b16 %v851, %v850
      %v863 = vpack.c.b16 %v853, %v852
      %874 = vmatprep.subr.bf16.mxu0 0
      %875 = vmatpush1.bf16.msra.mxu0 %v854
      %876 = vmatprep.subr.bf16.mxu0 0
      %877 = vmatpush1.bf16.msra.mxu0 %v855
      %878 = vmatprep.subr.bf16.mxu0 0
      %879 = vmatpush1.bf16.msra.mxu0 %v856
      %880 = vmatprep.subr.bf16.mxu0 0
      %881 = vmatpush1.bf16.msra.mxu0 %v857
      %882 = vmatprep.subr.bf16.mxu0 0
      %883 = vmatpush1.bf16.msra.mxu0 %v858
      %884 = vmatprep.subr.bf16.mxu0 0
      %885 = vmatpush1.bf16.msra.mxu0 %v859
      %886 = vmatprep.subr.bf16.mxu0 0
      %887 = vmatpush1.bf16.msra.mxu0 %v860
      %888 = vmatprep.subr.bf16.mxu0 0
      %889 = vmatpush1.bf16.msra.mxu0 %v861
      %890 = vmatprep.subr.bf16.mxu0 0
      %891 = vmatpush1.bf16.msra.mxu0 %v862
      %892 = vmatprep.subr.bf16.mxu0 0
      %893 = vmatpush1.bf16.msra.mxu0 %v863
      %894 = vmatprep.subr.bf16.mxu0 0
      %895 = vmatpush1.bf16.msra.mxu0 0
      %896 = vmatprep.subr.bf16.mxu0 0
      %897 = vmatpush1.bf16.msra.mxu0 0
      %898 = vmatprep.subr.bf16.mxu0 0
      %899 = vmatpush1.bf16.msra.mxu0 0
      %900 = vmatprep.subr.bf16.mxu0 0
      %901 = vmatpush1.bf16.msra.mxu0 0
      %902 = vmatprep.subr.bf16.mxu0 0
      %903 = vmatpush1.bf16.msra.mxu0 0
      %904 = vmatprep.subr.bf16.mxu0 0
      %905 = vmatpush1.bf16.msra.mxu0 0
      %906 = vmatprep.mubr.bf16.mxu0 %v267
      %907 = vmatmul.mubr.bf16.gmra.mrb[0].mxu0 %v202
      %v908 = vpop.f32.mrb[0].mxu0
      %v909 = vadd.f32 0.0, %v908
      %v910 = vpop.f32.mrb[0].mxu0
      %v911 = vpop.f32.mrb[0].mxu0
      %v912 = vadd.f32 0.0, %v911
      %v913 = vpop.f32.mrb[0].mxu0
      %914 = vdwg.mxu0
      %v916 = vrot.slane %v909, 3
      %917 = vrot.lane.b32.xlu0 %v916, 127
      %v918 = vpop.permute.xlu0 %917
      %v920 = vadd.f32 %v909, %v918
      %v922 = vrot.slane %v909, 6
      %v923 = vrot.slane %v912, 6
      %v924 = vsel %vm317, %v922, %v923
      %925 = vrot.lane.b32.xlu0 %v924, 126
      %v926 = vpop.permute.xlu0 %925
      %v928 = vadd.f32 %v920, %v926
      %v929 = vrot.slane %v912, 1
      %930 = vrot.lane.b32.xlu0 %v929, 125
      %v931 = vpop.permute.xlu0 %930
      %v933 = vadd.f32 %v928, %v931
      %v934 = vrot.slane %v912, 4
      %935 = vrot.lane.b32.xlu0 %v934, 124
      %v936 = vpop.permute.xlu0 %935
      %v938 = vadd.f32 %v933, %v936
      %s939 = sadd.s32 %s168, 5
      %s940 = smul.u32 %s939, 32
      %s941 = sshra.s32 %s940, 3
      %s942 = sand.u32 %s940, 7
      %s943 = smul.addr %s941, 4
      %s944 = scalar_lea.vmem %s156, %s943
      %v945 = vld [vmem:[%s944] sm:$0xf]
      %v946 = vld [vmem:[%s944 + $0x4] sm:$0xf]
      %v947 = vld [vmem:[%s944 + $0x8] sm:$0xf]
      %v948 = vld [vmem:[%s944 + $0xc] sm:$0xf]
      %v949 = vld [vmem:[%s944 + $0x10] sm:$0xf]
      %v950 = vld [vmem:[%s944 + $0x14] sm:$0xf]
      %v951 = vld [vmem:[%s944 + $0x18] sm:$0xf]
      %v952 = vld [vmem:[%s944 + $0x1c] sm:$0xf]
      %v953 = vld [vmem:[%s944 + $0x20] sm:$0xf]
      %v954 = vld [vmem:[%s944 + $0x24] sm:$0xf]
      %v955 = vld [vmem:[%s944 + $0x28] sm:$0xf]
      %v956 = vld [vmem:[%s944 + $0x2c] sm:$0xf]
      %v957 = vld [vmem:[%s944 + $0x30] sm:$0xf]
      %v958 = vld [vmem:[%s944 + $0x34] sm:$0xf]
      %v959 = vld [vmem:[%s944 + $0x38] sm:$0xf]
      %v960 = vld [vmem:[%s944 + $0x3c] sm:$0xf]
      %v961 = vld [vmem:[%s944 + $0x40] sm:$0xf]
      %v962 = vld [vmem:[%s944 + $0x44] sm:$0xf]
      %v963 = vld [vmem:[%s944 + $0x48] sm:$0xf]
      %v964 = vld [vmem:[%s944 + $0x4c] sm:$0xf]
      %v985 = vunpack.c.l.b16 %v945
      %v986 = vunpack.c.l.b16 %v946
      %v987 = vunpack.c.l.b16 %v947
      %v988 = vunpack.c.l.b16 %v948
      %v989 = vunpack.c.l.b16 %v949
      %v990 = vunpack.c.l.b16 %v950
      %v991 = vunpack.c.l.b16 %v951
      %v992 = vunpack.c.l.b16 %v952
      %v993 = vunpack.c.l.b16 %v953
      %v994 = vunpack.c.l.b16 %v954
      %v995 = vunpack.c.l.b16 %v955
      %v996 = vunpack.c.l.b16 %v956
      %v997 = vunpack.c.l.b16 %v957
      %v998 = vunpack.c.l.b16 %v958
      %v999 = vunpack.c.l.b16 %v959
      %v1000 = vunpack.c.l.b16 %v960
      %v1001 = vunpack.c.l.b16 %v961
      %v1002 = vunpack.c.l.b16 %v962
      %v1003 = vunpack.c.l.b16 %v963
      %v1004 = vunpack.c.l.b16 %v964
      %v1005 = vpack.c.b16 %v986, %v985
      %v1006 = vpack.c.b16 %v988, %v987
      %v1007 = vpack.c.b16 %v990, %v989
      %v1008 = vpack.c.b16 %v992, %v991
      %v1009 = vpack.c.b16 %v994, %v993
      %v1010 = vpack.c.b16 %v996, %v995
      %v1011 = vpack.c.b16 %v998, %v997
      %v1012 = vpack.c.b16 %v1000, %v999
      %v1013 = vpack.c.b16 %v1002, %v1001
      %v1014 = vpack.c.b16 %v1004, %v1003
      %1025 = vmatprep.subr.bf16.mxu0 0
      %1026 = vmatpush1.bf16.msra.mxu0 %v1005
      %1027 = vmatprep.subr.bf16.mxu0 0
      %1028 = vmatpush1.bf16.msra.mxu0 %v1006
      %1029 = vmatprep.subr.bf16.mxu0 0
      %1030 = vmatpush1.bf16.msra.mxu0 %v1007
      %1031 = vmatprep.subr.bf16.mxu0 0
      %1032 = vmatpush1.bf16.msra.mxu0 %v1008
      %1033 = vmatprep.subr.bf16.mxu0 0
      %1034 = vmatpush1.bf16.msra.mxu0 %v1009
      %1035 = vmatprep.subr.bf16.mxu0 0
      %1036 = vmatpush1.bf16.msra.mxu0 %v1010
      %1037 = vmatprep.subr.bf16.mxu0 0
      %1038 = vmatpush1.bf16.msra.mxu0 %v1011
      %1039 = vmatprep.subr.bf16.mxu0 0
      %1040 = vmatpush1.bf16.msra.mxu0 %v1012
      %1041 = vmatprep.subr.bf16.mxu0 0
      %1042 = vmatpush1.bf16.msra.mxu0 %v1013
      %1043 = vmatprep.subr.bf16.mxu0 0
      %1044 = vmatpush1.bf16.msra.mxu0 %v1014
      %1045 = vmatprep.subr.bf16.mxu0 0
      %1046 = vmatpush1.bf16.msra.mxu0 0
      %1047 = vmatprep.subr.bf16.mxu0 0
      %1048 = vmatpush1.bf16.msra.mxu0 0
      %1049 = vmatprep.subr.bf16.mxu0 0
      %1050 = vmatpush1.bf16.msra.mxu0 0
      %1051 = vmatprep.subr.bf16.mxu0 0
      %1052 = vmatpush1.bf16.msra.mxu0 0
      %1053 = vmatprep.subr.bf16.mxu0 0
      %1054 = vmatpush1.bf16.msra.mxu0 0
      %1055 = vmatprep.subr.bf16.mxu0 0
      %1056 = vmatpush1.bf16.msra.mxu0 0
      %1057 = vmatprep.mubr.bf16.mxu0 %v267
      %1058 = vmatmul.mubr.bf16.gmra.mrb[0].mxu0 %v202
      %v1059 = vpop.f32.mrb[0].mxu0
      %v1060 = vadd.f32 0.0, %v1059
      %v1061 = vpop.f32.mrb[0].mxu0
      %v1062 = vpop.f32.mrb[0].mxu0
      %v1063 = vadd.f32 0.0, %v1062
      %v1064 = vpop.f32.mrb[0].mxu0
      %1065 = vdwg.mxu0
      %v1067 = vrot.slane %v1060, 3
      %1068 = vrot.lane.b32.xlu0 %v1067, 127
      %v1069 = vpop.permute.xlu0 %1068
      %v1071 = vadd.f32 %v1060, %v1069
      %v1073 = vrot.slane %v1060, 6
      %v1074 = vrot.slane %v1063, 6
      %v1075 = vsel %vm317, %v1073, %v1074
      %1076 = vrot.lane.b32.xlu0 %v1075, 126
      %v1077 = vpop.permute.xlu0 %1076
      %v1079 = vadd.f32 %v1071, %v1077
      %v1080 = vrot.slane %v1063, 1
      %1081 = vrot.lane.b32.xlu0 %v1080, 125
      %v1082 = vpop.permute.xlu0 %1081
      %v1084 = vadd.f32 %v1079, %v1082
      %v1085 = vrot.slane %v1063, 4
      %1086 = vrot.lane.b32.xlu0 %v1085, 124
      %v1087 = vpop.permute.xlu0 %1086
      %v1089 = vadd.f32 %v1084, %v1087
      %s1090 = sadd.s32 %s168, 6
      %s1091 = smul.u32 %s1090, 32
      %s1092 = sshra.s32 %s1091, 3
      %s1093 = sand.u32 %s1091, 7
      %s1094 = smul.addr %s1092, 4
      %s1095 = scalar_lea.vmem %s156, %s1094
      %v1096 = vld [vmem:[%s1095] sm:$0xf]
      %v1097 = vld [vmem:[%s1095 + $0x4] sm:$0xf]
      %v1098 = vld [vmem:[%s1095 + $0x8] sm:$0xf]
      %v1099 = vld [vmem:[%s1095 + $0xc] sm:$0xf]
      %v1100 = vld [vmem:[%s1095 + $0x10] sm:$0xf]
      %v1101 = vld [vmem:[%s1095 + $0x14] sm:$0xf]
      %v1102 = vld [vmem:[%s1095 + $0x18] sm:$0xf]
      %v1103 = vld [vmem:[%s1095 + $0x1c] sm:$0xf]
      %v1104 = vld [vmem:[%s1095 + $0x20] sm:$0xf]
      %v1105 = vld [vmem:[%s1095 + $0x24] sm:$0xf]
      %v1106 = vld [vmem:[%s1095 + $0x28] sm:$0xf]
      %v1107 = vld [vmem:[%s1095 + $0x2c] sm:$0xf]
      %v1108 = vld [vmem:[%s1095 + $0x30] sm:$0xf]
      %v1109 = vld [vmem:[%s1095 + $0x34] sm:$0xf]
      %v1110 = vld [vmem:[%s1095 + $0x38] sm:$0xf]
      %v1111 = vld [vmem:[%s1095 + $0x3c] sm:$0xf]
      %v1112 = vld [vmem:[%s1095 + $0x40] sm:$0xf]
      %v1113 = vld [vmem:[%s1095 + $0x44] sm:$0xf]
      %v1114 = vld [vmem:[%s1095 + $0x48] sm:$0xf]
      %v1115 = vld [vmem:[%s1095 + $0x4c] sm:$0xf]
      %v1136 = vunpack.c.l.b16 %v1096
      %v1137 = vunpack.c.l.b16 %v1097
      %v1138 = vunpack.c.l.b16 %v1098
      %v1139 = vunpack.c.l.b16 %v1099
      %v1140 = vunpack.c.l.b16 %v1100
      %v1141 = vunpack.c.l.b16 %v1101
      %v1142 = vunpack.c.l.b16 %v1102
      %v1143 = vunpack.c.l.b16 %v1103
      %v1144 = vunpack.c.l.b16 %v1104
      %v1145 = vunpack.c.l.b16 %v1105
      %v1146 = vunpack.c.l.b16 %v1106
      %v1147 = vunpack.c.l.b16 %v1107
      %v1148 = vunpack.c.l.b16 %v1108
      %v1149 = vunpack.c.l.b16 %v1109
      %v1150 = vunpack.c.l.b16 %v1110
      %v1151 = vunpack.c.l.b16 %v1111
      %v1152 = vunpack.c.l.b16 %v1112
      %v1153 = vunpack.c.l.b16 %v1113
      %v1154 = vunpack.c.l.b16 %v1114
      %v1155 = vunpack.c.l.b16 %v1115
      %v1156 = vpack.c.b16 %v1137, %v1136
      %v1157 = vpack.c.b16 %v1139, %v1138
      %v1158 = vpack.c.b16 %v1141, %v1140
      %v1159 = vpack.c.b16 %v1143, %v1142
      %v1160 = vpack.c.b16 %v1145, %v1144
      %v1161 = vpack.c.b16 %v1147, %v1146
      %v1162 = vpack.c.b16 %v1149, %v1148
      %v1163 = vpack.c.b16 %v1151, %v1150
      %v1164 = vpack.c.b16 %v1153, %v1152
      %v1165 = vpack.c.b16 %v1155, %v1154
      %1176 = vmatprep.subr.bf16.mxu0 0
      %1177 = vmatpush1.bf16.msra.mxu0 %v1156
      %1178 = vmatprep.subr.bf16.mxu0 0
      %1179 = vmatpush1.bf16.msra.mxu0 %v1157
      %1180 = vmatprep.subr.bf16.mxu0 0
      %1181 = vmatpush1.bf16.msra.mxu0 %v1158
      %1182 = vmatprep.subr.bf16.mxu0 0
      %1183 = vmatpush1.bf16.msra.mxu0 %v1159
      %1184 = vmatprep.subr.bf16.mxu0 0
      %1185 = vmatpush1.bf16.msra.mxu0 %v1160
      %1186 = vmatprep.subr.bf16.mxu0 0
      %1187 = vmatpush1.bf16.msra.mxu0 %v1161
      %1188 = vmatprep.subr.bf16.mxu0 0
      %1189 = vmatpush1.bf16.msra.mxu0 %v1162
      %1190 = vmatprep.subr.bf16.mxu0 0
      %1191 = vmatpush1.bf16.msra.mxu0 %v1163
      %1192 = vmatprep.subr.bf16.mxu0 0
      %1193 = vmatpush1.bf16.msra.mxu0 %v1164
      %1194 = vmatprep.subr.bf16.mxu0 0
      %1195 = vmatpush1.bf16.msra.mxu0 %v1165
      %1196 = vmatprep.subr.bf16.mxu0 0
      %1197 = vmatpush1.bf16.msra.mxu0 0
      %1198 = vmatprep.subr.bf16.mxu0 0
      %1199 = vmatpush1.bf16.msra.mxu0 0
      %1200 = vmatprep.subr.bf16.mxu0 0
      %1201 = vmatpush1.bf16.msra.mxu0 0
      %1202 = vmatprep.subr.bf16.mxu0 0
      %1203 = vmatpush1.bf16.msra.mxu0 0
      %1204 = vmatprep.subr.bf16.mxu0 0
      %1205 = vmatpush1.bf16.msra.mxu0 0
      %1206 = vmatprep.subr.bf16.mxu0 0
      %1207 = vmatpush1.bf16.msra.mxu0 0
      %1208 = vmatprep.mubr.bf16.mxu0 %v267
      %1209 = vmatmul.mubr.bf16.gmra.mrb[0].mxu0 %v202
      %v1210 = vpop.f32.mrb[0].mxu0
      %v1211 = vadd.f32 0.0, %v1210
      %v1212 = vpop.f32.mrb[0].mxu0
      %v1213 = vpop.f32.mrb[0].mxu0
      %v1214 = vadd.f32 0.0, %v1213
      %v1215 = vpop.f32.mrb[0].mxu0
      %1216 = vdwg.mxu0
      %v1218 = vrot.slane %v1211, 3
      %1219 = vrot.lane.b32.xlu0 %v1218, 127
      %v1220 = vpop.permute.xlu0 %1219
      %v1222 = vadd.f32 %v1211, %v1220
      %v1224 = vrot.slane %v1211, 6
      %v1225 = vrot.slane %v1214, 6
      %v1226 = vsel %vm317, %v1224, %v1225
      %1227 = vrot.lane.b32.xlu0 %v1226, 126
      %v1228 = vpop.permute.xlu0 %1227
      %v1230 = vadd.f32 %v1222, %v1228
      %v1231 = vrot.slane %v1214, 1
      %1232 = vrot.lane.b32.xlu0 %v1231, 125
      %v1233 = vpop.permute.xlu0 %1232
      %v1235 = vadd.f32 %v1230, %v1233
      %v1236 = vrot.slane %v1214, 4
      %1237 = vrot.lane.b32.xlu0 %v1236, 124
      %v1238 = vpop.permute.xlu0 %1237
      %v1240 = vadd.f32 %v1235, %v1238
      %s1241 = sadd.s32 %s168, 7
      %s1242 = smul.u32 %s1241, 32
      %s1243 = sshra.s32 %s1242, 3
      %s1244 = sand.u32 %s1242, 7
      %s1245 = smul.addr %s1243, 4
      %s1246 = scalar_lea.vmem %s156, %s1245
      %v1247 = vld [vmem:[%s1246] sm:$0xf]
      %v1248 = vld [vmem:[%s1246 + $0x4] sm:$0xf]
      %v1249 = vld [vmem:[%s1246 + $0x8] sm:$0xf]
      %v1250 = vld [vmem:[%s1246 + $0xc] sm:$0xf]
      %v1251 = vld [vmem:[%s1246 + $0x10] sm:$0xf]
      %v1252 = vld [vmem:[%s1246 + $0x14] sm:$0xf]
      %v1253 = vld [vmem:[%s1246 + $0x18] sm:$0xf]
      %v1254 = vld [vmem:[%s1246 + $0x1c] sm:$0xf]
      %v1255 = vld [vmem:[%s1246 + $0x20] sm:$0xf]
      %v1256 = vld [vmem:[%s1246 + $0x24] sm:$0xf]
      %v1257 = vld [vmem:[%s1246 + $0x28] sm:$0xf]
      %v1258 = vld [vmem:[%s1246 + $0x2c] sm:$0xf]
      %v1259 = vld [vmem:[%s1246 + $0x30] sm:$0xf]
      %v1260 = vld [vmem:[%s1246 + $0x34] sm:$0xf]
      %v1261 = vld [vmem:[%s1246 + $0x38] sm:$0xf]
      %v1262 = vld [vmem:[%s1246 + $0x3c] sm:$0xf]
      %v1263 = vld [vmem:[%s1246 + $0x40] sm:$0xf]
      %v1264 = vld [vmem:[%s1246 + $0x44] sm:$0xf]
      %v1265 = vld [vmem:[%s1246 + $0x48] sm:$0xf]
      %v1266 = vld [vmem:[%s1246 + $0x4c] sm:$0xf]
      %v1287 = vunpack.c.l.b16 %v1247
      %v1288 = vunpack.c.l.b16 %v1248
      %v1289 = vunpack.c.l.b16 %v1249
      %v1290 = vunpack.c.l.b16 %v1250
      %v1291 = vunpack.c.l.b16 %v1251
      %v1292 = vunpack.c.l.b16 %v1252
      %v1293 = vunpack.c.l.b16 %v1253
      %v1294 = vunpack.c.l.b16 %v1254
      %v1295 = vunpack.c.l.b16 %v1255
      %v1296 = vunpack.c.l.b16 %v1256
      %v1297 = vunpack.c.l.b16 %v1257
      %v1298 = vunpack.c.l.b16 %v1258
      %v1299 = vunpack.c.l.b16 %v1259
      %v1300 = vunpack.c.l.b16 %v1260
      %v1301 = vunpack.c.l.b16 %v1261
      %v1302 = vunpack.c.l.b16 %v1262
      %v1303 = vunpack.c.l.b16 %v1263
      %v1304 = vunpack.c.l.b16 %v1264
      %v1305 = vunpack.c.l.b16 %v1265
      %v1306 = vunpack.c.l.b16 %v1266
      %v1307 = vpack.c.b16 %v1288, %v1287
      %v1308 = vpack.c.b16 %v1290, %v1289
      %v1309 = vpack.c.b16 %v1292, %v1291
      %v1310 = vpack.c.b16 %v1294, %v1293
      %v1311 = vpack.c.b16 %v1296, %v1295
      %v1312 = vpack.c.b16 %v1298, %v1297
      %v1313 = vpack.c.b16 %v1300, %v1299
      %v1314 = vpack.c.b16 %v1302, %v1301
      %v1315 = vpack.c.b16 %v1304, %v1303
      %v1316 = vpack.c.b16 %v1306, %v1305
      %1327 = vmatprep.subr.bf16.mxu0 0
      %1328 = vmatpush1.bf16.msra.mxu0 %v1307
      %1329 = vmatprep.subr.bf16.mxu0 0
      %1330 = vmatpush1.bf16.msra.mxu0 %v1308
      %1331 = vmatprep.subr.bf16.mxu0 0
      %1332 = vmatpush1.bf16.msra.mxu0 %v1309
      %1333 = vmatprep.subr.bf16.mxu0 0
      %1334 = vmatpush1.bf16.msra.mxu0 %v1310
      %1335 = vmatprep.subr.bf16.mxu0 0
      %1336 = vmatpush1.bf16.msra.mxu0 %v1311
      %1337 = vmatprep.subr.bf16.mxu0 0
      %1338 = vmatpush1.bf16.msra.mxu0 %v1312
      %1339 = vmatprep.subr.bf16.mxu0 0
      %1340 = vmatpush1.bf16.msra.mxu0 %v1313
      %1341 = vmatprep.subr.bf16.mxu0 0
      %1342 = vmatpush1.bf16.msra.mxu0 %v1314
      %1343 = vmatprep.subr.bf16.mxu0 0
      %1344 = vmatpush1.bf16.msra.mxu0 %v1315
      %1345 = vmatprep.subr.bf16.mxu0 0
      %1346 = vmatpush1.bf16.msra.mxu0 %v1316
      %1347 = vmatprep.subr.bf16.mxu0 0
      %1348 = vmatpush1.bf16.msra.mxu0 0
      %1349 = vmatprep.subr.bf16.mxu0 0
      %1350 = vmatpush1.bf16.msra.mxu0 0
      %1351 = vmatprep.subr.bf16.mxu0 0
      %1352 = vmatpush1.bf16.msra.mxu0 0
      %1353 = vmatprep.subr.bf16.mxu0 0
      %1354 = vmatpush1.bf16.msra.mxu0 0
      %1355 = vmatprep.subr.bf16.mxu0 0
      %1356 = vmatpush1.bf16.msra.mxu0 0
      %1357 = vmatprep.subr.bf16.mxu0 0
      %1358 = vmatpush1.bf16.msra.mxu0 0
      %1359 = vmatprep.mubr.bf16.mxu0 %v267
      %1360 = vmatmul.mubr.bf16.gmra.mrb[0].mxu0 %v202
      %v1361 = vpop.f32.mrb[0].mxu0
      %v1362 = vadd.f32 0.0, %v1361
      %v1363 = vpop.f32.mrb[0].mxu0
      %v1364 = vpop.f32.mrb[0].mxu0
      %v1365 = vadd.f32 0.0, %v1364
      %v1366 = vpop.f32.mrb[0].mxu0
      %1367 = vdwg.mxu0
      %v1369 = vrot.slane %v1362, 3
      %1370 = vrot.lane.b32.xlu0 %v1369, 127
      %v1371 = vpop.permute.xlu0 %1370
      %v1373 = vadd.f32 %v1362, %v1371
      %v1375 = vrot.slane %v1362, 6
      %v1376 = vrot.slane %v1365, 6
      %v1377 = vsel %vm317, %v1375, %v1376
      %1378 = vrot.lane.b32.xlu0 %v1377, 126
      %v1379 = vpop.permute.xlu0 %1378
      %v1381 = vadd.f32 %v1373, %v1379
      %v1382 = vrot.slane %v1365, 1
      %1383 = vrot.lane.b32.xlu0 %v1382, 125
      %v1384 = vpop.permute.xlu0 %1383
      %v1386 = vadd.f32 %v1381, %v1384
      %v1387 = vrot.slane %v1365, 4
      %1388 = vrot.lane.b32.xlu0 %v1387, 124
      %v1389 = vpop.permute.xlu0 %1388
      %v1391 = vadd.f32 %v1386, %v1389
      %s1392 = sadd.s32 %s168, 8
      %s1393 = smul.u32 %s1392, 32
      %s1394 = sshra.s32 %s1393, 3
      %s1395 = sand.u32 %s1393, 7
      %s1396 = smul.addr %s1394, 4
      %s1397 = scalar_lea.vmem %s156, %s1396
      %v1398 = vld [vmem:[%s1397] sm:$0xf]
      %v1399 = vld [vmem:[%s1397 + $0x4] sm:$0xf]
      %v1400 = vld [vmem:[%s1397 + $0x8] sm:$0xf]
      %v1401 = vld [vmem:[%s1397 + $0xc] sm:$0xf]
      %v1402 = vld [vmem:[%s1397 + $0x10] sm:$0xf]
      %v1403 = vld [vmem:[%s1397 + $0x14] sm:$0xf]
      %v1404 = vld [vmem:[%s1397 + $0x18] sm:$0xf]
      %v1405 = vld [vmem:[%s1397 + $0x1c] sm:$0xf]
      %v1406 = vld [vmem:[%s1397 + $0x20] sm:$0xf]
      %v1407 = vld [vmem:[%s1397 + $0x24] sm:$0xf]
      %v1408 = vld [vmem:[%s1397 + $0x28] sm:$0xf]
      %v1409 = vld [vmem:[%s1397 + $0x2c] sm:$0xf]
      %v1410 = vld [vmem:[%s1397 + $0x30] sm:$0xf]
      %v1411 = vld [vmem:[%s1397 + $0x34] sm:$0xf]
      %v1412 = vld [vmem:[%s1397 + $0x38] sm:$0xf]
      %v1413 = vld [vmem:[%s1397 + $0x3c] sm:$0xf]
      %v1414 = vld [vmem:[%s1397 + $0x40] sm:$0xf]
      %v1415 = vld [vmem:[%s1397 + $0x44] sm:$0xf]
      %v1416 = vld [vmem:[%s1397 + $0x48] sm:$0xf]
      %v1417 = vld [vmem:[%s1397 + $0x4c] sm:$0xf]
      %v1438 = vunpack.c.l.b16 %v1398
      %v1439 = vunpack.c.l.b16 %v1399
      %v1440 = vunpack.c.l.b16 %v1400
      %v1441 = vunpack.c.l.b16 %v1401
      %v1442 = vunpack.c.l.b16 %v1402
      %v1443 = vunpack.c.l.b16 %v1403
      %v1444 = vunpack.c.l.b16 %v1404
      %v1445 = vunpack.c.l.b16 %v1405
      %v1446 = vunpack.c.l.b16 %v1406
      %v1447 = vunpack.c.l.b16 %v1407
      %v1448 = vunpack.c.l.b16 %v1408
      %v1449 = vunpack.c.l.b16 %v1409
      %v1450 = vunpack.c.l.b16 %v1410
      %v1451 = vunpack.c.l.b16 %v1411
      %v1452 = vunpack.c.l.b16 %v1412
      %v1453 = vunpack.c.l.b16 %v1413
      %v1454 = vunpack.c.l.b16 %v1414
      %v1455 = vunpack.c.l.b16 %v1415
      %v1456 = vunpack.c.l.b16 %v1416
      %v1457 = vunpack.c.l.b16 %v1417
      %v1458 = vpack.c.b16 %v1439, %v1438
      %v1459 = vpack.c.b16 %v1441, %v1440
      %v1460 = vpack.c.b16 %v1443, %v1442
      %v1461 = vpack.c.b16 %v1445, %v1444
      %v1462 = vpack.c.b16 %v1447, %v1446
      %v1463 = vpack.c.b16 %v1449, %v1448
      %v1464 = vpack.c.b16 %v1451, %v1450
      %v1465 = vpack.c.b16 %v1453, %v1452
      %v1466 = vpack.c.b16 %v1455, %v1454
      %v1467 = vpack.c.b16 %v1457, %v1456
      %1478 = vmatprep.subr.bf16.mxu0 0
      %1479 = vmatpush1.bf16.msra.mxu0 %v1458
      %1480 = vmatprep.subr.bf16.mxu0 0
      %1481 = vmatpush1.bf16.msra.mxu0 %v1459
      %1482 = vmatprep.subr.bf16.mxu0 0
      %1483 = vmatpush1.bf16.msra.mxu0 %v1460
      %1484 = vmatprep.subr.bf16.mxu0 0
      %1485 = vmatpush1.bf16.msra.mxu0 %v1461
      %1486 = vmatprep.subr.bf16.mxu0 0
      %1487 = vmatpush1.bf16.msra.mxu0 %v1462
      %1488 = vmatprep.subr.bf16.mxu0 0
      %1489 = vmatpush1.bf16.msra.mxu0 %v1463
      %1490 = vmatprep.subr.bf16.mxu0 0
      %1491 = vmatpush1.bf16.msra.mxu0 %v1464
      %1492 = vmatprep.subr.bf16.mxu0 0
      %1493 = vmatpush1.bf16.msra.mxu0 %v1465
      %1494 = vmatprep.subr.bf16.mxu0 0
      %1495 = vmatpush1.bf16.msra.mxu0 %v1466
      %1496 = vmatprep.subr.bf16.mxu0 0
      %1497 = vmatpush1.bf16.msra.mxu0 %v1467
      %1498 = vmatprep.subr.bf16.mxu0 0
      %1499 = vmatpush1.bf16.msra.mxu0 0
      %1500 = vmatprep.subr.bf16.mxu0 0
      %1501 = vmatpush1.bf16.msra.mxu0 0
      %1502 = vmatprep.subr.bf16.mxu0 0
      %1503 = vmatpush1.bf16.msra.mxu0 0
      %1504 = vmatprep.subr.bf16.mxu0 0
      %1505 = vmatpush1.bf16.msra.mxu0 0
      %1506 = vmatprep.subr.bf16.mxu0 0
      %1507 = vmatpush1.bf16.msra.mxu0 0
      %1508 = vmatprep.subr.bf16.mxu0 0
      %1509 = vmatpush1.bf16.msra.mxu0 0
      %1510 = vmatprep.mubr.bf16.mxu0 %v267
      %1511 = vmatmul.mubr.bf16.gmra.mrb[0].mxu0 %v202
      %v1512 = vpop.f32.mrb[0].mxu0
      %v1513 = vadd.f32 0.0, %v1512
      %v1514 = vpop.f32.mrb[0].mxu0
      %v1515 = vpop.f32.mrb[0].mxu0
      %v1516 = vadd.f32 0.0, %v1515
      %v1517 = vpop.f32.mrb[0].mxu0
      %1518 = vdwg.mxu0
      %v1520 = vrot.slane %v1513, 3
      %1521 = vrot.lane.b32.xlu0 %v1520, 127
      %v1522 = vpop.permute.xlu0 %1521
      %v1524 = vadd.f32 %v1513, %v1522
      %v1526 = vrot.slane %v1513, 6
      %v1527 = vrot.slane %v1516, 6
      %v1528 = vsel %vm317, %v1526, %v1527
      %1529 = vrot.lane.b32.xlu0 %v1528, 126
      %v1530 = vpop.permute.xlu0 %1529
      %v1532 = vadd.f32 %v1524, %v1530
      %v1533 = vrot.slane %v1516, 1
      %1534 = vrot.lane.b32.xlu0 %v1533, 125
      %v1535 = vpop.permute.xlu0 %1534
      %v1537 = vadd.f32 %v1532, %v1535
      %v1538 = vrot.slane %v1516, 4
      %1539 = vrot.lane.b32.xlu0 %v1538, 124
      %v1540 = vpop.permute.xlu0 %1539
      %v1542 = vadd.f32 %v1537, %v1540
      %s1543 = sadd.s32 %s168, 9
      %s1544 = smul.u32 %s1543, 32
      %s1545 = sshra.s32 %s1544, 3
      %s1546 = sand.u32 %s1544, 7
      %s1547 = smul.addr %s1545, 4
      %s1548 = scalar_lea.vmem %s156, %s1547
      %v1549 = vld [vmem:[%s1548] sm:$0xf]
      %v1550 = vld [vmem:[%s1548 + $0x4] sm:$0xf]
      %v1551 = vld [vmem:[%s1548 + $0x8] sm:$0xf]
      %v1552 = vld [vmem:[%s1548 + $0xc] sm:$0xf]
      %v1553 = vld [vmem:[%s1548 + $0x10] sm:$0xf]
      %v1554 = vld [vmem:[%s1548 + $0x14] sm:$0xf]
      %v1555 = vld [vmem:[%s1548 + $0x18] sm:$0xf]
      %v1556 = vld [vmem:[%s1548 + $0x1c] sm:$0xf]
      %v1557 = vld [vmem:[%s1548 + $0x20] sm:$0xf]
      %v1558 = vld [vmem:[%s1548 + $0x24] sm:$0xf]
      %v1559 = vld [vmem:[%s1548 + $0x28] sm:$0xf]
      %v1560 = vld [vmem:[%s1548 + $0x2c] sm:$0xf]
      %v1561 = vld [vmem:[%s1548 + $0x30] sm:$0xf]
      %v1562 = vld [vmem:[%s1548 + $0x34] sm:$0xf]
      %v1563 = vld [vmem:[%s1548 + $0x38] sm:$0xf]
      %v1564 = vld [vmem:[%s1548 + $0x3c] sm:$0xf]
      %v1565 = vld [vmem:[%s1548 + $0x40] sm:$0xf]
      %v1566 = vld [vmem:[%s1548 + $0x44] sm:$0xf]
      %v1567 = vld [vmem:[%s1548 + $0x48] sm:$0xf]
      %v1568 = vld [vmem:[%s1548 + $0x4c] sm:$0xf]
      %v1589 = vunpack.c.l.b16 %v1549
      %v1590 = vunpack.c.l.b16 %v1550
      %v1591 = vunpack.c.l.b16 %v1551
      %v1592 = vunpack.c.l.b16 %v1552
      %v1593 = vunpack.c.l.b16 %v1553
      %v1594 = vunpack.c.l.b16 %v1554
      %v1595 = vunpack.c.l.b16 %v1555
      %v1596 = vunpack.c.l.b16 %v1556
      %v1597 = vunpack.c.l.b16 %v1557
      %v1598 = vunpack.c.l.b16 %v1558
      %v1599 = vunpack.c.l.b16 %v1559
      %v1600 = vunpack.c.l.b16 %v1560
      %v1601 = vunpack.c.l.b16 %v1561
      %v1602 = vunpack.c.l.b16 %v1562
      %v1603 = vunpack.c.l.b16 %v1563
      %v1604 = vunpack.c.l.b16 %v1564
      %v1605 = vunpack.c.l.b16 %v1565
      %v1606 = vunpack.c.l.b16 %v1566
      %v1607 = vunpack.c.l.b16 %v1567
      %v1608 = vunpack.c.l.b16 %v1568
      %v1609 = vpack.c.b16 %v1590, %v1589
      %v1610 = vpack.c.b16 %v1592, %v1591
      %v1611 = vpack.c.b16 %v1594, %v1593
      %v1612 = vpack.c.b16 %v1596, %v1595
      %v1613 = vpack.c.b16 %v1598, %v1597
      %v1614 = vpack.c.b16 %v1600, %v1599
      %v1615 = vpack.c.b16 %v1602, %v1601
      %v1616 = vpack.c.b16 %v1604, %v1603
      %v1617 = vpack.c.b16 %v1606, %v1605
      %v1618 = vpack.c.b16 %v1608, %v1607
      %1629 = vmatprep.subr.bf16.mxu0 0
      %1630 = vmatpush1.bf16.msra.mxu0 %v1609
      %1631 = vmatprep.subr.bf16.mxu0 0
      %1632 = vmatpush1.bf16.msra.mxu0 %v1610
      %1633 = vmatprep.subr.bf16.mxu0 0
      %1634 = vmatpush1.bf16.msra.mxu0 %v1611
      %1635 = vmatprep.subr.bf16.mxu0 0
      %1636 = vmatpush1.bf16.msra.mxu0 %v1612
      %1637 = vmatprep.subr.bf16.mxu0 0
      %1638 = vmatpush1.bf16.msra.mxu0 %v1613
      %1639 = vmatprep.subr.bf16.mxu0 0
      %1640 = vmatpush1.bf16.msra.mxu0 %v1614
      %1641 = vmatprep.subr.bf16.mxu0 0
      %1642 = vmatpush1.bf16.msra.mxu0 %v1615
      %1643 = vmatprep.subr.bf16.mxu0 0
      %1644 = vmatpush1.bf16.msra.mxu0 %v1616
      %1645 = vmatprep.subr.bf16.mxu0 0
      %1646 = vmatpush1.bf16.msra.mxu0 %v1617
      %1647 = vmatprep.subr.bf16.mxu0 0
      %1648 = vmatpush1.bf16.msra.mxu0 %v1618
      %1649 = vmatprep.subr.bf16.mxu0 0
      %1650 = vmatpush1.bf16.msra.mxu0 0
      %1651 = vmatprep.subr.bf16.mxu0 0
      %1652 = vmatpush1.bf16.msra.mxu0 0
      %1653 = vmatprep.subr.bf16.mxu0 0
      %1654 = vmatpush1.bf16.msra.mxu0 0
      %1655 = vmatprep.subr.bf16.mxu0 0
      %1656 = vmatpush1.bf16.msra.mxu0 0
      %1657 = vmatprep.subr.bf16.mxu0 0
      %1658 = vmatpush1.bf16.msra.mxu0 0
      %1659 = vmatprep.subr.bf16.mxu0 0
      %1660 = vmatpush1.bf16.msra.mxu0 0
      %1661 = vmatprep.mubr.bf16.mxu0 %v267
      %1662 = vmatmul.mubr.bf16.gmra.mrb[0].mxu0 %v202
      %v1663 = vpop.f32.mrb[0].mxu0
      %v1664 = vadd.f32 0.0, %v1663
      %v1665 = vpop.f32.mrb[0].mxu0
      %v1666 = vpop.f32.mrb[0].mxu0
      %v1667 = vadd.f32 0.0, %v1666
      %v1668 = vpop.f32.mrb[0].mxu0
      %1669 = vdwg.mxu0
      %v1671 = vrot.slane %v1664, 3
      %1672 = vrot.lane.b32.xlu0 %v1671, 127
      %v1673 = vpop.permute.xlu0 %1672
      %v1675 = vadd.f32 %v1664, %v1673
      %v1677 = vrot.slane %v1664, 6
      %v1678 = vrot.slane %v1667, 6
      %v1679 = vsel %vm317, %v1677, %v1678
      %1680 = vrot.lane.b32.xlu0 %v1679, 126
      %v1681 = vpop.permute.xlu0 %1680
      %v1683 = vadd.f32 %v1675, %v1681
      %v1684 = vrot.slane %v1667, 1
      %1685 = vrot.lane.b32.xlu0 %v1684, 125
      %v1686 = vpop.permute.xlu0 %1685
      %v1688 = vadd.f32 %v1683, %v1686
      %v1689 = vrot.slane %v1667, 4
      %1690 = vrot.lane.b32.xlu0 %v1689, 124
      %v1691 = vpop.permute.xlu0 %1690
      %v1693 = vadd.f32 %v1688, %v1691
      %s1694 = sadd.s32 %s168, 10
      %s1695 = smul.u32 %s1694, 32
      %s1696 = sshra.s32 %s1695, 3
      %s1697 = sand.u32 %s1695, 7
      %s1698 = smul.addr %s1696, 4
      %s1699 = scalar_lea.vmem %s156, %s1698
      %v1700 = vld [vmem:[%s1699] sm:$0xf]
      %v1701 = vld [vmem:[%s1699 + $0x4] sm:$0xf]
      %v1702 = vld [vmem:[%s1699 + $0x8] sm:$0xf]
      %v1703 = vld [vmem:[%s1699 + $0xc] sm:$0xf]
      %v1704 = vld [vmem:[%s1699 + $0x10] sm:$0xf]
      %v1705 = vld [vmem:[%s1699 + $0x14] sm:$0xf]
      %v1706 = vld [vmem:[%s1699 + $0x18] sm:$0xf]
      %v1707 = vld [vmem:[%s1699 + $0x1c] sm:$0xf]
      %v1708 = vld [vmem:[%s1699 + $0x20] sm:$0xf]
      %v1709 = vld [vmem:[%s1699 + $0x24] sm:$0xf]
      %v1710 = vld [vmem:[%s1699 + $0x28] sm:$0xf]
      %v1711 = vld [vmem:[%s1699 + $0x2c] sm:$0xf]
      %v1712 = vld [vmem:[%s1699 + $0x30] sm:$0xf]
      %v1713 = vld [vmem:[%s1699 + $0x34] sm:$0xf]
      %v1714 = vld [vmem:[%s1699 + $0x38] sm:$0xf]
      %v1715 = vld [vmem:[%s1699 + $0x3c] sm:$0xf]
      %v1716 = vld [vmem:[%s1699 + $0x40] sm:$0xf]
      %v1717 = vld [vmem:[%s1699 + $0x44] sm:$0xf]
      %v1718 = vld [vmem:[%s1699 + $0x48] sm:$0xf]
      %v1719 = vld [vmem:[%s1699 + $0x4c] sm:$0xf]
      %v1740 = vunpack.c.l.b16 %v1700
      %v1741 = vunpack.c.l.b16 %v1701
      %v1742 = vunpack.c.l.b16 %v1702
      %v1743 = vunpack.c.l.b16 %v1703
      %v1744 = vunpack.c.l.b16 %v1704
      %v1745 = vunpack.c.l.b16 %v1705
      %v1746 = vunpack.c.l.b16 %v1706
      %v1747 = vunpack.c.l.b16 %v1707
      %v1748 = vunpack.c.l.b16 %v1708
      %v1749 = vunpack.c.l.b16 %v1709
      %v1750 = vunpack.c.l.b16 %v1710
      %v1751 = vunpack.c.l.b16 %v1711
      %v1752 = vunpack.c.l.b16 %v1712
      %v1753 = vunpack.c.l.b16 %v1713
      %v1754 = vunpack.c.l.b16 %v1714
      %v1755 = vunpack.c.l.b16 %v1715
      %v1756 = vunpack.c.l.b16 %v1716
      %v1757 = vunpack.c.l.b16 %v1717
      %v1758 = vunpack.c.l.b16 %v1718
      %v1759 = vunpack.c.l.b16 %v1719
      %v1760 = vpack.c.b16 %v1741, %v1740
      %v1761 = vpack.c.b16 %v1743, %v1742
      %v1762 = vpack.c.b16 %v1745, %v1744
      %v1763 = vpack.c.b16 %v1747, %v1746
      %v1764 = vpack.c.b16 %v1749, %v1748
      %v1765 = vpack.c.b16 %v1751, %v1750
      %v1766 = vpack.c.b16 %v1753, %v1752
      %v1767 = vpack.c.b16 %v1755, %v1754
      %v1768 = vpack.c.b16 %v1757, %v1756
      %v1769 = vpack.c.b16 %v1759, %v1758
      %1780 = vmatprep.subr.bf16.mxu0 0
      %1781 = vmatpush1.bf16.msra.mxu0 %v1760
      %1782 = vmatprep.subr.bf16.mxu0 0
      %1783 = vmatpush1.bf16.msra.mxu0 %v1761
      %1784 = vmatprep.subr.bf16.mxu0 0
      %1785 = vmatpush1.bf16.msra.mxu0 %v1762
      %1786 = vmatprep.subr.bf16.mxu0 0
      %1787 = vmatpush1.bf16.msra.mxu0 %v1763
      %1788 = vmatprep.subr.bf16.mxu0 0
      %1789 = vmatpush1.bf16.msra.mxu0 %v1764
      %1790 = vmatprep.subr.bf16.mxu0 0
      %1791 = vmatpush1.bf16.msra.mxu0 %v1765
      %1792 = vmatprep.subr.bf16.mxu0 0
      %1793 = vmatpush1.bf16.msra.mxu0 %v1766
      %1794 = vmatprep.subr.bf16.mxu0 0
      %1795 = vmatpush1.bf16.msra.mxu0 %v1767
      %1796 = vmatprep.subr.bf16.mxu0 0
      %1797 = vmatpush1.bf16.msra.mxu0 %v1768
      %1798 = vmatprep.subr.bf16.mxu0 0
      %1799 = vmatpush1.bf16.msra.mxu0 %v1769
      %1800 = vmatprep.subr.bf16.mxu0 0
      %1801 = vmatpush1.bf16.msra.mxu0 0
      %1802 = vmatprep.subr.bf16.mxu0 0
      %1803 = vmatpush1.bf16.msra.mxu0 0
      %1804 = vmatprep.subr.bf16.mxu0 0
      %1805 = vmatpush1.bf16.msra.mxu0 0
      %1806 = vmatprep.subr.bf16.mxu0 0
      %1807 = vmatpush1.bf16.msra.mxu0 0
      %1808 = vmatprep.subr.bf16.mxu0 0
      %1809 = vmatpush1.bf16.msra.mxu0 0
      %1810 = vmatprep.subr.bf16.mxu0 0
      %1811 = vmatpush1.bf16.msra.mxu0 0
      %1812 = vmatprep.mubr.bf16.mxu0 %v267
      %1813 = vmatmul.mubr.bf16.gmra.mrb[0].mxu0 %v202
      %v1814 = vpop.f32.mrb[0].mxu0
      %v1815 = vadd.f32 0.0, %v1814
      %v1816 = vpop.f32.mrb[0].mxu0
      %v1817 = vpop.f32.mrb[0].mxu0
      %v1818 = vadd.f32 0.0, %v1817
      %v1819 = vpop.f32.mrb[0].mxu0
      %1820 = vdwg.mxu0
      %v1822 = vrot.slane %v1815, 3
      %1823 = vrot.lane.b32.xlu0 %v1822, 127
      %v1824 = vpop.permute.xlu0 %1823
      %v1826 = vadd.f32 %v1815, %v1824
      %v1828 = vrot.slane %v1815, 6
      %v1829 = vrot.slane %v1818, 6
      %v1830 = vsel %vm317, %v1828, %v1829
      %1831 = vrot.lane.b32.xlu0 %v1830, 126
      %v1832 = vpop.permute.xlu0 %1831
      %v1834 = vadd.f32 %v1826, %v1832
      %v1835 = vrot.slane %v1818, 1
      %1836 = vrot.lane.b32.xlu0 %v1835, 125
      %v1837 = vpop.permute.xlu0 %1836
      %v1839 = vadd.f32 %v1834, %v1837
      %v1840 = vrot.slane %v1818, 4
      %1841 = vrot.lane.b32.xlu0 %v1840, 124
      %v1842 = vpop.permute.xlu0 %1841
      %v1844 = vadd.f32 %v1839, %v1842
      %s1845 = sadd.s32 %s168, 11
      %s1846 = smul.u32 %s1845, 32
      %s1847 = sshra.s32 %s1846, 3
      %s1848 = sand.u32 %s1846, 7
      %s1849 = smul.addr %s1847, 4
      %s1850 = scalar_lea.vmem %s156, %s1849
      %v1851 = vld [vmem:[%s1850] sm:$0xf]
      %v1852 = vld [vmem:[%s1850 + $0x4] sm:$0xf]
      %v1853 = vld [vmem:[%s1850 + $0x8] sm:$0xf]
      %v1854 = vld [vmem:[%s1850 + $0xc] sm:$0xf]
      %v1855 = vld [vmem:[%s1850 + $0x10] sm:$0xf]
      %v1856 = vld [vmem:[%s1850 + $0x14] sm:$0xf]
      %v1857 = vld [vmem:[%s1850 + $0x18] sm:$0xf]
      %v1858 = vld [vmem:[%s1850 + $0x1c] sm:$0xf]
      %v1859 = vld [vmem:[%s1850 + $0x20] sm:$0xf]
      %v1860 = vld [vmem:[%s1850 + $0x24] sm:$0xf]
      %v1861 = vld [vmem:[%s1850 + $0x28] sm:$0xf]
      %v1862 = vld [vmem:[%s1850 + $0x2c] sm:$0xf]
      %v1863 = vld [vmem:[%s1850 + $0x30] sm:$0xf]
      %v1864 = vld [vmem:[%s1850 + $0x34] sm:$0xf]
      %v1865 = vld [vmem:[%s1850 + $0x38] sm:$0xf]
      %v1866 = vld [vmem:[%s1850 + $0x3c] sm:$0xf]
      %v1867 = vld [vmem:[%s1850 + $0x40] sm:$0xf]
      %v1868 = vld [vmem:[%s1850 + $0x44] sm:$0xf]
      %v1869 = vld [vmem:[%s1850 + $0x48] sm:$0xf]
      %v1870 = vld [vmem:[%s1850 + $0x4c] sm:$0xf]
      %v1891 = vunpack.c.l.b16 %v1851
      %v1892 = vunpack.c.l.b16 %v1852
      %v1893 = vunpack.c.l.b16 %v1853
      %v1894 = vunpack.c.l.b16 %v1854
      %v1895 = vunpack.c.l.b16 %v1855
      %v1896 = vunpack.c.l.b16 %v1856
      %v1897 = vunpack.c.l.b16 %v1857
      %v1898 = vunpack.c.l.b16 %v1858
      %v1899 = vunpack.c.l.b16 %v1859
      %v1900 = vunpack.c.l.b16 %v1860
      %v1901 = vunpack.c.l.b16 %v1861
      %v1902 = vunpack.c.l.b16 %v1862
      %v1903 = vunpack.c.l.b16 %v1863
      %v1904 = vunpack.c.l.b16 %v1864
      %v1905 = vunpack.c.l.b16 %v1865
      %v1906 = vunpack.c.l.b16 %v1866
      %v1907 = vunpack.c.l.b16 %v1867
      %v1908 = vunpack.c.l.b16 %v1868
      %v1909 = vunpack.c.l.b16 %v1869
      %v1910 = vunpack.c.l.b16 %v1870
      %v1911 = vpack.c.b16 %v1892, %v1891
      %v1912 = vpack.c.b16 %v1894, %v1893
      %v1913 = vpack.c.b16 %v1896, %v1895
      %v1914 = vpack.c.b16 %v1898, %v1897
      %v1915 = vpack.c.b16 %v1900, %v1899
      %v1916 = vpack.c.b16 %v1902, %v1901
      %v1917 = vpack.c.b16 %v1904, %v1903
      %v1918 = vpack.c.b16 %v1906, %v1905
      %v1919 = vpack.c.b16 %v1908, %v1907
      %v1920 = vpack.c.b16 %v1910, %v1909
      %1931 = vmatprep.subr.bf16.mxu0 0
      %1932 = vmatpush1.bf16.msra.mxu0 %v1911
      %1933 = vmatprep.subr.bf16.mxu0 0
      %1934 = vmatpush1.bf16.msra.mxu0 %v1912
      %1935 = vmatprep.subr.bf16.mxu0 0
      %1936 = vmatpush1.bf16.msra.mxu0 %v1913
      %1937 = vmatprep.subr.bf16.mxu0 0
      %1938 = vmatpush1.bf16.msra.mxu0 %v1914
      %1939 = vmatprep.subr.bf16.mxu0 0
      %1940 = vmatpush1.bf16.msra.mxu0 %v1915
      %1941 = vmatprep.subr.bf16.mxu0 0
      %1942 = vmatpush1.bf16.msra.mxu0 %v1916
      %1943 = vmatprep.subr.bf16.mxu0 0
      %1944 = vmatpush1.bf16.msra.mxu0 %v1917
      %1945 = vmatprep.subr.bf16.mxu0 0
      %1946 = vmatpush1.bf16.msra.mxu0 %v1918
      %1947 = vmatprep.subr.bf16.mxu0 0
      %1948 = vmatpush1.bf16.msra.mxu0 %v1919
      %1949 = vmatprep.subr.bf16.mxu0 0
      %1950 = vmatpush1.bf16.msra.mxu0 %v1920
      %1951 = vmatprep.subr.bf16.mxu0 0
      %1952 = vmatpush1.bf16.msra.mxu0 0
      %1953 = vmatprep.subr.bf16.mxu0 0
      %1954 = vmatpush1.bf16.msra.mxu0 0
      %1955 = vmatprep.subr.bf16.mxu0 0
      %1956 = vmatpush1.bf16.msra.mxu0 0
      %1957 = vmatprep.subr.bf16.mxu0 0
      %1958 = vmatpush1.bf16.msra.mxu0 0
      %1959 = vmatprep.subr.bf16.mxu0 0
      %1960 = vmatpush1.bf16.msra.mxu0 0
      %1961 = vmatprep.subr.bf16.mxu0 0
      %1962 = vmatpush1.bf16.msra.mxu0 0
      %1963 = vmatprep.mubr.bf16.mxu0 %v267
      %1964 = vmatmul.mubr.bf16.gmra.mrb[0].mxu0 %v202
      %v1965 = vpop.f32.mrb[0].mxu0
      %v1966 = vadd.f32 0.0, %v1965
      %v1967 = vpop.f32.mrb[0].mxu0
      %v1968 = vpop.f32.mrb[0].mxu0
      %v1969 = vadd.f32 0.0, %v1968
      %v1970 = vpop.f32.mrb[0].mxu0
      %1971 = vdwg.mxu0
      %v1973 = vrot.slane %v1966, 3
      %1974 = vrot.lane.b32.xlu0 %v1973, 127
      %v1975 = vpop.permute.xlu0 %1974
      %v1977 = vadd.f32 %v1966, %v1975
      %v1979 = vrot.slane %v1966, 6
      %v1980 = vrot.slane %v1969, 6
      %v1981 = vsel %vm317, %v1979, %v1980
      %1982 = vrot.lane.b32.xlu0 %v1981, 126
      %v1983 = vpop.permute.xlu0 %1982
      %v1985 = vadd.f32 %v1977, %v1983
      %v1986 = vrot.slane %v1969, 1
      %1987 = vrot.lane.b32.xlu0 %v1986, 125
      %v1988 = vpop.permute.xlu0 %1987
      %v1990 = vadd.f32 %v1985, %v1988
      %v1991 = vrot.slane %v1969, 4
      %1992 = vrot.lane.b32.xlu0 %v1991, 124
      %v1993 = vpop.permute.xlu0 %1992
      %v1995 = vadd.f32 %v1990, %v1993
      %s1996 = sadd.s32 %s168, 12
      %s1997 = smul.u32 %s1996, 32
      %s1998 = sshra.s32 %s1997, 3
      %s1999 = sand.u32 %s1997, 7
      %s2000 = smul.addr %s1998, 4
      %s2001 = scalar_lea.vmem %s156, %s2000
      %v2002 = vld [vmem:[%s2001] sm:$0xf]
      %v2003 = vld [vmem:[%s2001 + $0x4] sm:$0xf]
      %v2004 = vld [vmem:[%s2001 + $0x8] sm:$0xf]
      %v2005 = vld [vmem:[%s2001 + $0xc] sm:$0xf]
      %v2006 = vld [vmem:[%s2001 + $0x10] sm:$0xf]
      %v2007 = vld [vmem:[%s2001 + $0x14] sm:$0xf]
      %v2008 = vld [vmem:[%s2001 + $0x18] sm:$0xf]
      %v2009 = vld [vmem:[%s2001 + $0x1c] sm:$0xf]
      %v2010 = vld [vmem:[%s2001 + $0x20] sm:$0xf]
      %v2011 = vld [vmem:[%s2001 + $0x24] sm:$0xf]
      %v2012 = vld [vmem:[%s2001 + $0x28] sm:$0xf]
      %v2013 = vld [vmem:[%s2001 + $0x2c] sm:$0xf]
      %v2014 = vld [vmem:[%s2001 + $0x30] sm:$0xf]
      %v2015 = vld [vmem:[%s2001 + $0x34] sm:$0xf]
      %v2016 = vld [vmem:[%s2001 + $0x38] sm:$0xf]
      %v2017 = vld [vmem:[%s2001 + $0x3c] sm:$0xf]
      %v2018 = vld [vmem:[%s2001 + $0x40] sm:$0xf]
      %v2019 = vld [vmem:[%s2001 + $0x44] sm:$0xf]
      %v2020 = vld [vmem:[%s2001 + $0x48] sm:$0xf]
      %v2021 = vld [vmem:[%s2001 + $0x4c] sm:$0xf]
      %v2042 = vunpack.c.l.b16 %v2002
      %v2043 = vunpack.c.l.b16 %v2003
      %v2044 = vunpack.c.l.b16 %v2004
      %v2045 = vunpack.c.l.b16 %v2005
      %v2046 = vunpack.c.l.b16 %v2006
      %v2047 = vunpack.c.l.b16 %v2007
      %v2048 = vunpack.c.l.b16 %v2008
      %v2049 = vunpack.c.l.b16 %v2009
      %v2050 = vunpack.c.l.b16 %v2010
      %v2051 = vunpack.c.l.b16 %v2011
      %v2052 = vunpack.c.l.b16 %v2012
      %v2053 = vunpack.c.l.b16 %v2013
      %v2054 = vunpack.c.l.b16 %v2014
      %v2055 = vunpack.c.l.b16 %v2015
      %v2056 = vunpack.c.l.b16 %v2016
      %v2057 = vunpack.c.l.b16 %v2017
      %v2058 = vunpack.c.l.b16 %v2018
      %v2059 = vunpack.c.l.b16 %v2019
      %v2060 = vunpack.c.l.b16 %v2020
      %v2061 = vunpack.c.l.b16 %v2021
      %v2062 = vpack.c.b16 %v2043, %v2042
      %v2063 = vpack.c.b16 %v2045, %v2044
      %v2064 = vpack.c.b16 %v2047, %v2046
      %v2065 = vpack.c.b16 %v2049, %v2048
      %v2066 = vpack.c.b16 %v2051, %v2050
      %v2067 = vpack.c.b16 %v2053, %v2052
      %v2068 = vpack.c.b16 %v2055, %v2054
      %v2069 = vpack.c.b16 %v2057, %v2056
      %v2070 = vpack.c.b16 %v2059, %v2058
      %v2071 = vpack.c.b16 %v2061, %v2060
      %2082 = vmatprep.subr.bf16.mxu0 0
      %2083 = vmatpush1.bf16.msra.mxu0 %v2062
      %2084 = vmatprep.subr.bf16.mxu0 0
      %2085 = vmatpush1.bf16.msra.mxu0 %v2063
      %2086 = vmatprep.subr.bf16.mxu0 0
      %2087 = vmatpush1.bf16.msra.mxu0 %v2064
      %2088 = vmatprep.subr.bf16.mxu0 0
      %2089 = vmatpush1.bf16.msra.mxu0 %v2065
      %2090 = vmatprep.subr.bf16.mxu0 0
      %2091 = vmatpush1.bf16.msra.mxu0 %v2066
      %2092 = vmatprep.subr.bf16.mxu0 0
      %2093 = vmatpush1.bf16.msra.mxu0 %v2067
      %2094 = vmatprep.subr.bf16.mxu0 0
      %2095 = vmatpush1.bf16.msra.mxu0 %v2068
      %2096 = vmatprep.subr.bf16.mxu0 0
      %2097 = vmatpush1.bf16.msra.mxu0 %v2069
      %2098 = vmatprep.subr.bf16.mxu0 0
      %2099 = vmatpush1.bf16.msra.mxu0 %v2070
      %2100 = vmatprep.subr.bf16.mxu0 0
      %2101 = vmatpush1.bf16.msra.mxu0 %v2071
      %2102 = vmatprep.subr.bf16.mxu0 0
      %2103 = vmatpush1.bf16.msra.mxu0 0
      %2104 = vmatprep.subr.bf16.mxu0 0
      %2105 = vmatpush1.bf16.msra.mxu0 0
      %2106 = vmatprep.subr.bf16.mxu0 0
      %2107 = vmatpush1.bf16.msra.mxu0 0
      %2108 = vmatprep.subr.bf16.mxu0 0
      %2109 = vmatpush1.bf16.msra.mxu0 0
      %2110 = vmatprep.subr.bf16.mxu0 0
      %2111 = vmatpush1.bf16.msra.mxu0 0
      %2112 = vmatprep.subr.bf16.mxu0 0
      %2113 = vmatpush1.bf16.msra.mxu0 0
      %2114 = vmatprep.mubr.bf16.mxu0 %v267
      %2115 = vmatmul.mubr.bf16.gmra.mrb[0].mxu0 %v202
      %v2116 = vpop.f32.mrb[0].mxu0
      %v2117 = vadd.f32 0.0, %v2116
      %v2118 = vpop.f32.mrb[0].mxu0
      %v2119 = vpop.f32.mrb[0].mxu0
      %v2120 = vadd.f32 0.0, %v2119
      %v2121 = vpop.f32.mrb[0].mxu0
      %2122 = vdwg.mxu0
      %v2124 = vrot.slane %v2117, 3
      %2125 = vrot.lane.b32.xlu0 %v2124, 127
      %v2126 = vpop.permute.xlu0 %2125
      %v2128 = vadd.f32 %v2117, %v2126
      %v2130 = vrot.slane %v2117, 6
      %v2131 = vrot.slane %v2120, 6
      %v2132 = vsel %vm317, %v2130, %v2131
      %2133 = vrot.lane.b32.xlu0 %v2132, 126
      %v2134 = vpop.permute.xlu0 %2133
      %v2136 = vadd.f32 %v2128, %v2134
      %v2137 = vrot.slane %v2120, 1
      %2138 = vrot.lane.b32.xlu0 %v2137, 125
      %v2139 = vpop.permute.xlu0 %2138
      %v2141 = vadd.f32 %v2136, %v2139
      %v2142 = vrot.slane %v2120, 4
      %2143 = vrot.lane.b32.xlu0 %v2142, 124
      %v2144 = vpop.permute.xlu0 %2143
      %v2146 = vadd.f32 %v2141, %v2144
      %s2147 = sadd.s32 %s168, 13
      %s2148 = smul.u32 %s2147, 32
      %s2149 = sshra.s32 %s2148, 3
      %s2150 = sand.u32 %s2148, 7
      %s2151 = smul.addr %s2149, 4
      %s2152 = scalar_lea.vmem %s156, %s2151
      %v2153 = vld [vmem:[%s2152] sm:$0xf]
      %v2154 = vld [vmem:[%s2152 + $0x4] sm:$0xf]
      %v2155 = vld [vmem:[%s2152 + $0x8] sm:$0xf]
      %v2156 = vld [vmem:[%s2152 + $0xc] sm:$0xf]
      %v2157 = vld [vmem:[%s2152 + $0x10] sm:$0xf]
      %v2158 = vld [vmem:[%s2152 + $0x14] sm:$0xf]
      %v2159 = vld [vmem:[%s2152 + $0x18] sm:$0xf]
      %v2160 = vld [vmem:[%s2152 + $0x1c] sm:$0xf]
      %v2161 = vld [vmem:[%s2152 + $0x20] sm:$0xf]
      %v2162 = vld [vmem:[%s2152 + $0x24] sm:$0xf]
      %v2163 = vld [vmem:[%s2152 + $0x28] sm:$0xf]
      %v2164 = vld [vmem:[%s2152 + $0x2c] sm:$0xf]
      %v2165 = vld [vmem:[%s2152 + $0x30] sm:$0xf]
      %v2166 = vld [vmem:[%s2152 + $0x34] sm:$0xf]
      %v2167 = vld [vmem:[%s2152 + $0x38] sm:$0xf]
      %v2168 = vld [vmem:[%s2152 + $0x3c] sm:$0xf]
      %v2169 = vld [vmem:[%s2152 + $0x40] sm:$0xf]
      %v2170 = vld [vmem:[%s2152 + $0x44] sm:$0xf]
      %v2171 = vld [vmem:[%s2152 + $0x48] sm:$0xf]
      %v2172 = vld [vmem:[%s2152 + $0x4c] sm:$0xf]
      %v2193 = vunpack.c.l.b16 %v2153
      %v2194 = vunpack.c.l.b16 %v2154
      %v2195 = vunpack.c.l.b16 %v2155
      %v2196 = vunpack.c.l.b16 %v2156
      %v2197 = vunpack.c.l.b16 %v2157
      %v2198 = vunpack.c.l.b16 %v2158
      %v2199 = vunpack.c.l.b16 %v2159
      %v2200 = vunpack.c.l.b16 %v2160
      %v2201 = vunpack.c.l.b16 %v2161
      %v2202 = vunpack.c.l.b16 %v2162
      %v2203 = vunpack.c.l.b16 %v2163
      %v2204 = vunpack.c.l.b16 %v2164
      %v2205 = vunpack.c.l.b16 %v2165
      %v2206 = vunpack.c.l.b16 %v2166
      %v2207 = vunpack.c.l.b16 %v2167
      %v2208 = vunpack.c.l.b16 %v2168
      %v2209 = vunpack.c.l.b16 %v2169
      %v2210 = vunpack.c.l.b16 %v2170
      %v2211 = vunpack.c.l.b16 %v2171
      %v2212 = vunpack.c.l.b16 %v2172
      %v2213 = vpack.c.b16 %v2194, %v2193
      %v2214 = vpack.c.b16 %v2196, %v2195
      %v2215 = vpack.c.b16 %v2198, %v2197
      %v2216 = vpack.c.b16 %v2200, %v2199
      %v2217 = vpack.c.b16 %v2202, %v2201
      %v2218 = vpack.c.b16 %v2204, %v2203
      %v2219 = vpack.c.b16 %v2206, %v2205
      %v2220 = vpack.c.b16 %v2208, %v2207
      %v2221 = vpack.c.b16 %v2210, %v2209
      %v2222 = vpack.c.b16 %v2212, %v2211
      %2233 = vmatprep.subr.bf16.mxu0 0
      %2234 = vmatpush1.bf16.msra.mxu0 %v2213
      %2235 = vmatprep.subr.bf16.mxu0 0
      %2236 = vmatpush1.bf16.msra.mxu0 %v2214
      %2237 = vmatprep.subr.bf16.mxu0 0
      %2238 = vmatpush1.bf16.msra.mxu0 %v2215
      %2239 = vmatprep.subr.bf16.mxu0 0
      %2240 = vmatpush1.bf16.msra.mxu0 %v2216
      %2241 = vmatprep.subr.bf16.mxu0 0
      %2242 = vmatpush1.bf16.msra.mxu0 %v2217
      %2243 = vmatprep.subr.bf16.mxu0 0
      %2244 = vmatpush1.bf16.msra.mxu0 %v2218
      %2245 = vmatprep.subr.bf16.mxu0 0
      %2246 = vmatpush1.bf16.msra.mxu0 %v2219
      %2247 = vmatprep.subr.bf16.mxu0 0
      %2248 = vmatpush1.bf16.msra.mxu0 %v2220
      %2249 = vmatprep.subr.bf16.mxu0 0
      %2250 = vmatpush1.bf16.msra.mxu0 %v2221
      %2251 = vmatprep.subr.bf16.mxu0 0
      %2252 = vmatpush1.bf16.msra.mxu0 %v2222
      %2253 = vmatprep.subr.bf16.mxu0 0
      %2254 = vmatpush1.bf16.msra.mxu0 0
      %2255 = vmatprep.subr.bf16.mxu0 0
      %2256 = vmatpush1.bf16.msra.mxu0 0
      %2257 = vmatprep.subr.bf16.mxu0 0
      %2258 = vmatpush1.bf16.msra.mxu0 0
      %2259 = vmatprep.subr.bf16.mxu0 0
      %2260 = vmatpush1.bf16.msra.mxu0 0
      %2261 = vmatprep.subr.bf16.mxu0 0
      %2262 = vmatpush1.bf16.msra.mxu0 0
      %2263 = vmatprep.subr.bf16.mxu0 0
      %2264 = vmatpush1.bf16.msra.mxu0 0
      %2265 = vmatprep.mubr.bf16.mxu0 %v267
      %2266 = vmatmul.mubr.bf16.gmra.mrb[0].mxu0 %v202
      %v2267 = vpop.f32.mrb[0].mxu0
      %v2268 = vadd.f32 0.0, %v2267
      %v2269 = vpop.f32.mrb[0].mxu0
      %v2270 = vpop.f32.mrb[0].mxu0
      %v2271 = vadd.f32 0.0, %v2270
      %v2272 = vpop.f32.mrb[0].mxu0
      %2273 = vdwg.mxu0
      %v2275 = vrot.slane %v2268, 3
      %2276 = vrot.lane.b32.xlu0 %v2275, 127
      %v2277 = vpop.permute.xlu0 %2276
      %v2279 = vadd.f32 %v2268, %v2277
      %v2281 = vrot.slane %v2268, 6
      %v2282 = vrot.slane %v2271, 6
      %v2283 = vsel %vm317, %v2281, %v2282
      %2284 = vrot.lane.b32.xlu0 %v2283, 126
      %v2285 = vpop.permute.xlu0 %2284
      %v2287 = vadd.f32 %v2279, %v2285
      %v2288 = vrot.slane %v2271, 1
      %2289 = vrot.lane.b32.xlu0 %v2288, 125
      %v2290 = vpop.permute.xlu0 %2289
      %v2292 = vadd.f32 %v2287, %v2290
      %v2293 = vrot.slane %v2271, 4
      %2294 = vrot.lane.b32.xlu0 %v2293, 124
      %v2295 = vpop.permute.xlu0 %2294
      %v2297 = vadd.f32 %v2292, %v2295
      %s2298 = sadd.s32 %s168, 14
      %s2299 = smul.u32 %s2298, 32
      %s2300 = sshra.s32 %s2299, 3
      %s2301 = sand.u32 %s2299, 7
      %s2302 = smul.addr %s2300, 4
      %s2303 = scalar_lea.vmem %s156, %s2302
      %v2304 = vld [vmem:[%s2303] sm:$0xf]
      %v2305 = vld [vmem:[%s2303 + $0x4] sm:$0xf]
      %v2306 = vld [vmem:[%s2303 + $0x8] sm:$0xf]
      %v2307 = vld [vmem:[%s2303 + $0xc] sm:$0xf]
      %v2308 = vld [vmem:[%s2303 + $0x10] sm:$0xf]
      %v2309 = vld [vmem:[%s2303 + $0x14] sm:$0xf]
      %v2310 = vld [vmem:[%s2303 + $0x18] sm:$0xf]
      %v2311 = vld [vmem:[%s2303 + $0x1c] sm:$0xf]
      %v2312 = vld [vmem:[%s2303 + $0x20] sm:$0xf]
      %v2313 = vld [vmem:[%s2303 + $0x24] sm:$0xf]
      %v2314 = vld [vmem:[%s2303 + $0x28] sm:$0xf]
      %v2315 = vld [vmem:[%s2303 + $0x2c] sm:$0xf]
      %v2316 = vld [vmem:[%s2303 + $0x30] sm:$0xf]
      %v2317 = vld [vmem:[%s2303 + $0x34] sm:$0xf]
      %v2318 = vld [vmem:[%s2303 + $0x38] sm:$0xf]
      %v2319 = vld [vmem:[%s2303 + $0x3c] sm:$0xf]
      %v2320 = vld [vmem:[%s2303 + $0x40] sm:$0xf]
      %v2321 = vld [vmem:[%s2303 + $0x44] sm:$0xf]
      %v2322 = vld [vmem:[%s2303 + $0x48] sm:$0xf]
      %v2323 = vld [vmem:[%s2303 + $0x4c] sm:$0xf]
      %v2344 = vunpack.c.l.b16 %v2304
      %v2345 = vunpack.c.l.b16 %v2305
      %v2346 = vunpack.c.l.b16 %v2306
      %v2347 = vunpack.c.l.b16 %v2307
      %v2348 = vunpack.c.l.b16 %v2308
      %v2349 = vunpack.c.l.b16 %v2309
      %v2350 = vunpack.c.l.b16 %v2310
      %v2351 = vunpack.c.l.b16 %v2311
      %v2352 = vunpack.c.l.b16 %v2312
      %v2353 = vunpack.c.l.b16 %v2313
      %v2354 = vunpack.c.l.b16 %v2314
      %v2355 = vunpack.c.l.b16 %v2315
      %v2356 = vunpack.c.l.b16 %v2316
      %v2357 = vunpack.c.l.b16 %v2317
      %v2358 = vunpack.c.l.b16 %v2318
      %v2359 = vunpack.c.l.b16 %v2319
      %v2360 = vunpack.c.l.b16 %v2320
      %v2361 = vunpack.c.l.b16 %v2321
      %v2362 = vunpack.c.l.b16 %v2322
      %v2363 = vunpack.c.l.b16 %v2323
      %v2364 = vpack.c.b16 %v2345, %v2344
      %v2365 = vpack.c.b16 %v2347, %v2346
      %v2366 = vpack.c.b16 %v2349, %v2348
      %v2367 = vpack.c.b16 %v2351, %v2350
      %v2368 = vpack.c.b16 %v2353, %v2352
      %v2369 = vpack.c.b16 %v2355, %v2354
      %v2370 = vpack.c.b16 %v2357, %v2356
      %v2371 = vpack.c.b16 %v2359, %v2358
      %v2372 = vpack.c.b16 %v2361, %v2360
      %v2373 = vpack.c.b16 %v2363, %v2362
      %2384 = vmatprep.subr.bf16.mxu0 0
      %2385 = vmatpush1.bf16.msra.mxu0 %v2364
      %2386 = vmatprep.subr.bf16.mxu0 0
      %2387 = vmatpush1.bf16.msra.mxu0 %v2365
      %2388 = vmatprep.subr.bf16.mxu0 0
      %2389 = vmatpush1.bf16.msra.mxu0 %v2366
      %2390 = vmatprep.subr.bf16.mxu0 0
      %2391 = vmatpush1.bf16.msra.mxu0 %v2367
      %2392 = vmatprep.subr.bf16.mxu0 0
      %2393 = vmatpush1.bf16.msra.mxu0 %v2368
      %2394 = vmatprep.subr.bf16.mxu0 0
      %2395 = vmatpush1.bf16.msra.mxu0 %v2369
      %2396 = vmatprep.subr.bf16.mxu0 0
      %2397 = vmatpush1.bf16.msra.mxu0 %v2370
      %2398 = vmatprep.subr.bf16.mxu0 0
      %2399 = vmatpush1.bf16.msra.mxu0 %v2371
      %2400 = vmatprep.subr.bf16.mxu0 0
      %2401 = vmatpush1.bf16.msra.mxu0 %v2372
      %2402 = vmatprep.subr.bf16.mxu0 0
      %2403 = vmatpush1.bf16.msra.mxu0 %v2373
      %2404 = vmatprep.subr.bf16.mxu0 0
      %2405 = vmatpush1.bf16.msra.mxu0 0
      %2406 = vmatprep.subr.bf16.mxu0 0
      %2407 = vmatpush1.bf16.msra.mxu0 0
      %2408 = vmatprep.subr.bf16.mxu0 0
      %2409 = vmatpush1.bf16.msra.mxu0 0
      %2410 = vmatprep.subr.bf16.mxu0 0
      %2411 = vmatpush1.bf16.msra.mxu0 0
      %2412 = vmatprep.subr.bf16.mxu0 0
      %2413 = vmatpush1.bf16.msra.mxu0 0
      %2414 = vmatprep.subr.bf16.mxu0 0
      %2415 = vmatpush1.bf16.msra.mxu0 0
      %2416 = vmatprep.mubr.bf16.mxu0 %v267
      %2417 = vmatmul.mubr.bf16.gmra.mrb[0].mxu0 %v202
      %v2418 = vpop.f32.mrb[0].mxu0
      %v2419 = vadd.f32 0.0, %v2418
      %v2420 = vpop.f32.mrb[0].mxu0
      %v2421 = vpop.f32.mrb[0].mxu0
      %v2422 = vadd.f32 0.0, %v2421
      %v2423 = vpop.f32.mrb[0].mxu0
      %2424 = vdwg.mxu0
      %v2426 = vrot.slane %v2419, 3
      %2427 = vrot.lane.b32.xlu0 %v2426, 127
      %v2428 = vpop.permute.xlu0 %2427
      %v2430 = vadd.f32 %v2419, %v2428
      %v2432 = vrot.slane %v2419, 6
      %v2433 = vrot.slane %v2422, 6
      %v2434 = vsel %vm317, %v2432, %v2433
      %2435 = vrot.lane.b32.xlu0 %v2434, 126
      %v2436 = vpop.permute.xlu0 %2435
      %v2438 = vadd.f32 %v2430, %v2436
      %v2439 = vrot.slane %v2422, 1
      %2440 = vrot.lane.b32.xlu0 %v2439, 125
      %v2441 = vpop.permute.xlu0 %2440
      %v2443 = vadd.f32 %v2438, %v2441
      %v2444 = vrot.slane %v2422, 4
      %2445 = vrot.lane.b32.xlu0 %v2444, 124
      %v2446 = vpop.permute.xlu0 %2445
      %v2448 = vadd.f32 %v2443, %v2446
      %s2449 = sadd.s32 %s168, 15
      %s2450 = smul.u32 %s2449, 32
      %s2451 = sshra.s32 %s2450, 3
      %s2452 = sand.u32 %s2450, 7
      %s2453 = smul.addr %s2451, 4
      %s2454 = scalar_lea.vmem %s156, %s2453
      %v2455 = vld [vmem:[%s2454] sm:$0xf]
      %v2456 = vld [vmem:[%s2454 + $0x4] sm:$0xf]
      %v2457 = vld [vmem:[%s2454 + $0x8] sm:$0xf]
      %v2458 = vld [vmem:[%s2454 + $0xc] sm:$0xf]
      %v2459 = vld [vmem:[%s2454 + $0x10] sm:$0xf]
      %v2460 = vld [vmem:[%s2454 + $0x14] sm:$0xf]
      %v2461 = vld [vmem:[%s2454 + $0x18] sm:$0xf]
      %v2462 = vld [vmem:[%s2454 + $0x1c] sm:$0xf]
      %v2463 = vld [vmem:[%s2454 + $0x20] sm:$0xf]
      %v2464 = vld [vmem:[%s2454 + $0x24] sm:$0xf]
      %v2465 = vld [vmem:[%s2454 + $0x28] sm:$0xf]
      %v2466 = vld [vmem:[%s2454 + $0x2c] sm:$0xf]
      %v2467 = vld [vmem:[%s2454 + $0x30] sm:$0xf]
      %v2468 = vld [vmem:[%s2454 + $0x34] sm:$0xf]
      %v2469 = vld [vmem:[%s2454 + $0x38] sm:$0xf]
      %v2470 = vld [vmem:[%s2454 + $0x3c] sm:$0xf]
      %v2471 = vld [vmem:[%s2454 + $0x40] sm:$0xf]
      %v2472 = vld [vmem:[%s2454 + $0x44] sm:$0xf]
      %v2473 = vld [vmem:[%s2454 + $0x48] sm:$0xf]
      %v2474 = vld [vmem:[%s2454 + $0x4c] sm:$0xf]
      %v2495 = vunpack.c.l.b16 %v2455
      %v2496 = vunpack.c.l.b16 %v2456
      %v2497 = vunpack.c.l.b16 %v2457
      %v2498 = vunpack.c.l.b16 %v2458
      %v2499 = vunpack.c.l.b16 %v2459
      %v2500 = vunpack.c.l.b16 %v2460
      %v2501 = vunpack.c.l.b16 %v2461
      %v2502 = vunpack.c.l.b16 %v2462
      %v2503 = vunpack.c.l.b16 %v2463
      %v2504 = vunpack.c.l.b16 %v2464
      %v2505 = vunpack.c.l.b16 %v2465
      %v2506 = vunpack.c.l.b16 %v2466
      %v2507 = vunpack.c.l.b16 %v2467
      %v2508 = vunpack.c.l.b16 %v2468
      %v2509 = vunpack.c.l.b16 %v2469
      %v2510 = vunpack.c.l.b16 %v2470
      %v2511 = vunpack.c.l.b16 %v2471
      %v2512 = vunpack.c.l.b16 %v2472
      %v2513 = vunpack.c.l.b16 %v2473
      %v2514 = vunpack.c.l.b16 %v2474
      %v2515 = vpack.c.b16 %v2496, %v2495
      %v2516 = vpack.c.b16 %v2498, %v2497
      %v2517 = vpack.c.b16 %v2500, %v2499
      %v2518 = vpack.c.b16 %v2502, %v2501
      %v2519 = vpack.c.b16 %v2504, %v2503
      %v2520 = vpack.c.b16 %v2506, %v2505
      %v2521 = vpack.c.b16 %v2508, %v2507
      %v2522 = vpack.c.b16 %v2510, %v2509
      %v2523 = vpack.c.b16 %v2512, %v2511
      %v2524 = vpack.c.b16 %v2514, %v2513
      %2535 = vmatprep.subr.bf16.mxu0 0
      %2536 = vmatpush1.bf16.msra.mxu0 %v2515
      %2537 = vmatprep.subr.bf16.mxu0 0
      %2538 = vmatpush1.bf16.msra.mxu0 %v2516
      %2539 = vmatprep.subr.bf16.mxu0 0
      %2540 = vmatpush1.bf16.msra.mxu0 %v2517
      %2541 = vmatprep.subr.bf16.mxu0 0
      %2542 = vmatpush1.bf16.msra.mxu0 %v2518
      %2543 = vmatprep.subr.bf16.mxu0 0
      %2544 = vmatpush1.bf16.msra.mxu0 %v2519
      %2545 = vmatprep.subr.bf16.mxu0 0
      %2546 = vmatpush1.bf16.msra.mxu0 %v2520
      %2547 = vmatprep.subr.bf16.mxu0 0
      %2548 = vmatpush1.bf16.msra.mxu0 %v2521
      %2549 = vmatprep.subr.bf16.mxu0 0
      %2550 = vmatpush1.bf16.msra.mxu0 %v2522
      %2551 = vmatprep.subr.bf16.mxu0 0
      %2552 = vmatpush1.bf16.msra.mxu0 %v2523
      %2553 = vmatprep.subr.bf16.mxu0 0
      %2554 = vmatpush1.bf16.msra.mxu0 %v2524
      %2555 = vmatprep.subr.bf16.mxu0 0
      %2556 = vmatpush1.bf16.msra.mxu0 0
      %2557 = vmatprep.subr.bf16.mxu0 0
      %2558 = vmatpush1.bf16.msra.mxu0 0
      %2559 = vmatprep.subr.bf16.mxu0 0
      %2560 = vmatpush1.bf16.msra.mxu0 0
      %2561 = vmatprep.subr.bf16.mxu0 0
      %2562 = vmatpush1.bf16.msra.mxu0 0
      %2563 = vmatprep.subr.bf16.mxu0 0
      %2564 = vmatpush1.bf16.msra.mxu0 0
      %2565 = vmatprep.subr.bf16.mxu0 0
      %2566 = vmatpush1.bf16.msra.mxu0 0
      %2567 = vmatprep.mubr.bf16.mxu0 %v267
      %2568 = vmatmul.mubr.bf16.gmra.mrb[0].mxu0 %v202
      %v2569 = vpop.f32.mrb[0].mxu0
      %v2570 = vadd.f32 0.0, %v2569
      %v2571 = vpop.f32.mrb[0].mxu0
      %v2572 = vpop.f32.mrb[0].mxu0
      %v2573 = vadd.f32 0.0, %v2572
      %v2574 = vpop.f32.mrb[0].mxu0
      %2575 = vdwg.mxu0
      %v2577 = vrot.slane %v2570, 3
      %2578 = vrot.lane.b32.xlu0 %v2577, 127
      %v2579 = vpop.permute.xlu0 %2578
      %v2581 = vadd.f32 %v2570, %v2579
      %v2583 = vrot.slane %v2570, 6
      %v2584 = vrot.slane %v2573, 6
      %v2585 = vsel %vm317, %v2583, %v2584
      %2586 = vrot.lane.b32.xlu0 %v2585, 126
      %v2587 = vpop.permute.xlu0 %2586
      %v2589 = vadd.f32 %v2581, %v2587
      %v2590 = vrot.slane %v2573, 1
      %2591 = vrot.lane.b32.xlu0 %v2590, 125
      %v2592 = vpop.permute.xlu0 %2591
      %v2594 = vadd.f32 %v2589, %v2592
      %v2595 = vrot.slane %v2573, 4
      %2596 = vrot.lane.b32.xlu0 %v2595, 124
      %v2597 = vpop.permute.xlu0 %2596
      %v2599 = vadd.f32 %v2594, %v2597
      %s2600 = sadd.s32 %s168, 16
      %s2601 = smul.u32 %s2600, 32
      %s2602 = sshra.s32 %s2601, 3
      %s2603 = sand.u32 %s2601, 7
      %s2604 = smul.addr %s2602, 4
      %s2605 = scalar_lea.vmem %s156, %s2604
      %v2606 = vld [vmem:[%s2605] sm:$0xf]
      %v2607 = vld [vmem:[%s2605 + $0x4] sm:$0xf]
      %v2608 = vld [vmem:[%s2605 + $0x8] sm:$0xf]
      %v2609 = vld [vmem:[%s2605 + $0xc] sm:$0xf]
      %v2610 = vld [vmem:[%s2605 + $0x10] sm:$0xf]
      %v2611 = vld [vmem:[%s2605 + $0x14] sm:$0xf]
      %v2612 = vld [vmem:[%s2605 + $0x18] sm:$0xf]
      %v2613 = vld [vmem:[%s2605 + $0x1c] sm:$0xf]
      %v2614 = vld [vmem:[%s2605 + $0x20] sm:$0xf]
      %v2615 = vld [vmem:[%s2605 + $0x24] sm:$0xf]
      %v2616 = vld [vmem:[%s2605 + $0x28] sm:$0xf]
      %v2617 = vld [vmem:[%s2605 + $0x2c] sm:$0xf]
      %v2618 = vld [vmem:[%s2605 + $0x30] sm:$0xf]
      %v2619 = vld [vmem:[%s2605 + $0x34] sm:$0xf]
      %v2620 = vld [vmem:[%s2605 + $0x38] sm:$0xf]
      %v2621 = vld [vmem:[%s2605 + $0x3c] sm:$0xf]
      %v2622 = vld [vmem:[%s2605 + $0x40] sm:$0xf]
      %v2623 = vld [vmem:[%s2605 + $0x44] sm:$0xf]
      %v2624 = vld [vmem:[%s2605 + $0x48] sm:$0xf]
      %v2625 = vld [vmem:[%s2605 + $0x4c] sm:$0xf]
      %v2646 = vunpack.c.l.b16 %v2606
      %v2647 = vunpack.c.l.b16 %v2607
      %v2648 = vunpack.c.l.b16 %v2608
      %v2649 = vunpack.c.l.b16 %v2609
      %v2650 = vunpack.c.l.b16 %v2610
      %v2651 = vunpack.c.l.b16 %v2611
      %v2652 = vunpack.c.l.b16 %v2612
      %v2653 = vunpack.c.l.b16 %v2613
      %v2654 = vunpack.c.l.b16 %v2614
      %v2655 = vunpack.c.l.b16 %v2615
      %v2656 = vunpack.c.l.b16 %v2616
      %v2657 = vunpack.c.l.b16 %v2617
      %v2658 = vunpack.c.l.b16 %v2618
      %v2659 = vunpack.c.l.b16 %v2619
      %v2660 = vunpack.c.l.b16 %v2620
      %v2661 = vunpack.c.l.b16 %v2621
      %v2662 = vunpack.c.l.b16 %v2622
      %v2663 = vunpack.c.l.b16 %v2623
      %v2664 = vunpack.c.l.b16 %v2624
      %v2665 = vunpack.c.l.b16 %v2625
      %v2666 = vpack.c.b16 %v2647, %v2646
      %v2667 = vpack.c.b16 %v2649, %v2648
      %v2668 = vpack.c.b16 %v2651, %v2650
      %v2669 = vpack.c.b16 %v2653, %v2652
      %v2670 = vpack.c.b16 %v2655, %v2654
      %v2671 = vpack.c.b16 %v2657, %v2656
      %v2672 = vpack.c.b16 %v2659, %v2658
      %v2673 = vpack.c.b16 %v2661, %v2660
      %v2674 = vpack.c.b16 %v2663, %v2662
      %v2675 = vpack.c.b16 %v2665, %v2664
      %2686 = vmatprep.subr.bf16.mxu0 0
      %2687 = vmatpush1.bf16.msra.mxu0 %v2666
      %2688 = vmatprep.subr.bf16.mxu0 0
      %2689 = vmatpush1.bf16.msra.mxu0 %v2667
      %2690 = vmatprep.subr.bf16.mxu0 0
      %2691 = vmatpush1.bf16.msra.mxu0 %v2668
      %2692 = vmatprep.subr.bf16.mxu0 0
      %2693 = vmatpush1.bf16.msra.mxu0 %v2669
      %2694 = vmatprep.subr.bf16.mxu0 0
      %2695 = vmatpush1.bf16.msra.mxu0 %v2670
      %2696 = vmatprep.subr.bf16.mxu0 0
      %2697 = vmatpush1.bf16.msra.mxu0 %v2671
      %2698 = vmatprep.subr.bf16.mxu0 0
      %2699 = vmatpush1.bf16.msra.mxu0 %v2672
      %2700 = vmatprep.subr.bf16.mxu0 0
      %2701 = vmatpush1.bf16.msra.mxu0 %v2673
      %2702 = vmatprep.subr.bf16.mxu0 0
      %2703 = vmatpush1.bf16.msra.mxu0 %v2674
      %2704 = vmatprep.subr.bf16.mxu0 0
      %2705 = vmatpush1.bf16.msra.mxu0 %v2675
      %2706 = vmatprep.subr.bf16.mxu0 0
      %2707 = vmatpush1.bf16.msra.mxu0 0
      %2708 = vmatprep.subr.bf16.mxu0 0
      %2709 = vmatpush1.bf16.msra.mxu0 0
      %2710 = vmatprep.subr.bf16.mxu0 0
      %2711 = vmatpush1.bf16.msra.mxu0 0
      %2712 = vmatprep.subr.bf16.mxu0 0
      %2713 = vmatpush1.bf16.msra.mxu0 0
      %2714 = vmatprep.subr.bf16.mxu0 0
      %2715 = vmatpush1.bf16.msra.mxu0 0
      %2716 = vmatprep.subr.bf16.mxu0 0
      %2717 = vmatpush1.bf16.msra.mxu0 0
      %2718 = vmatprep.mubr.bf16.mxu0 %v267
      %2719 = vmatmul.mubr.bf16.gmra.mrb[0].mxu0 %v202
      %v2720 = vpop.f32.mrb[0].mxu0
      %v2721 = vadd.f32 0.0, %v2720
      %v2722 = vpop.f32.mrb[0].mxu0
      %v2723 = vpop.f32.mrb[0].mxu0
      %v2724 = vadd.f32 0.0, %v2723
      %v2725 = vpop.f32.mrb[0].mxu0
      %2726 = vdwg.mxu0
      %v2728 = vrot.slane %v2721, 3
      %2729 = vrot.lane.b32.xlu0 %v2728, 127
      %v2730 = vpop.permute.xlu0 %2729
      %v2732 = vadd.f32 %v2721, %v2730
      %v2734 = vrot.slane %v2721, 6
      %v2735 = vrot.slane %v2724, 6
      %v2736 = vsel %vm317, %v2734, %v2735
      %2737 = vrot.lane.b32.xlu0 %v2736, 126
      %v2738 = vpop.permute.xlu0 %2737
      %v2740 = vadd.f32 %v2732, %v2738
      %v2741 = vrot.slane %v2724, 1
      %2742 = vrot.lane.b32.xlu0 %v2741, 125
      %v2743 = vpop.permute.xlu0 %2742
      %v2745 = vadd.f32 %v2740, %v2743
      %v2746 = vrot.slane %v2724, 4
      %2747 = vrot.lane.b32.xlu0 %v2746, 124
      %v2748 = vpop.permute.xlu0 %2747
      %v2750 = vadd.f32 %v2745, %v2748
      %s2751 = sadd.s32 %s168, 17
      %s2752 = smul.u32 %s2751, 32
      %s2753 = sshra.s32 %s2752, 3
      %s2754 = sand.u32 %s2752, 7
      %s2755 = smul.addr %s2753, 4
      %s2756 = scalar_lea.vmem %s156, %s2755
      %v2757 = vld [vmem:[%s2756] sm:$0xf]
      %v2758 = vld [vmem:[%s2756 + $0x4] sm:$0xf]
      %v2759 = vld [vmem:[%s2756 + $0x8] sm:$0xf]
      %v2760 = vld [vmem:[%s2756 + $0xc] sm:$0xf]
      %v2761 = vld [vmem:[%s2756 + $0x10] sm:$0xf]
      %v2762 = vld [vmem:[%s2756 + $0x14] sm:$0xf]
      %v2763 = vld [vmem:[%s2756 + $0x18] sm:$0xf]
      %v2764 = vld [vmem:[%s2756 + $0x1c] sm:$0xf]
      %v2765 = vld [vmem:[%s2756 + $0x20] sm:$0xf]
      %v2766 = vld [vmem:[%s2756 + $0x24] sm:$0xf]
      %v2767 = vld [vmem:[%s2756 + $0x28] sm:$0xf]
      %v2768 = vld [vmem:[%s2756 + $0x2c] sm:$0xf]
      %v2769 = vld [vmem:[%s2756 + $0x30] sm:$0xf]
      %v2770 = vld [vmem:[%s2756 + $0x34] sm:$0xf]
      %v2771 = vld [vmem:[%s2756 + $0x38] sm:$0xf]
      %v2772 = vld [vmem:[%s2756 + $0x3c] sm:$0xf]
      %v2773 = vld [vmem:[%s2756 + $0x40] sm:$0xf]
      %v2774 = vld [vmem:[%s2756 + $0x44] sm:$0xf]
      %v2775 = vld [vmem:[%s2756 + $0x48] sm:$0xf]
      %v2776 = vld [vmem:[%s2756 + $0x4c] sm:$0xf]
      %v2797 = vunpack.c.l.b16 %v2757
      %v2798 = vunpack.c.l.b16 %v2758
      %v2799 = vunpack.c.l.b16 %v2759
      %v2800 = vunpack.c.l.b16 %v2760
      %v2801 = vunpack.c.l.b16 %v2761
      %v2802 = vunpack.c.l.b16 %v2762
      %v2803 = vunpack.c.l.b16 %v2763
      %v2804 = vunpack.c.l.b16 %v2764
      %v2805 = vunpack.c.l.b16 %v2765
      %v2806 = vunpack.c.l.b16 %v2766
      %v2807 = vunpack.c.l.b16 %v2767
      %v2808 = vunpack.c.l.b16 %v2768
      %v2809 = vunpack.c.l.b16 %v2769
      %v2810 = vunpack.c.l.b16 %v2770
      %v2811 = vunpack.c.l.b16 %v2771
      %v2812 = vunpack.c.l.b16 %v2772
      %v2813 = vunpack.c.l.b16 %v2773
      %v2814 = vunpack.c.l.b16 %v2774
      %v2815 = vunpack.c.l.b16 %v2775
      %v2816 = vunpack.c.l.b16 %v2776
      %v2817 = vpack.c.b16 %v2798, %v2797
      %v2818 = vpack.c.b16 %v2800, %v2799
      %v2819 = vpack.c.b16 %v2802, %v2801
      %v2820 = vpack.c.b16 %v2804, %v2803
      %v2821 = vpack.c.b16 %v2806, %v2805
      %v2822 = vpack.c.b16 %v2808, %v2807
      %v2823 = vpack.c.b16 %v2810, %v2809
      %v2824 = vpack.c.b16 %v2812, %v2811
      %v2825 = vpack.c.b16 %v2814, %v2813
      %v2826 = vpack.c.b16 %v2816, %v2815
      %2837 = vmatprep.subr.bf16.mxu0 0
      %2838 = vmatpush1.bf16.msra.mxu0 %v2817
      %2839 = vmatprep.subr.bf16.mxu0 0
      %2840 = vmatpush1.bf16.msra.mxu0 %v2818
      %2841 = vmatprep.subr.bf16.mxu0 0
      %2842 = vmatpush1.bf16.msra.mxu0 %v2819
      %2843 = vmatprep.subr.bf16.mxu0 0
      %2844 = vmatpush1.bf16.msra.mxu0 %v2820
      %2845 = vmatprep.subr.bf16.mxu0 0
      %2846 = vmatpush1.bf16.msra.mxu0 %v2821
      %2847 = vmatprep.subr.bf16.mxu0 0
      %2848 = vmatpush1.bf16.msra.mxu0 %v2822
      %2849 = vmatprep.subr.bf16.mxu0 0
      %2850 = vmatpush1.bf16.msra.mxu0 %v2823
      %2851 = vmatprep.subr.bf16.mxu0 0
      %2852 = vmatpush1.bf16.msra.mxu0 %v2824
      %2853 = vmatprep.subr.bf16.mxu0 0
      %2854 = vmatpush1.bf16.msra.mxu0 %v2825
      %2855 = vmatprep.subr.bf16.mxu0 0
      %2856 = vmatpush1.bf16.msra.mxu0 %v2826
      %2857 = vmatprep.subr.bf16.mxu0 0
      %2858 = vmatpush1.bf16.msra.mxu0 0
      %2859 = vmatprep.subr.bf16.mxu0 0
      %2860 = vmatpush1.bf16.msra.mxu0 0
      %2861 = vmatprep.subr.bf16.mxu0 0
      %2862 = vmatpush1.bf16.msra.mxu0 0
      %2863 = vmatprep.subr.bf16.mxu0 0
      %2864 = vmatpush1.bf16.msra.mxu0 0
      %2865 = vmatprep.subr.bf16.mxu0 0
      %2866 = vmatpush1.bf16.msra.mxu0 0
      %2867 = vmatprep.subr.bf16.mxu0 0
      %2868 = vmatpush1.bf16.msra.mxu0 0
      %2869 = vmatprep.mubr.bf16.mxu0 %v267
      %2870 = vmatmul.mubr.bf16.gmra.mrb[0].mxu0 %v202
      %v2871 = vpop.f32.mrb[0].mxu0
      %v2872 = vadd.f32 0.0, %v2871
      %v2873 = vpop.f32.mrb[0].mxu0
      %v2874 = vpop.f32.mrb[0].mxu0
      %v2875 = vadd.f32 0.0, %v2874
      %v2876 = vpop.f32.mrb[0].mxu0
      %2877 = vdwg.mxu0
      %v2879 = vrot.slane %v2872, 3
      %2880 = vrot.lane.b32.xlu0 %v2879, 127
      %v2881 = vpop.permute.xlu0 %2880
      %v2883 = vadd.f32 %v2872, %v2881
      %v2885 = vrot.slane %v2872, 6
      %v2886 = vrot.slane %v2875, 6
      %v2887 = vsel %vm317, %v2885, %v2886
      %2888 = vrot.lane.b32.xlu0 %v2887, 126
      %v2889 = vpop.permute.xlu0 %2888
      %v2891 = vadd.f32 %v2883, %v2889
      %v2892 = vrot.slane %v2875, 1
      %2893 = vrot.lane.b32.xlu0 %v2892, 125
      %v2894 = vpop.permute.xlu0 %2893
      %v2896 = vadd.f32 %v2891, %v2894
      %v2897 = vrot.slane %v2875, 4
      %2898 = vrot.lane.b32.xlu0 %v2897, 124
      %v2899 = vpop.permute.xlu0 %2898
      %v2901 = vadd.f32 %v2896, %v2899
      %s2902 = sadd.s32 %s168, 18
      %s2903 = smul.u32 %s2902, 32
      %s2904 = sshra.s32 %s2903, 3
      %s2905 = sand.u32 %s2903, 7
      %s2906 = smul.addr %s2904, 4
      %s2907 = scalar_lea.vmem %s156, %s2906
      %v2908 = vld [vmem:[%s2907] sm:$0xf]
      %v2909 = vld [vmem:[%s2907 + $0x4] sm:$0xf]
      %v2910 = vld [vmem:[%s2907 + $0x8] sm:$0xf]
      %v2911 = vld [vmem:[%s2907 + $0xc] sm:$0xf]
      %v2912 = vld [vmem:[%s2907 + $0x10] sm:$0xf]
      %v2913 = vld [vmem:[%s2907 + $0x14] sm:$0xf]
      %v2914 = vld [vmem:[%s2907 + $0x18] sm:$0xf]
      %v2915 = vld [vmem:[%s2907 + $0x1c] sm:$0xf]
      %v2916 = vld [vmem:[%s2907 + $0x20] sm:$0xf]
      %v2917 = vld [vmem:[%s2907 + $0x24] sm:$0xf]
      %v2918 = vld [vmem:[%s2907 + $0x28] sm:$0xf]
      %v2919 = vld [vmem:[%s2907 + $0x2c] sm:$0xf]
      %v2920 = vld [vmem:[%s2907 + $0x30] sm:$0xf]
      %v2921 = vld [vmem:[%s2907 + $0x34] sm:$0xf]
      %v2922 = vld [vmem:[%s2907 + $0x38] sm:$0xf]
      %v2923 = vld [vmem:[%s2907 + $0x3c] sm:$0xf]
      %v2924 = vld [vmem:[%s2907 + $0x40] sm:$0xf]
      %v2925 = vld [vmem:[%s2907 + $0x44] sm:$0xf]
      %v2926 = vld [vmem:[%s2907 + $0x48] sm:$0xf]
      %v2927 = vld [vmem:[%s2907 + $0x4c] sm:$0xf]
      %v2948 = vunpack.c.l.b16 %v2908
      %v2949 = vunpack.c.l.b16 %v2909
      %v2950 = vunpack.c.l.b16 %v2910
      %v2951 = vunpack.c.l.b16 %v2911
      %v2952 = vunpack.c.l.b16 %v2912
      %v2953 = vunpack.c.l.b16 %v2913
      %v2954 = vunpack.c.l.b16 %v2914
      %v2955 = vunpack.c.l.b16 %v2915
      %v2956 = vunpack.c.l.b16 %v2916
      %v2957 = vunpack.c.l.b16 %v2917
      %v2958 = vunpack.c.l.b16 %v2918
      %v2959 = vunpack.c.l.b16 %v2919
      %v2960 = vunpack.c.l.b16 %v2920
      %v2961 = vunpack.c.l.b16 %v2921
      %v2962 = vunpack.c.l.b16 %v2922
      %v2963 = vunpack.c.l.b16 %v2923
      %v2964 = vunpack.c.l.b16 %v2924
      %v2965 = vunpack.c.l.b16 %v2925
      %v2966 = vunpack.c.l.b16 %v2926
      %v2967 = vunpack.c.l.b16 %v2927
      %v2968 = vpack.c.b16 %v2949, %v2948
      %v2969 = vpack.c.b16 %v2951, %v2950
      %v2970 = vpack.c.b16 %v2953, %v2952
      %v2971 = vpack.c.b16 %v2955, %v2954
      %v2972 = vpack.c.b16 %v2957, %v2956
      %v2973 = vpack.c.b16 %v2959, %v2958
      %v2974 = vpack.c.b16 %v2961, %v2960
      %v2975 = vpack.c.b16 %v2963, %v2962
      %v2976 = vpack.c.b16 %v2965, %v2964
      %v2977 = vpack.c.b16 %v2967, %v2966
      %2988 = vmatprep.subr.bf16.mxu0 0
      %2989 = vmatpush1.bf16.msra.mxu0 %v2968
      %2990 = vmatprep.subr.bf16.mxu0 0
      %2991 = vmatpush1.bf16.msra.mxu0 %v2969
      %2992 = vmatprep.subr.bf16.mxu0 0
      %2993 = vmatpush1.bf16.msra.mxu0 %v2970
      %2994 = vmatprep.subr.bf16.mxu0 0
      %2995 = vmatpush1.bf16.msra.mxu0 %v2971
      %2996 = vmatprep.subr.bf16.mxu0 0
      %2997 = vmatpush1.bf16.msra.mxu0 %v2972
      %2998 = vmatprep.subr.bf16.mxu0 0
      %2999 = vmatpush1.bf16.msra.mxu0 %v2973
      %3000 = vmatprep.subr.bf16.mxu0 0
      %3001 = vmatpush1.bf16.msra.mxu0 %v2974
      %3002 = vmatprep.subr.bf16.mxu0 0
      %3003 = vmatpush1.bf16.msra.mxu0 %v2975
      %3004 = vmatprep.subr.bf16.mxu0 0
      %3005 = vmatpush1.bf16.msra.mxu0 %v2976
      %3006 = vmatprep.subr.bf16.mxu0 0
      %3007 = vmatpush1.bf16.msra.mxu0 %v2977
      %3008 = vmatprep.subr.bf16.mxu0 0
      %3009 = vmatpush1.bf16.msra.mxu0 0
      %3010 = vmatprep.subr.bf16.mxu0 0
      %3011 = vmatpush1.bf16.msra.mxu0 0
      %3012 = vmatprep.subr.bf16.mxu0 0
      %3013 = vmatpush1.bf16.msra.mxu0 0
      %3014 = vmatprep.subr.bf16.mxu0 0
      %3015 = vmatpush1.bf16.msra.mxu0 0
      %3016 = vmatprep.subr.bf16.mxu0 0
      %3017 = vmatpush1.bf16.msra.mxu0 0
      %3018 = vmatprep.subr.bf16.mxu0 0
      %3019 = vmatpush1.bf16.msra.mxu0 0
      %3020 = vmatprep.mubr.bf16.mxu0 %v267
      %3021 = vmatmul.mubr.bf16.gmra.mrb[0].mxu0 %v202
      %v3022 = vpop.f32.mrb[0].mxu0
      %v3023 = vadd.f32 0.0, %v3022
      %v3024 = vpop.f32.mrb[0].mxu0
      %v3025 = vpop.f32.mrb[0].mxu0
      %v3026 = vadd.f32 0.0, %v3025
      %v3027 = vpop.f32.mrb[0].mxu0
      %3028 = vdwg.mxu0
      %v3030 = vrot.slane %v3023, 3
      %3031 = vrot.lane.b32.xlu0 %v3030, 127
      %v3032 = vpop.permute.xlu0 %3031
      %v3034 = vadd.f32 %v3023, %v3032
      %v3036 = vrot.slane %v3023, 6
      %v3037 = vrot.slane %v3026, 6
      %v3038 = vsel %vm317, %v3036, %v3037
      %3039 = vrot.lane.b32.xlu0 %v3038, 126
      %v3040 = vpop.permute.xlu0 %3039
      %v3042 = vadd.f32 %v3034, %v3040
      %v3043 = vrot.slane %v3026, 1
      %3044 = vrot.lane.b32.xlu0 %v3043, 125
      %v3045 = vpop.permute.xlu0 %3044
      %v3047 = vadd.f32 %v3042, %v3045
      %v3048 = vrot.slane %v3026, 4
      %3049 = vrot.lane.b32.xlu0 %v3048, 124
      %v3050 = vpop.permute.xlu0 %3049
      %v3052 = vadd.f32 %v3047, %v3050
      %s3053 = sadd.s32 %s168, 19
      %s3054 = smul.u32 %s3053, 32
      %s3055 = sshra.s32 %s3054, 3
      %s3056 = sand.u32 %s3054, 7
      %s3057 = smul.addr %s3055, 4
      %s3058 = scalar_lea.vmem %s156, %s3057
      %v3059 = vld [vmem:[%s3058] sm:$0xf]
      %v3060 = vld [vmem:[%s3058 + $0x4] sm:$0xf]
      %v3061 = vld [vmem:[%s3058 + $0x8] sm:$0xf]
      %v3062 = vld [vmem:[%s3058 + $0xc] sm:$0xf]
      %v3063 = vld [vmem:[%s3058 + $0x10] sm:$0xf]
      %v3064 = vld [vmem:[%s3058 + $0x14] sm:$0xf]
      %v3065 = vld [vmem:[%s3058 + $0x18] sm:$0xf]
      %v3066 = vld [vmem:[%s3058 + $0x1c] sm:$0xf]
      %v3067 = vld [vmem:[%s3058 + $0x20] sm:$0xf]
      %v3068 = vld [vmem:[%s3058 + $0x24] sm:$0xf]
      %v3069 = vld [vmem:[%s3058 + $0x28] sm:$0xf]
      %v3070 = vld [vmem:[%s3058 + $0x2c] sm:$0xf]
      %v3071 = vld [vmem:[%s3058 + $0x30] sm:$0xf]
      %v3072 = vld [vmem:[%s3058 + $0x34] sm:$0xf]
      %v3073 = vld [vmem:[%s3058 + $0x38] sm:$0xf]
      %v3074 = vld [vmem:[%s3058 + $0x3c] sm:$0xf]
      %v3075 = vld [vmem:[%s3058 + $0x40] sm:$0xf]
      %v3076 = vld [vmem:[%s3058 + $0x44] sm:$0xf]
      %v3077 = vld [vmem:[%s3058 + $0x48] sm:$0xf]
      %v3078 = vld [vmem:[%s3058 + $0x4c] sm:$0xf]
      %v3099 = vunpack.c.l.b16 %v3059
      %v3100 = vunpack.c.l.b16 %v3060
      %v3101 = vunpack.c.l.b16 %v3061
      %v3102 = vunpack.c.l.b16 %v3062
      %v3103 = vunpack.c.l.b16 %v3063
      %v3104 = vunpack.c.l.b16 %v3064
      %v3105 = vunpack.c.l.b16 %v3065
      %v3106 = vunpack.c.l.b16 %v3066
      %v3107 = vunpack.c.l.b16 %v3067
      %v3108 = vunpack.c.l.b16 %v3068
      %v3109 = vunpack.c.l.b16 %v3069
      %v3110 = vunpack.c.l.b16 %v3070
      %v3111 = vunpack.c.l.b16 %v3071
      %v3112 = vunpack.c.l.b16 %v3072
      %v3113 = vunpack.c.l.b16 %v3073
      %v3114 = vunpack.c.l.b16 %v3074
      %v3115 = vunpack.c.l.b16 %v3075
      %v3116 = vunpack.c.l.b16 %v3076
      %v3117 = vunpack.c.l.b16 %v3077
      %v3118 = vunpack.c.l.b16 %v3078
      %v3119 = vpack.c.b16 %v3100, %v3099
      %v3120 = vpack.c.b16 %v3102, %v3101
      %v3121 = vpack.c.b16 %v3104, %v3103
      %v3122 = vpack.c.b16 %v3106, %v3105
      %v3123 = vpack.c.b16 %v3108, %v3107
      %v3124 = vpack.c.b16 %v3110, %v3109
      %v3125 = vpack.c.b16 %v3112, %v3111
      %v3126 = vpack.c.b16 %v3114, %v3113
      %v3127 = vpack.c.b16 %v3116, %v3115
      %v3128 = vpack.c.b16 %v3118, %v3117
      %3139 = vmatprep.subr.bf16.mxu0 0
      %3140 = vmatpush1.bf16.msra.mxu0 %v3119
      %3141 = vmatprep.subr.bf16.mxu0 0
      %3142 = vmatpush1.bf16.msra.mxu0 %v3120
      %3143 = vmatprep.subr.bf16.mxu0 0
      %3144 = vmatpush1.bf16.msra.mxu0 %v3121
      %3145 = vmatprep.subr.bf16.mxu0 0
      %3146 = vmatpush1.bf16.msra.mxu0 %v3122
      %3147 = vmatprep.subr.bf16.mxu0 0
      %3148 = vmatpush1.bf16.msra.mxu0 %v3123
      %3149 = vmatprep.subr.bf16.mxu0 0
      %3150 = vmatpush1.bf16.msra.mxu0 %v3124
      %3151 = vmatprep.subr.bf16.mxu0 0
      %3152 = vmatpush1.bf16.msra.mxu0 %v3125
      %3153 = vmatprep.subr.bf16.mxu0 0
      %3154 = vmatpush1.bf16.msra.mxu0 %v3126
      %3155 = vmatprep.subr.bf16.mxu0 0
      %3156 = vmatpush1.bf16.msra.mxu0 %v3127
      %3157 = vmatprep.subr.bf16.mxu0 0
      %3158 = vmatpush1.bf16.msra.mxu0 %v3128
      %3159 = vmatprep.subr.bf16.mxu0 0
      %3160 = vmatpush1.bf16.msra.mxu0 0
      %3161 = vmatprep.subr.bf16.mxu0 0
      %3162 = vmatpush1.bf16.msra.mxu0 0
      %3163 = vmatprep.subr.bf16.mxu0 0
      %3164 = vmatpush1.bf16.msra.mxu0 0
      %3165 = vmatprep.subr.bf16.mxu0 0
      %3166 = vmatpush1.bf16.msra.mxu0 0
      %3167 = vmatprep.subr.bf16.mxu0 0
      %3168 = vmatpush1.bf16.msra.mxu0 0
      %3169 = vmatprep.subr.bf16.mxu0 0
      %3170 = vmatpush1.bf16.msra.mxu0 0
      %3171 = vmatprep.mubr.bf16.mxu0 %v267
      %3172 = vmatmul.mubr.bf16.gmra.mrb[0].mxu0 %v202
      %v3173 = vpop.f32.mrb[0].mxu0
      %v3174 = vadd.f32 0.0, %v3173
      %v3175 = vpop.f32.mrb[0].mxu0
      %v3176 = vpop.f32.mrb[0].mxu0
      %v3177 = vadd.f32 0.0, %v3176
      %v3178 = vpop.f32.mrb[0].mxu0
      %3179 = vdwg.mxu0
      %v3181 = vrot.slane %v3174, 3
      %3182 = vrot.lane.b32.xlu0 %v3181, 127
      %v3183 = vpop.permute.xlu0 %3182
      %v3185 = vadd.f32 %v3174, %v3183
      %v3187 = vrot.slane %v3174, 6
      %v3188 = vrot.slane %v3177, 6
      %v3189 = vsel %vm317, %v3187, %v3188
      %3190 = vrot.lane.b32.xlu0 %v3189, 126
      %v3191 = vpop.permute.xlu0 %3190
      %v3193 = vadd.f32 %v3185, %v3191
      %v3194 = vrot.slane %v3177, 1
      %3195 = vrot.lane.b32.xlu0 %v3194, 125
      %v3196 = vpop.permute.xlu0 %3195
      %v3198 = vadd.f32 %v3193, %v3196
      %v3199 = vrot.slane %v3177, 4
      %3200 = vrot.lane.b32.xlu0 %v3199, 124
      %v3201 = vpop.permute.xlu0 %3200
      %v3203 = vadd.f32 %v3198, %v3201
      %v3206 = vunpack.c.l.s4 1966171168
      %v3207 = vunpack.c.0.s8 %v3206
      %v3208 = vlaneseq
      %v3209 = vshrl.u32 %v3208, 7
      %v3210 = vsub.s32 %v3207, %v3209
      %v3211 = vrot.slane %v334, %v3210
      %v3212 = vcombine.high %v3211, %v3211
      %v3214 = vunpack.c.l.s4 1966171168
      %v3215 = vunpack.c.0.s8 %v3214
      %v3216 = vlaneseq
      %v3217 = vshrl.u32 %v3216, 7
      %v3218 = vsub.s32 %v3215, %v3217
      %v3219 = vrot.slane %v3211, %v3218
      %v3221 = vunpack.c.l.s4 1966171168
      %v3222 = vunpack.c.0.s8 %v3221
      %v3223 = vlaneseq
      %v3224 = vshrl.u32 %v3223, 7
      %v3225 = vsub.s32 %v3222, %v3224
      %v3226 = vrot.slane %v3212, %v3225
      %v3227 = vcombine.high %v3219, %v3219
      %v3233 = vunpack.c.l.s4 1966171168
      %v3234 = vunpack.c.0.s8 %v3233
      %v3235 = vlaneseq
      %v3236 = vshrl.u32 %v3235, 7
      %v3237 = vsub.s32 %v3234, %v3236
      %v3238 = vrot.slane %v485, %v3237
      %v3239 = vcombine.high %v3238, %v3238
      %v3241 = vunpack.c.l.s4 1966171168
      %v3242 = vunpack.c.0.s8 %v3241
      %v3243 = vlaneseq
      %v3244 = vshrl.u32 %v3243, 7
      %v3245 = vsub.s32 %v3242, %v3244
      %v3246 = vrot.slane %v3238, %v3245
      %v3248 = vunpack.c.l.s4 1966171168
      %v3249 = vunpack.c.0.s8 %v3248
      %v3250 = vlaneseq
      %v3251 = vshrl.u32 %v3250, 7
      %v3252 = vsub.s32 %v3249, %v3251
      %v3253 = vrot.slane %v3239, %v3252
      %v3254 = vcombine.high %v3246, %v3246
      %v3257 = vunpack.c.l.s4 1966171168
      %v3258 = vunpack.c.0.s8 %v3257
      %v3259 = vlaneseq
      %v3260 = vshrl.u32 %v3259, 7
      %v3261 = vsub.s32 %v3258, %v3260
      %v3262 = vrot.slane %v636, %v3261
      %v3263 = vcombine.high %v3262, %v3262
      %v3265 = vunpack.c.l.s4 1966171168
      %v3266 = vunpack.c.0.s8 %v3265
      %v3267 = vlaneseq
      %v3268 = vshrl.u32 %v3267, 7
      %v3269 = vsub.s32 %v3266, %v3268
      %v3270 = vrot.slane %v3262, %v3269
      %v3272 = vunpack.c.l.s4 1966171168
      %v3273 = vunpack.c.0.s8 %v3272
      %v3274 = vlaneseq
      %v3275 = vshrl.u32 %v3274, 7
      %v3276 = vsub.s32 %v3273, %v3275
      %v3277 = vrot.slane %v3263, %v3276
      %v3278 = vcombine.high %v3270, %v3270
      %v3281 = vunpack.c.l.s4 1966171168
      %v3282 = vunpack.c.0.s8 %v3281
      %v3283 = vlaneseq
      %v3284 = vshrl.u32 %v3283, 7
      %v3285 = vsub.s32 %v3282, %v3284
      %v3286 = vrot.slane %v787, %v3285
      %v3287 = vcombine.high %v3286, %v3286
      %v3289 = vunpack.c.l.s4 1966171168
      %v3290 = vunpack.c.0.s8 %v3289
      %v3291 = vlaneseq
      %v3292 = vshrl.u32 %v3291, 7
      %v3293 = vsub.s32 %v3290, %v3292
      %v3294 = vrot.slane %v3286, %v3293
      %v3296 = vunpack.c.l.s4 1966171168
      %v3297 = vunpack.c.0.s8 %v3296
      %v3298 = vlaneseq
      %v3299 = vshrl.u32 %v3298, 7
      %v3300 = vsub.s32 %v3297, %v3299
      %v3301 = vrot.slane %v3287, %v3300
      %v3302 = vcombine.high %v3294, %v3294
      %v3305 = vunpack.c.l.s4 1966171168
      %v3306 = vunpack.c.0.s8 %v3305
      %v3307 = vlaneseq
      %v3308 = vshrl.u32 %v3307, 7
      %v3309 = vsub.s32 %v3306, %v3308
      %v3310 = vrot.slane %v938, %v3309
      %v3311 = vcombine.high %v3310, %v3310
      %v3313 = vunpack.c.l.s4 1966171168
      %v3314 = vunpack.c.0.s8 %v3313
      %v3315 = vlaneseq
      %v3316 = vshrl.u32 %v3315, 7
      %v3317 = vsub.s32 %v3314, %v3316
      %v3318 = vrot.slane %v3310, %v3317
      %v3320 = vunpack.c.l.s4 1966171168
      %v3321 = vunpack.c.0.s8 %v3320
      %v3322 = vlaneseq
      %v3323 = vshrl.u32 %v3322, 7
      %v3324 = vsub.s32 %v3321, %v3323
      %v3325 = vrot.slane %v3311, %v3324
      %v3326 = vcombine.high %v3318, %v3318
      %v3329 = vunpack.c.l.s4 1966171168
      %v3330 = vunpack.c.0.s8 %v3329
      %v3331 = vlaneseq
      %v3332 = vshrl.u32 %v3331, 7
      %v3333 = vsub.s32 %v3330, %v3332
      %v3334 = vrot.slane %v1089, %v3333
      %v3335 = vcombine.high %v3334, %v3334
      %v3337 = vunpack.c.l.s4 1966171168
      %v3338 = vunpack.c.0.s8 %v3337
      %v3339 = vlaneseq
      %v3340 = vshrl.u32 %v3339, 7
      %v3341 = vsub.s32 %v3338, %v3340
      %v3342 = vrot.slane %v3334, %v3341
      %v3344 = vunpack.c.l.s4 1966171168
      %v3345 = vunpack.c.0.s8 %v3344
      %v3346 = vlaneseq
      %v3347 = vshrl.u32 %v3346, 7
      %v3348 = vsub.s32 %v3345, %v3347
      %v3349 = vrot.slane %v3335, %v3348
      %v3350 = vcombine.high %v3342, %v3342
      %v3353 = vunpack.c.l.s4 1966171168
      %v3354 = vunpack.c.0.s8 %v3353
      %v3355 = vlaneseq
      %v3356 = vshrl.u32 %v3355, 7
      %v3357 = vsub.s32 %v3354, %v3356
      %v3358 = vrot.slane %v1240, %v3357
      %v3359 = vcombine.high %v3358, %v3358
      %v3361 = vunpack.c.l.s4 1966171168
      %v3362 = vunpack.c.0.s8 %v3361
      %v3363 = vlaneseq
      %v3364 = vshrl.u32 %v3363, 7
      %v3365 = vsub.s32 %v3362, %v3364
      %v3366 = vrot.slane %v3358, %v3365
      %v3368 = vunpack.c.l.s4 1966171168
      %v3369 = vunpack.c.0.s8 %v3368
      %v3370 = vlaneseq
      %v3371 = vshrl.u32 %v3370, 7
      %v3372 = vsub.s32 %v3369, %v3371
      %v3373 = vrot.slane %v3359, %v3372
      %v3374 = vcombine.high %v3366, %v3366
      %v3377 = vunpack.c.l.s4 1966171168
      %v3378 = vunpack.c.0.s8 %v3377
      %v3379 = vlaneseq
      %v3380 = vshrl.u32 %v3379, 7
      %v3381 = vsub.s32 %v3378, %v3380
      %v3382 = vrot.slane %v1391, %v3381
      %v3383 = vcombine.high %v3382, %v3382
      %v3385 = vunpack.c.l.s4 1966171168
      %v3386 = vunpack.c.0.s8 %v3385
      %v3387 = vlaneseq
      %v3388 = vshrl.u32 %v3387, 7
      %v3389 = vsub.s32 %v3386, %v3388
      %v3390 = vrot.slane %v3382, %v3389
      %v3392 = vunpack.c.l.s4 1966171168
      %v3393 = vunpack.c.0.s8 %v3392
      %v3394 = vlaneseq
      %v3395 = vshrl.u32 %v3394, 7
      %v3396 = vsub.s32 %v3393, %v3395
      %v3397 = vrot.slane %v3383, %v3396
      %v3398 = vcombine.high %v3390, %v3390
      %v3401 = vunpack.c.l.s4 1966171168
      %v3402 = vunpack.c.0.s8 %v3401
      %v3403 = vlaneseq
      %v3404 = vshrl.u32 %v3403, 7
      %v3405 = vsub.s32 %v3402, %v3404
      %v3406 = vrot.slane %v1542, %v3405
      %v3407 = vcombine.high %v3406, %v3406
      %v3409 = vunpack.c.l.s4 1966171168
      %v3410 = vunpack.c.0.s8 %v3409
      %v3411 = vlaneseq
      %v3412 = vshrl.u32 %v3411, 7
      %v3413 = vsub.s32 %v3410, %v3412
      %v3414 = vrot.slane %v3406, %v3413
      %v3416 = vunpack.c.l.s4 1966171168
      %v3417 = vunpack.c.0.s8 %v3416
      %v3418 = vlaneseq
      %v3419 = vshrl.u32 %v3418, 7
      %v3420 = vsub.s32 %v3417, %v3419
      %v3421 = vrot.slane %v3407, %v3420
      %v3422 = vcombine.high %v3414, %v3414
      %v3428 = vunpack.c.l.s4 1966171168
      %v3429 = vunpack.c.0.s8 %v3428
      %v3430 = vlaneseq
      %v3431 = vshrl.u32 %v3430, 7
      %v3432 = vsub.s32 %v3429, %v3431
      %v3433 = vrot.slane %v1693, %v3432
      %v3434 = vcombine.high %v3433, %v3433
      %v3436 = vunpack.c.l.s4 1966171168
      %v3437 = vunpack.c.0.s8 %v3436
      %v3438 = vlaneseq
      %v3439 = vshrl.u32 %v3438, 7
      %v3440 = vsub.s32 %v3437, %v3439
      %v3441 = vrot.slane %v3433, %v3440
      %v3443 = vunpack.c.l.s4 1966171168
      %v3444 = vunpack.c.0.s8 %v3443
      %v3445 = vlaneseq
      %v3446 = vshrl.u32 %v3445, 7
      %v3447 = vsub.s32 %v3444, %v3446
      %v3448 = vrot.slane %v3434, %v3447
      %v3449 = vcombine.high %v3441, %v3441
      %v3452 = vunpack.c.l.s4 1966171168
      %v3453 = vunpack.c.0.s8 %v3452
      %v3454 = vlaneseq
      %v3455 = vshrl.u32 %v3454, 7
      %v3456 = vsub.s32 %v3453, %v3455
      %v3457 = vrot.slane %v1844, %v3456
      %v3458 = vcombine.high %v3457, %v3457
      %v3460 = vunpack.c.l.s4 1966171168
      %v3461 = vunpack.c.0.s8 %v3460
      %v3462 = vlaneseq
      %v3463 = vshrl.u32 %v3462, 7
      %v3464 = vsub.s32 %v3461, %v3463
      %v3465 = vrot.slane %v3457, %v3464
      %v3467 = vunpack.c.l.s4 1966171168
      %v3468 = vunpack.c.0.s8 %v3467
      %v3469 = vlaneseq
      %v3470 = vshrl.u32 %v3469, 7
      %v3471 = vsub.s32 %v3468, %v3470
      %v3472 = vrot.slane %v3458, %v3471
      %v3473 = vcombine.high %v3465, %v3465
      %v3476 = vunpack.c.l.s4 1966171168
      %v3477 = vunpack.c.0.s8 %v3476
      %v3478 = vlaneseq
      %v3479 = vshrl.u32 %v3478, 7
      %v3480 = vsub.s32 %v3477, %v3479
      %v3481 = vrot.slane %v1995, %v3480
      %v3482 = vcombine.high %v3481, %v3481
      %v3484 = vunpack.c.l.s4 1966171168
      %v3485 = vunpack.c.0.s8 %v3484
      %v3486 = vlaneseq
      %v3487 = vshrl.u32 %v3486, 7
      %v3488 = vsub.s32 %v3485, %v3487
      %v3489 = vrot.slane %v3481, %v3488
      %v3491 = vunpack.c.l.s4 1966171168
      %v3492 = vunpack.c.0.s8 %v3491
      %v3493 = vlaneseq
      %v3494 = vshrl.u32 %v3493, 7
      %v3495 = vsub.s32 %v3492, %v3494
      %v3496 = vrot.slane %v3482, %v3495
      %v3497 = vcombine.high %v3489, %v3489
      %v3500 = vunpack.c.l.s4 1966171168
      %v3501 = vunpack.c.0.s8 %v3500
      %v3502 = vlaneseq
      %v3503 = vshrl.u32 %v3502, 7
      %v3504 = vsub.s32 %v3501, %v3503
      %v3505 = vrot.slane %v2146, %v3504
      %v3506 = vcombine.high %v3505, %v3505
      %v3508 = vunpack.c.l.s4 1966171168
      %v3509 = vunpack.c.0.s8 %v3508
      %v3510 = vlaneseq
      %v3511 = vshrl.u32 %v3510, 7
      %v3512 = vsub.s32 %v3509, %v3511
      %v3513 = vrot.slane %v3505, %v3512
      %v3515 = vunpack.c.l.s4 1966171168
      %v3516 = vunpack.c.0.s8 %v3515
      %v3517 = vlaneseq
      %v3518 = vshrl.u32 %v3517, 7
      %v3519 = vsub.s32 %v3516, %v3518
      %v3520 = vrot.slane %v3506, %v3519
      %v3521 = vcombine.high %v3513, %v3513
      %v3524 = vunpack.c.l.s4 1966171168
      %v3525 = vunpack.c.0.s8 %v3524
      %v3526 = vlaneseq
      %v3527 = vshrl.u32 %v3526, 7
      %v3528 = vsub.s32 %v3525, %v3527
      %v3529 = vrot.slane %v2297, %v3528
      %v3530 = vcombine.high %v3529, %v3529
      %v3532 = vunpack.c.l.s4 1966171168
      %v3533 = vunpack.c.0.s8 %v3532
      %v3534 = vlaneseq
      %v3535 = vshrl.u32 %v3534, 7
      %v3536 = vsub.s32 %v3533, %v3535
      %v3537 = vrot.slane %v3529, %v3536
      %v3539 = vunpack.c.l.s4 1966171168
      %v3540 = vunpack.c.0.s8 %v3539
      %v3541 = vlaneseq
      %v3542 = vshrl.u32 %v3541, 7
      %v3543 = vsub.s32 %v3540, %v3542
      %v3544 = vrot.slane %v3530, %v3543
      %v3545 = vcombine.high %v3537, %v3537
      %v3548 = vunpack.c.l.s4 1966171168
      %v3549 = vunpack.c.0.s8 %v3548
      %v3550 = vlaneseq
      %v3551 = vshrl.u32 %v3550, 7
      %v3552 = vsub.s32 %v3549, %v3551
      %v3553 = vrot.slane %v2448, %v3552
      %v3554 = vcombine.high %v3553, %v3553
      %v3556 = vunpack.c.l.s4 1966171168
      %v3557 = vunpack.c.0.s8 %v3556
      %v3558 = vlaneseq
      %v3559 = vshrl.u32 %v3558, 7
      %v3560 = vsub.s32 %v3557, %v3559
      %v3561 = vrot.slane %v3553, %v3560
      %v3563 = vunpack.c.l.s4 1966171168
      %v3564 = vunpack.c.0.s8 %v3563
      %v3565 = vlaneseq
      %v3566 = vshrl.u32 %v3565, 7
      %v3567 = vsub.s32 %v3564, %v3566
      %v3568 = vrot.slane %v3554, %v3567
      %v3569 = vcombine.high %v3561, %v3561
      %v3572 = vunpack.c.l.s4 1966171168
      %v3573 = vunpack.c.0.s8 %v3572
      %v3574 = vlaneseq
      %v3575 = vshrl.u32 %v3574, 7
      %v3576 = vsub.s32 %v3573, %v3575
      %v3577 = vrot.slane %v2599, %v3576
      %v3578 = vcombine.high %v3577, %v3577
      %v3580 = vunpack.c.l.s4 1966171168
      %v3581 = vunpack.c.0.s8 %v3580
      %v3582 = vlaneseq
      %v3583 = vshrl.u32 %v3582, 7
      %v3584 = vsub.s32 %v3581, %v3583
      %v3585 = vrot.slane %v3577, %v3584
      %v3587 = vunpack.c.l.s4 1966171168
      %v3588 = vunpack.c.0.s8 %v3587
      %v3589 = vlaneseq
      %v3590 = vshrl.u32 %v3589, 7
      %v3591 = vsub.s32 %v3588, %v3590
      %v3592 = vrot.slane %v3578, %v3591
      %v3593 = vcombine.high %v3585, %v3585
      %v3596 = vunpack.c.l.s4 1966171168
      %v3597 = vunpack.c.0.s8 %v3596
      %v3598 = vlaneseq
      %v3599 = vshrl.u32 %v3598, 7
      %v3600 = vsub.s32 %v3597, %v3599
      %v3601 = vrot.slane %v2750, %v3600
      %v3602 = vcombine.high %v3601, %v3601
      %v3604 = vunpack.c.l.s4 1966171168
      %v3605 = vunpack.c.0.s8 %v3604
      %v3606 = vlaneseq
      %v3607 = vshrl.u32 %v3606, 7
      %v3608 = vsub.s32 %v3605, %v3607
      %v3609 = vrot.slane %v3601, %v3608
      %v3611 = vunpack.c.l.s4 1966171168
      %v3612 = vunpack.c.0.s8 %v3611
      %v3613 = vlaneseq
      %v3614 = vshrl.u32 %v3613, 7
      %v3615 = vsub.s32 %v3612, %v3614
      %v3616 = vrot.slane %v3602, %v3615
      %v3617 = vcombine.high %v3609, %v3609
      %v3623 = vunpack.c.l.s4 1966171168
      %v3624 = vunpack.c.0.s8 %v3623
      %v3625 = vlaneseq
      %v3626 = vshrl.u32 %v3625, 7
      %v3627 = vsub.s32 %v3624, %v3626
      %v3628 = vrot.slane %v2901, %v3627
      %v3629 = vcombine.high %v3628, %v3628
      %v3631 = vunpack.c.l.s4 1966171168
      %v3632 = vunpack.c.0.s8 %v3631
      %v3633 = vlaneseq
      %v3634 = vshrl.u32 %v3633, 7
      %v3635 = vsub.s32 %v3632, %v3634
      %v3636 = vrot.slane %v3628, %v3635
      %v3638 = vunpack.c.l.s4 1966171168
      %v3639 = vunpack.c.0.s8 %v3638
      %v3640 = vlaneseq
      %v3641 = vshrl.u32 %v3640, 7
      %v3642 = vsub.s32 %v3639, %v3641
      %v3643 = vrot.slane %v3629, %v3642
      %v3644 = vcombine.high %v3636, %v3636
      %v3647 = vunpack.c.l.s4 1966171168
      %v3648 = vunpack.c.0.s8 %v3647
      %v3649 = vlaneseq
      %v3650 = vshrl.u32 %v3649, 7
      %v3651 = vsub.s32 %v3648, %v3650
      %v3652 = vrot.slane %v3052, %v3651
      %v3653 = vcombine.high %v3652, %v3652
      %v3655 = vunpack.c.l.s4 1966171168
      %v3656 = vunpack.c.0.s8 %v3655
      %v3657 = vlaneseq
      %v3658 = vshrl.u32 %v3657, 7
      %v3659 = vsub.s32 %v3656, %v3658
      %v3660 = vrot.slane %v3652, %v3659
      %v3662 = vunpack.c.l.s4 1966171168
      %v3663 = vunpack.c.0.s8 %v3662
      %v3664 = vlaneseq
      %v3665 = vshrl.u32 %v3664, 7
      %v3666 = vsub.s32 %v3663, %v3665
      %v3667 = vrot.slane %v3653, %v3666
      %v3668 = vcombine.high %v3660, %v3660
      %v3671 = vunpack.c.l.s4 1966171168
      %v3672 = vunpack.c.0.s8 %v3671
      %v3673 = vlaneseq
      %v3674 = vshrl.u32 %v3673, 7
      %v3675 = vsub.s32 %v3672, %v3674
      %v3676 = vrot.slane %v3203, %v3675
      %v3677 = vcombine.high %v3676, %v3676
      %v3679 = vunpack.c.l.s4 1966171168
      %v3680 = vunpack.c.0.s8 %v3679
      %v3681 = vlaneseq
      %v3682 = vshrl.u32 %v3681, 7
      %v3683 = vsub.s32 %v3680, %v3682
      %v3684 = vrot.slane %v3676, %v3683
      %v3686 = vunpack.c.l.s4 1966171168
      %v3687 = vunpack.c.0.s8 %v3686
      %v3688 = vlaneseq
      %v3689 = vshrl.u32 %v3688, 7
      %v3690 = vsub.s32 %v3687, %v3689
      %v3691 = vrot.slane %v3677, %v3690
      %v3692 = vcombine.high %v3684, %v3684
      %v3693 = vlaneseq
      %v3694 = vshrl.u32 %v3693, 7
      %v3695 = vsub.s32 0, %v3694
      %v3696 = vrot.slane %v3246, %v3695
      %v3697 = vlaneseq
      %v3698 = vshrl.u32 %v3697, 7
      %v3699 = vsub.s32 0, %v3698
      %v3700 = vrot.slane %v3253, %v3699
      %v3701 = vlaneseq
      %v3702 = vshrl.u32 %v3701, 7
      %v3703 = vsub.s32 0, %v3702
      %v3704 = vrot.slane %v3254, %v3703
      %v3708 = vlaneseq
      %v3709 = vshrl.u32 %v3708, 7
      %v3710 = vsub.s32 0, %v3709
      %v3711 = vrot.slane %v3270, %v3710
      %v3712 = vlaneseq
      %v3713 = vshrl.u32 %v3712, 7
      %v3714 = vsub.s32 0, %v3713
      %v3715 = vrot.slane %v3277, %v3714
      %v3716 = vlaneseq
      %v3717 = vshrl.u32 %v3716, 7
      %v3718 = vsub.s32 0, %v3717
      %v3719 = vrot.slane %v3278, %v3718
      %v3723 = vlaneseq
      %v3724 = vshrl.u32 %v3723, 7
      %v3725 = vsub.s32 0, %v3724
      %v3726 = vrot.slane %v3294, %v3725
      %v3727 = vlaneseq
      %v3728 = vshrl.u32 %v3727, 7
      %v3729 = vsub.s32 0, %v3728
      %v3730 = vrot.slane %v3301, %v3729
      %v3731 = vlaneseq
      %v3732 = vshrl.u32 %v3731, 7
      %v3733 = vsub.s32 0, %v3732
      %v3734 = vrot.slane %v3302, %v3733
      %v3738 = vlaneseq
      %v3739 = vshrl.u32 %v3738, 7
      %v3740 = vsub.s32 0, %v3739
      %v3741 = vrot.slane %v3318, %v3740
      %v3742 = vlaneseq
      %v3743 = vshrl.u32 %v3742, 7
      %v3744 = vsub.s32 0, %v3743
      %v3745 = vrot.slane %v3325, %v3744
      %v3746 = vlaneseq
      %v3747 = vshrl.u32 %v3746, 7
      %v3748 = vsub.s32 0, %v3747
      %v3749 = vrot.slane %v3326, %v3748
      %v3753 = vlaneseq
      %v3754 = vshrl.u32 %v3753, 7
      %v3755 = vsub.s32 0, %v3754
      %v3756 = vrot.slane %v3342, %v3755
      %v3757 = vlaneseq
      %v3758 = vshrl.u32 %v3757, 7
      %v3759 = vsub.s32 0, %v3758
      %v3760 = vrot.slane %v3349, %v3759
      %v3761 = vlaneseq
      %v3762 = vshrl.u32 %v3761, 7
      %v3763 = vsub.s32 0, %v3762
      %v3764 = vrot.slane %v3350, %v3763
      %v3768 = vlaneseq
      %v3769 = vshrl.u32 %v3768, 7
      %v3770 = vsub.s32 0, %v3769
      %v3771 = vrot.slane %v3366, %v3770
      %v3772 = vlaneseq
      %v3773 = vshrl.u32 %v3772, 7
      %v3774 = vsub.s32 0, %v3773
      %v3775 = vrot.slane %v3373, %v3774
      %v3776 = vlaneseq
      %v3777 = vshrl.u32 %v3776, 7
      %v3778 = vsub.s32 0, %v3777
      %v3779 = vrot.slane %v3374, %v3778
      %v3783 = vlaneseq
      %v3784 = vshrl.u32 %v3783, 7
      %v3785 = vsub.s32 0, %v3784
      %v3786 = vrot.slane %v3390, %v3785
      %v3787 = vlaneseq
      %v3788 = vshrl.u32 %v3787, 7
      %v3789 = vsub.s32 0, %v3788
      %v3790 = vrot.slane %v3397, %v3789
      %v3791 = vlaneseq
      %v3792 = vshrl.u32 %v3791, 7
      %v3793 = vsub.s32 0, %v3792
      %v3794 = vrot.slane %v3398, %v3793
      %v3798 = vlaneseq
      %v3799 = vshrl.u32 %v3798, 7
      %v3800 = vsub.s32 0, %v3799
      %v3801 = vrot.slane %v3441, %v3800
      %v3802 = vlaneseq
      %v3803 = vshrl.u32 %v3802, 7
      %v3804 = vsub.s32 0, %v3803
      %v3805 = vrot.slane %v3448, %v3804
      %v3806 = vlaneseq
      %v3807 = vshrl.u32 %v3806, 7
      %v3808 = vsub.s32 0, %v3807
      %v3809 = vrot.slane %v3449, %v3808
      %v3813 = vlaneseq
      %v3814 = vshrl.u32 %v3813, 7
      %v3815 = vsub.s32 0, %v3814
      %v3816 = vrot.slane %v3465, %v3815
      %v3817 = vlaneseq
      %v3818 = vshrl.u32 %v3817, 7
      %v3819 = vsub.s32 0, %v3818
      %v3820 = vrot.slane %v3472, %v3819
      %v3821 = vlaneseq
      %v3822 = vshrl.u32 %v3821, 7
      %v3823 = vsub.s32 0, %v3822
      %v3824 = vrot.slane %v3473, %v3823
      %v3828 = vlaneseq
      %v3829 = vshrl.u32 %v3828, 7
      %v3830 = vsub.s32 0, %v3829
      %v3831 = vrot.slane %v3489, %v3830
      %v3832 = vlaneseq
      %v3833 = vshrl.u32 %v3832, 7
      %v3834 = vsub.s32 0, %v3833
      %v3835 = vrot.slane %v3496, %v3834
      %v3836 = vlaneseq
      %v3837 = vshrl.u32 %v3836, 7
      %v3838 = vsub.s32 0, %v3837
      %v3839 = vrot.slane %v3497, %v3838
      %v3843 = vlaneseq
      %v3844 = vshrl.u32 %v3843, 7
      %v3845 = vsub.s32 0, %v3844
      %v3846 = vrot.slane %v3513, %v3845
      %v3847 = vlaneseq
      %v3848 = vshrl.u32 %v3847, 7
      %v3849 = vsub.s32 0, %v3848
      %v3850 = vrot.slane %v3520, %v3849
      %v3851 = vlaneseq
      %v3852 = vshrl.u32 %v3851, 7
      %v3853 = vsub.s32 0, %v3852
      %v3854 = vrot.slane %v3521, %v3853
      %v3858 = vlaneseq
      %v3859 = vshrl.u32 %v3858, 7
      %v3860 = vsub.s32 0, %v3859
      %v3861 = vrot.slane %v3537, %v3860
      %v3862 = vlaneseq
      %v3863 = vshrl.u32 %v3862, 7
      %v3864 = vsub.s32 0, %v3863
      %v3865 = vrot.slane %v3544, %v3864
      %v3866 = vlaneseq
      %v3867 = vshrl.u32 %v3866, 7
      %v3868 = vsub.s32 0, %v3867
      %v3869 = vrot.slane %v3545, %v3868
      %v3873 = vlaneseq
      %v3874 = vshrl.u32 %v3873, 7
      %v3875 = vsub.s32 0, %v3874
      %v3876 = vrot.slane %v3561, %v3875
      %v3877 = vlaneseq
      %v3878 = vshrl.u32 %v3877, 7
      %v3879 = vsub.s32 0, %v3878
      %v3880 = vrot.slane %v3568, %v3879
      %v3881 = vlaneseq
      %v3882 = vshrl.u32 %v3881, 7
      %v3883 = vsub.s32 0, %v3882
      %v3884 = vrot.slane %v3569, %v3883
      %v3888 = vlaneseq
      %v3889 = vshrl.u32 %v3888, 7
      %v3890 = vsub.s32 0, %v3889
      %v3891 = vrot.slane %v3585, %v3890
      %v3892 = vlaneseq
      %v3893 = vshrl.u32 %v3892, 7
      %v3894 = vsub.s32 0, %v3893
      %v3895 = vrot.slane %v3592, %v3894
      %v3896 = vlaneseq
      %v3897 = vshrl.u32 %v3896, 7
      %v3898 = vsub.s32 0, %v3897
      %v3899 = vrot.slane %v3593, %v3898
      %vm3903 = vcmask 1040384
      %v3904 = vsel %vm3903, %v3219, %v3696
      %v3905 = vsel %vm3903, %v3226, %v3700
      %v3906 = vsel %vm3903, %v3227, %v3704
      %v3907 = vsel %vm317, %v3904, %v3711
      %v3908 = vsel %vm317, %v3905, %v3715
      %v3909 = vsel %vm317, %v3906, %v3719
      %vm3910 = vcmask 1042432
      %v3911 = vsel %vm3910, %v3907, %v3726
      %v3912 = vsel %vm3910, %v3908, %v3730
      %v3913 = vsel %vm3910, %v3909, %v3734
      %vm3914 = vcmask 1043456
      %v3915 = vsel %vm3914, %v3911, %v3741
      %v3916 = vsel %vm3914, %v3912, %v3745
      %v3917 = vsel %vm3914, %v3913, %v3749
      %vm3918 = vcmask 1044480
      %v3919 = vsel %vm3918, %v3915, %v3756
      %v3920 = vsel %vm3918, %v3916, %v3760
      %v3921 = vsel %vm3918, %v3917, %v3764
      %vm3922 = vcmask 1045504
      %v3923 = vsel %vm3922, %v3919, %v3771
      %v3924 = vsel %vm3922, %v3920, %v3775
      %v3925 = vsel %vm3922, %v3921, %v3779
      %vm3926 = vcmask 1046528
      %v3927 = vsel %vm3926, %v3923, %v3786
      %v3928 = vsel %vm3926, %v3924, %v3790
      %v3929 = vsel %vm3926, %v3925, %v3794
      %v3930 = vsel %vm3903, %v3414, %v3801
      %v3931 = vsel %vm3903, %v3421, %v3805
      %v3932 = vsel %vm3903, %v3422, %v3809
      %v3933 = vsel %vm317, %v3930, %v3816
      %v3934 = vsel %vm317, %v3931, %v3820
      %v3935 = vsel %vm317, %v3932, %v3824
      %v3936 = vsel %vm3910, %v3933, %v3831
      %v3937 = vsel %vm3910, %v3934, %v3835
      %v3938 = vsel %vm3910, %v3935, %v3839
      %v3939 = vsel %vm3914, %v3936, %v3846
      %v3940 = vsel %vm3914, %v3937, %v3850
      %v3941 = vsel %vm3914, %v3938, %v3854
      %v3942 = vsel %vm3918, %v3939, %v3861
      %v3943 = vsel %vm3918, %v3940, %v3865
      %v3944 = vsel %vm3918, %v3941, %v3869
      %v3945 = vsel %vm3922, %v3942, %v3876
      %v3946 = vsel %vm3922, %v3943, %v3880
      %v3947 = vsel %vm3922, %v3944, %v3884
      %v3948 = vsel %vm3926, %v3945, %v3891
      %v3949 = vsel %vm3926, %v3946, %v3895
      %v3950 = vsel %vm3926, %v3947, %v3899
      %v3951 = vlaneseq
      %v3952 = vshrl.u32 %v3951, 7
      %v3953 = vsub.s32 0, %v3952
      %v3954 = vrot.slane %v3636, %v3953
      %v3955 = vlaneseq
      %v3956 = vshrl.u32 %v3955, 7
      %v3957 = vsub.s32 0, %v3956
      %v3958 = vrot.slane %v3643, %v3957
      %v3959 = vlaneseq
      %v3960 = vshrl.u32 %v3959, 7
      %v3961 = vsub.s32 0, %v3960
      %v3962 = vrot.slane %v3644, %v3961
      %v3966 = vlaneseq
      %v3967 = vshrl.u32 %v3966, 7
      %v3968 = vsub.s32 0, %v3967
      %v3969 = vrot.slane %v3660, %v3968
      %v3970 = vlaneseq
      %v3971 = vshrl.u32 %v3970, 7
      %v3972 = vsub.s32 0, %v3971
      %v3973 = vrot.slane %v3667, %v3972
      %v3974 = vlaneseq
      %v3975 = vshrl.u32 %v3974, 7
      %v3976 = vsub.s32 0, %v3975
      %v3977 = vrot.slane %v3668, %v3976
      %v3981 = vlaneseq
      %v3982 = vshrl.u32 %v3981, 7
      %v3983 = vsub.s32 0, %v3982
      %v3984 = vrot.slane %v3684, %v3983
      %v3985 = vlaneseq
      %v3986 = vshrl.u32 %v3985, 7
      %v3987 = vsub.s32 0, %v3986
      %v3988 = vrot.slane %v3691, %v3987
      %v3989 = vlaneseq
      %v3990 = vshrl.u32 %v3989, 7
      %v3991 = vsub.s32 0, %v3990
      %v3992 = vrot.slane %v3692, %v3991
      %v3996 = vsel %vm3903, %v3609, %v3954
      %v3997 = vsel %vm3903, %v3616, %v3958
      %v3998 = vsel %vm3903, %v3617, %v3962
      %v3999 = vsel %vm317, %v3996, %v3969
      %v4000 = vsel %vm317, %v3997, %v3973
      %v4001 = vsel %vm317, %v3998, %v3977
      %v4002 = vsel %vm3910, %v3999, %v3984
      %v4003 = vsel %vm3910, %v4000, %v3988
      %v4004 = vsel %vm3910, %v4001, %v3992
      %vm4005 = vcmask 162816
      %4006 = vst.msk [vmem:[%s165] sm:$0xff] %vm4005, %v3927
      %4007 = vst.msk [vmem:[%s165 + $0x8] sm:$0xff] %vm4005, %v3948
      %vm4008 = vcmask 158720
      %4009 = vst.msk [vmem:[%s165 + $0x10] sm:$0xf] %vm4008, %v4002
      %4010 = vst.msk [vmem:[%s165 + $0x18] sm:$0xff] %vm4005, %v3928
      %4011 = vst.msk [vmem:[%s165 + $0x20] sm:$0xff] %vm4005, %v3949
      %4012 = vst.msk [vmem:[%s165 + $0x28] sm:$0xf] %vm4008, %v4003
      %4013 = vst.msk [vmem:[%s165 + $0x30] sm:$0xff] %vm4005, %v3929
      %4014 = vst.msk [vmem:[%s165 + $0x38] sm:$0xff] %vm4005, %v3950
      %4015 = vst.msk [vmem:[%s165 + $0x40] sm:$0xf] %vm4008, %v4004
      %s4016 = smul.u32 3, %s18
      %p4017 = scmp.lt.s32.totalorder %s17, 1
      %s4018 = scalar_select %p4017, %s17, 1
      %p4019 = scmp.lt.s32.totalorder %s4016, 2
      %s4020 = scalar_select %p4019, %s4016, 2
      %s4021 = smul.addr %s4018, 9
      %s4022 = sadd.s32 %s4020, %s4021
      %s4023 = smul.addr %s4022, 8
      %s4024 = scalar_lea.vmem %s2, %s4023
      // Predicated region
      $region29: #{feature_correlation.1} parent=27 // pred_check
        %p4025 = pneg %p92
      $region30: #{feature_correlation.1} parent=27 // pred_check_branch
        %4027 = sbr.rel (%p4025) target = $region32
      $region31: #{feature_correlation.1} parent=27 // pred_region
        %s4028 = smul.u32 3, %s18
      $region32: #{feature_correlation.1} parent=27 // pred_fallthru
        _
    $region28: #{feature_correlation.1} parent=5 // pred_fallthru
      _
    %p4029 = scmp.le.s32.totalorder 2, %s8
    // Predicated region
    $region33: #{feature_correlation.1} parent=5 // pred_check
      %p4030 = pneg %p4029
    $region34: #{feature_correlation.1} parent=5 // pred_check_branch
      %4032 = sbr.rel (%p4030) target = $region36
    $region35: #{feature_correlation.1} parent=5 // pred_region
      %s4033 = ssub.s32 %s8, 2
      // Predicated region
      $region37: #{feature_correlation.1} parent=35 // pred_check
        %p4034 = pneg %p98
      $region38: #{feature_correlation.1} parent=35 // pred_check_branch
        %4036 = sbr.rel (%p4034) target = $region40
      $region39: #{feature_correlation.1} parent=35 // pred_region
        %s4037 = smul.u32 3, %s20
        %p4038 = scmp.lt.s32.totalorder %s19, 1
        %s4039 = scalar_select %p4038, %s19, 1
        %p4040 = scmp.lt.s32.totalorder %s4037, 2
        %s4041 = scalar_select %p4040, %s4037, 2
        %s4042 = smul.addr %s4039, 9
        %s4043 = sadd.s32 %s4041, %s4042
        %s4044 = smul.addr %s4043, 8
        %s4045 = scalar_lea.vmem %s2, %s4044
      $region40: #{feature_correlation.1} parent=35 // pred_fallthru
        _
    $region36: #{feature_correlation.1} parent=5 // pred_fallthru
      _
  $region6: #{feature_correlation.1} parent=0 // loop_footer
    %s12 = sadd.s32 1, %s8
  $region7: #{feature_correlation.1} parent=0 // loop_footer_branch
    %7 = sbr.rel target = $region3
  $region8: #{feature_correlation.1} parent=0 // loop_exit
    _

</llo_original>
